<compile_context>
chip_gen: v6e
topology: v6e:2x2x1
jax: 0.10.0
libtpu: 0.0.40
codegen_flags: <defaults>
</compile_context>

<pallas_src>
import functools
import math

import jax
import jax.numpy as jnp
from jax.experimental import pallas as pl
from jax.experimental.pallas import tpu as pltpu

_NEG_INF = -1e30  # finite mask value: exp(_NEG_INF - m) underflows to exactly 0


# ------------------------------ tiling helpers ------------------------------

def _round_up(x, m):
    return ((x + m - 1) // m) * m


def _fit_tile(dim, target, align):
    """Return (tile, padded_dim) with tile % align == 0 and tile | padded_dim."""
    padded = _round_up(dim, align)
    t = min(_round_up(target, align), padded)
    while padded % t:
        t -= align
    return t, padded


def _pad2d(a, rows, cols):
    pr, pc = rows - a.shape[0], cols - a.shape[1]
    if pr or pc:
        a = jnp.pad(a, ((0, pr), (0, pc)))
    return a


def _gelu_tanh(x):
    # TODO(synk): PyTorch nn.GELU() defaults to the exact erf formulation; erf
    # lowering inside Mosaic is not guaranteed, so the tanh approximation is used.
    c = math.sqrt(2.0 / math.pi)
    return 0.5 * x * (1.0 + jnp.tanh(c * (x + 0.044715 * x * x * x)))


# --------------------------- tiled matmul kernel ----------------------------

def _make_matmul_kernel(*, transpose_rhs, activation, has_bias, has_residual):
    def kernel(*refs):
        x_ref, w_ref = refs[0], refs[1]
        pos = 2
        b_ref = r_ref = None
        if has_bias:
            b_ref = refs[pos]; pos += 1
        if has_residual:
            r_ref = refs[pos]; pos += 1
        o_ref, acc_ref = refs[pos], refs[pos + 1]

        k = pl.program_id(2)

        @pl.when(k == 0)
        def _():
            acc_ref[...] = jnp.zeros_like(acc_ref)

        x = x_ref[...]
        w = w_ref[...]
        if transpose_rhs:
            acc_ref[...] += jax.lax.dot_general(
                x, w, (((1,), (1,)), ((), ())),
                preferred_element_type=jnp.float32)
        else:
            acc_ref[...] += jnp.dot(x, w, preferred_element_type=jnp.float32)

        @pl.when(k == pl.num_programs(2) - 1)
        def _():
            y = acc_ref[...]
            if has_bias:
                y = y + b_ref[...]
            if activation == "gelu":
                y = _gelu_tanh(y)
            if has_residual:
                y = y + r_ref[...]
            o_ref[...] = y.astype(o_ref.dtype)

    return kernel


def pallas_matmul(x, w, *, bias=None, residual=None, activation=None,
                  transpose_rhs=False, out_dtype=jnp.float32,
                  tm=256, tn=512, tk=1024):
    """y = x @ (w.T if transpose_rhs else w) [+ bias] [gelu] [+ residual].

    x: (M, K); w: (N, K) if transpose_rhs else (K, N).  Operands are expected
    pre-cast to bf16 (weights at prep time, activations produced in bf16);
    anything else is cast here once.  f32 MXU accumulation, f32 epilogue.
    """
    M, K = x.shape
    N = w.shape[0] if transpose_rhs else w.shape[1]

    tm, Mp = _fit_tile(M, tm, 16)      # 16: bf16 packs two rows per sublane
    tn, Np = _fit_tile(N, tn, 128)
    tk, Kp = _fit_tile(K, tk, 128)

    xp = x if x.dtype == jnp.bfloat16 else x.astype(jnp.bfloat16)
    wp = w if w.dtype == jnp.bfloat16 else w.astype(jnp.bfloat16)
    xp = _pad2d(xp, Mp, Kp)
    if transpose_rhs:
        wp = _pad2d(wp, Np, Kp)
        w_spec = pl.BlockSpec((tn, tk), lambda i, j, k: (j, k))
    else:
        wp = _pad2d(wp, Kp, Np)
        w_spec = pl.BlockSpec((tk, tn), lambda i, j, k: (k, j))

    inputs = [xp, wp]
    in_specs = [pl.BlockSpec((tm, tk), lambda i, j, k: (i, k)), w_spec]

    if bias is not None:
        inputs.append(_pad2d(bias.reshape(1, N).astype(jnp.float32), 1, Np))
        in_specs.append(pl.BlockSpec((1, tn), lambda i, j, k: (0, j)))
    if residual is not None:
        inputs.append(_pad2d(residual.astype(jnp.float32), Mp, Np))
        in_specs.append(pl.BlockSpec((tm, tn), lambda i, j, k: (i, j)))

    kernel = _make_matmul_kernel(
        transpose_rhs=transpose_rhs, activation=activation,
        has_bias=bias is not None, has_residual=residual is not None)

    # TODO(synk): on v5e, if profiling shows exposed DMA at k-step boundaries,
    # add pipeline_mode=pl.Buffered(3) to w_spec.
    out = pl.pallas_call(
        kernel,
        out_shape=jax.ShapeDtypeStruct((Mp, Np), out_dtype),
        grid=(Mp // tm, Np // tn, Kp // tk),
        in_specs=in_specs,
        out_specs=pl.BlockSpec((tm, tn), lambda i, j, k: (i, j)),
        scratch_shapes=[pltpu.VMEM((tm, tn), jnp.float32)],
        compiler_params=pltpu.CompilerParams(
            dimension_semantics=("parallel", "parallel", "arbitrary")),
    )(*inputs)

    if (Mp, Np) != (M, N):
        out = out[:M, :N]
    return out


# ------------------------------ LayerNorm kernel -----------------------------

def _layernorm_kernel(x_ref, g_ref, b_ref, o_ref):
    x = x_ref[...].astype(jnp.float32)
    mu = jnp.mean(x, axis=-1, keepdims=True)
    var = jnp.mean(jnp.square(x - mu), axis=-1, keepdims=True)
    inv = jax.lax.rsqrt(var + 1e-5)
    o_ref[...] = ((x - mu) * inv * g_ref[...] + b_ref[...]).astype(o_ref.dtype)


def pallas_layernorm(x2d, g, b, *, block_rows=256, out_dtype=jnp.bfloat16):
    """LayerNorm over the last dim; f32 math, bf16 output (feeds matmuls)."""
    M, D = x2d.shape
    tr, Mp = _fit_tile(M, block_rows, 8)
    xp = x2d if Mp == M else jnp.pad(x2d, ((0, Mp - M), (0, 0)))
    out = pl.pallas_call(
        _layernorm_kernel,
        out_shape=jax.ShapeDtypeStruct((Mp, D), out_dtype),
        grid=(Mp // tr,),
        in_specs=[
            pl.BlockSpec((tr, D), lambda i: (i, 0)),
            pl.BlockSpec((1, D), lambda i: (0, 0)),
            pl.BlockSpec((1, D), lambda i: (0, 0)),
        ],
        out_specs=pl.BlockSpec((tr, D), lambda i: (i, 0)),
        compiler_params=pltpu.CompilerParams(dimension_semantics=("parallel",)),
    )(xp, g.reshape(1, D).astype(jnp.float32), b.reshape(1, D).astype(jnp.float32))
    return out[:M] if Mp != M else out


# -------------------- flash attention kernel (no transposes) -----------------

def _attention_kernel(q_ref, k_ref, v_ref, o_ref, m_sc, l_sc, acc_sc, *,
                      n_heads, head_dim, scale, causal, kv_valid_len, block_k):
    kt = pl.program_id(2)

    @pl.when(kt == 0)
    def _():
        m_sc[...] = jnp.full_like(m_sc, -jnp.inf)
        l_sc[...] = jnp.zeros_like(l_sc)
        acc_sc[...] = jnp.zeros_like(acc_sc)

    q = q_ref[0]                      # (Tq, hb*Dh)  bf16
    k = k_ref[0]                      # (block_k, hb*Dh)
    v = v_ref[0]
    tq = q.shape[0]

    col = kt * block_k + jax.lax.broadcasted_iota(jnp.int32, (tq, block_k), 1)
    valid = None
    if causal:
        row = jax.lax.broadcasted_iota(jnp.int32, (tq, block_k), 0)
        valid = col <= row
    if kv_valid_len is not None:
        ok = col < kv_valid_len
        valid = ok if valid is None else (valid & ok)

    for h in range(n_heads):
        sl = slice(h * head_dim, (h + 1) * head_dim)
        qh, kh, vh = q[:, sl], k[:, sl], v[:, sl]
        s = jax.lax.dot_general(qh, kh, (((1,), (1,)), ((), ())),
                                preferred_element_type=jnp.float32) * scale
        if valid is not None:
            s = jnp.where(valid, s, _NEG_INF)

        m_prev = m_sc[h]
        m_new = jnp.maximum(m_prev, jnp.max(s, axis=-1, keepdims=True))
        alpha = jnp.exp(m_prev - m_new)
        p = jnp.exp(s - m_new)
        l_sc[h] = alpha * l_sc[h] + jnp.sum(p, axis=-1, keepdims=True)
        acc_sc[h] = alpha * acc_sc[h] + jnp.dot(
            p.astype(vh.dtype), vh, preferred_element_type=jnp.float32)
        m_sc[h] = m_new

    @pl.when(kt == pl.num_programs(2) - 1)
    def _():
        for h in range(n_heads):
            inv = pl.reciprocal(l_sc[h], approx=True)
            o_ref[0, :, h * head_dim:(h + 1) * head_dim] = (
                acc_sc[h] * inv).astype(o_ref.dtype)


def _pick_head_block(n_head, head_dim, target):
    for c in range(min(target, n_head), 0, -1):
        if n_head % c:
            continue
        if c == n_head or (c * head_dim) % 128 == 0:
            return c
    return n_head


def pallas_attention(q, k, v, *, n_head, causal, heads_per_block=4, block_k=512):
    """q: (B, Tq, H*Dh); k, v: (B, Tk, H*Dh) — all bf16, head-interleaved layout."""
    B, Tq, D = q.shape
    Tk = k.shape[1]
    Dh = D // n_head

    hb = _pick_head_block(n_head, Dh, heads_per_block)
    tkk, Tkp = _fit_tile(Tk, block_k, 8)
    if Tkp != Tk:
        k = jnp.pad(k, ((0, 0), (0, Tkp - Tk), (0, 0)))
        v = jnp.pad(v, ((0, 0), (0, Tkp - Tk), (0, 0)))

    kernel = functools.partial(
        _attention_kernel, n_heads=hb, head_dim=Dh, scale=Dh ** (-0.5),
        causal=causal, kv_valid_len=(Tk if Tkp != Tk else None), block_k=tkk)

    hd = hb * Dh
    return pl.pallas_call(
        kernel,
        out_shape=jax.ShapeDtypeStruct((B, Tq, D), jnp.bfloat16),
        grid=(B, n_head // hb, Tkp // tkk),
        in_specs=[
            pl.BlockSpec((1, Tq, hd), lambda b, h, kt: (b, 0, h)),
            pl.BlockSpec((1, tkk, hd), lambda b, h, kt: (b, kt, h)),
            pl.BlockSpec((1, tkk, hd), lambda b, h, kt: (b, kt, h)),
        ],
        out_specs=pl.BlockSpec((1, Tq, hd), lambda b, h, kt: (b, 0, h)),
        scratch_shapes=[
            pltpu.VMEM((hb, Tq, 1), jnp.float32),
            pltpu.VMEM((hb, Tq, 1), jnp.float32),
            pltpu.VMEM((hb, Tq, Dh), jnp.float32),
        ],
        compiler_params=pltpu.CompilerParams(
            dimension_semantics=("parallel", "parallel", "arbitrary")),
    )(q, k, v)


# ------------------------------- model glue ---------------------------------

def residual_attention_block(x, xa2, p, n_head):
    """x: (B, T, D) f32 residual stream; xa2: (B*Ta, D) bf16 audio features."""
    B, T, D = x.shape
    x2 = x.reshape(B * T, D)

    # --- causal self-attention (fused QKV projection) ---
    h = pallas_layernorm(x2, p['attn_ln_g'], p['attn_ln_b'])
    qkv = pallas_matmul(h, p['attn']['w_qkv'], bias=p['attn']['b_qkv'],
                        out_dtype=jnp.bfloat16)
    q = qkv[:, :D].reshape(B, T, D)
    kk = qkv[:, D:2 * D].reshape(B, T, D)
    vv = qkv[:, 2 * D:].reshape(B, T, D)
    wv = pallas_attention(q, kk, vv, n_head=n_head, causal=True)
    x2 = pallas_matmul(wv.reshape(B * T, D), p['attn']['wo'],
                       bias=p['attn']['bo'], residual=x2)

    # --- cross-attention over audio (fused KV projection, no mask) ---
    h = pallas_layernorm(x2, p['cross_ln_g'], p['cross_ln_b'])
    q = pallas_matmul(h, p['cross']['wq'], bias=p['cross']['bq'],
                      out_dtype=jnp.bfloat16).reshape(B, T, D)
    kv = pallas_matmul(xa2, p['cross']['w_kv'], bias=p['cross']['b_kv'],
                       out_dtype=jnp.bfloat16)
    Ta = xa2.shape[0] // B
    kk = kv[:, :D].reshape(B, Ta, D)
    vv = kv[:, D:].reshape(B, Ta, D)
    wv = pallas_attention(q, kk, vv, n_head=n_head, causal=False)
    x2 = pallas_matmul(wv.reshape(B * T, D), p['cross']['wo'],
                       bias=p['cross']['bo'], residual=x2)

    # --- MLP: GELU fused into w1 epilogue, residual fused into w2 epilogue ---
    h = pallas_layernorm(x2, p['mlp_ln_g'], p['mlp_ln_b'])
    h1 = pallas_matmul(h, p['mlp_w1'], bias=p['mlp_b1'],
                       activation='gelu', out_dtype=jnp.bfloat16)
    x2 = pallas_matmul(h1, p['mlp_w2'], bias=p['mlp_b2'], residual=x2)
    return x2.reshape(B, T, D)


def text_decoder_forward(tokens, xa, params, n_head):
    """tokens: (B, T) int32; xa: (B, T_audio, n_state) -> logits (B, T, V) f32."""
    # TODO(synk): kv_cache path (incremental decoding) is not implemented;
    # this is the offset=0, full-sequence forward.
    B, T = tokens.shape
    V, D = params['tok_emb'].shape

    x = jnp.take(params['tok_emb'], tokens, axis=0) + params['pos_emb'][:T]
    x = x.astype(xa.dtype)
    xa2 = xa.reshape(-1, D).astype(jnp.bfloat16)   # cast audio features once

    for p in params['blocks']:
        x = residual_attention_block(x, xa2, p, n_head)

    xn = pallas_layernorm(x.reshape(B * T, D), params['ln_g'], params['ln_b'])
    # tied-embedding logits: x @ tok_emb^T using the pre-padded bf16 copy
    logits = pallas_matmul(xn, params['tok_emb_logits'], transpose_rhs=True,
                           tn=512)
    return logits[:, :V].reshape(B, T, V).astype(jnp.float32)


# ----------------------- parameter init & one-time prep ----------------------

def init_params(key, n_vocab, n_ctx, n_state, n_head, n_layer):
    """Raw (torch-like) f32 parameters."""
    def nrm(k, shape, s=0.02):
        return jax.random.normal(k, shape, jnp.float32) * s

    keys = jax.random.split(key, 2 + n_layer)
    D, M = n_state, n_state * 4

    def attn_params(k4):
        a, b, c, d = jax.random.split(k4, 4)
        return {
            'wq': nrm(a, (D, D)), 'bq': jnp.zeros((D,), jnp.float32),
            'wk': nrm(b, (D, D)),                       # key Linear has no bias
            'wv': nrm(c, (D, D)), 'bv': jnp.zeros((D,), jnp.float32),
            'wo': nrm(d, (D, D)), 'bo': jnp.zeros((D,), jnp.float32),
        }

    params = {
        'tok_emb': nrm(keys[0], (n_vocab, n_state)),
        'pos_emb': nrm(keys[1], (n_ctx, n_state), 0.01),
        'ln_g': jnp.ones((n_state,), jnp.float32),
        'ln_b': jnp.zeros((n_state,), jnp.float32),
        'blocks': [],
    }
    for l in range(n_layer):
        ks = jax.random.split(keys[2 + l], 4)
        params['blocks'].append({
            'attn': attn_params(ks[0]),
            'attn_ln_g': jnp.ones((D,), jnp.float32),
            'attn_ln_b': jnp.zeros((D,), jnp.float32),
            'cross': attn_params(ks[1]),
            'cross_ln_g': jnp.ones((D,), jnp.float32),
            'cross_ln_b': jnp.zeros((D,), jnp.float32),
            'mlp_w1': nrm(ks[2], (D, M)), 'mlp_b1': jnp.zeros((M,), jnp.float32),
            'mlp_w2': nrm(ks[3], (M, D)), 'mlp_b2': jnp.zeros((D,), jnp.float32),
            'mlp_ln_g': jnp.ones((D,), jnp.float32),
            'mlp_ln_b': jnp.zeros((D,), jnp.float32),
        })
    return params


def prepare_decoder_params(raw, *, vocab_pad_multiple=512):
    """One-time prep: bf16 weight cast, QKV/KV fusion, vocab padding for logits."""
    D = raw['pos_emb'].shape[1]
    V = raw['tok_emb'].shape[0]
    Vp = _round_up(V, vocab_pad_multiple)
    bf = lambda w: w.astype(jnp.bfloat16)
    zeros = jnp.zeros((D,), jnp.float32)

    blocks = []
    for b in raw['blocks']:
        a, c = b['attn'], b['cross']
        blocks.append({
            'attn': {
                'w_qkv': bf(jnp.concatenate([a['wq'], a['wk'], a['wv']], axis=1)),
                'b_qkv': jnp.concatenate([a['bq'], zeros, a['bv']]),
                'wo': bf(a['wo']), 'bo': a['bo'],
            },
            'cross': {
                'wq': bf(c['wq']), 'bq': c['bq'],
                'w_kv': bf(jnp.concatenate([c['wk'], c['wv']], axis=1)),
                'b_kv': jnp.concatenate([zeros, c['bv']]),
                'wo': bf(c['wo']), 'bo': c['bo'],
            },
            'attn_ln_g': b['attn_ln_g'], 'attn_ln_b': b['attn_ln_b'],
            'cross_ln_g': b['cross_ln_g'], 'cross_ln_b': b['cross_ln_b'],
            'mlp_w1': bf(b['mlp_w1']), 'mlp_b1': b['mlp_b1'],
            'mlp_w2': bf(b['mlp_w2']), 'mlp_b2': b['mlp_b2'],
            'mlp_ln_g': b['mlp_ln_g'], 'mlp_ln_b': b['mlp_ln_b'],
        })

    tok_pad = raw['tok_emb'] if Vp == V else jnp.pad(
        raw['tok_emb'], ((0, Vp - V), (0, 0)))
    return {
        'tok_emb': raw['tok_emb'],          # f32, unpadded (embedding gather)
        'tok_emb_logits': bf(tok_pad),      # bf16, vocab padded to 512-multiple
        'pos_emb': raw['pos_emb'],
        'ln_g': raw['ln_g'], 'ln_b': raw['ln_b'],
        'blocks': blocks,
    }


# ----------------------------------- main ------------------------------------

if __name__ == "__main__":
    n_vocab, n_ctx, n_state, n_head, n_layer = 96, 8, 32, 4, 2
    B, T, T_audio = 2, 8, 16

    key = jax.random.PRNGKey(0)
    kp, ktok, ka = jax.random.split(key, 3)

    raw_params = init_params(kp, n_vocab, n_ctx, n_state, n_head, n_layer)
    params = prepare_decoder_params(raw_params)
    tokens = jax.random.randint(ktok, (B, T), 0, n_vocab, dtype=jnp.int32)
    xa = jax.random.normal(ka, (B, T_audio, n_state), jnp.float32)

    fwd = jax.jit(text_decoder_forward, static_argnums=(3,))
    logits = fwd(tokens, xa, params, n_head)
    jax.block_until_ready(logits)

    assert logits.shape == (B, T, n_vocab)
    assert logits.dtype == jnp.float32
    assert bool(jnp.all(jnp.isfinite(logits)))
    print("KERNEL_OK")
</pallas_src>

<mosaic_0001>
module attributes {stable_mosaic.version = 11 : i64} {
  func.func @kernel(%arg0: i32, %arg1: i32, %arg2: i32, %arg3: memref<16x128xbf16, #tpu.memory_space<vmem>>, %arg4: memref<128x128xbf16, #tpu.memory_space<vmem>>, %arg5: memref<1x128xf32, #tpu.memory_space<vmem>>, %arg6: memref<16x128xbf16, #tpu.memory_space<vmem>>, %arg7: memref<16x128xf32, #tpu.memory_space<vmem>>) attributes {dimension_semantics = [#tpu.dimension_semantics<parallel>, #tpu.dimension_semantics<parallel>, #tpu.dimension_semantics<arbitrary>], iteration_bounds = array<i64: 1, 1, 1>, scalar_prefetch = 0 : i64, scratch_operands = 1 : i64, tpu.core_type = #tpu.core_type<tc>, window_params = [{transform_indices = @transform_0, window_bounds = array<i64: 16, 128>}, {transform_indices = @transform_1, window_bounds = array<i64: 128, 128>}, {transform_indices = @transform_2, window_bounds = array<i64: 1, 128>}, {transform_indices = @transform_3, window_bounds = array<i64: 16, 128>}]} {
    %c0_i32 = arith.constant 0 : i32
    %0 = arith.cmpi eq, %arg2, %c0_i32 : i32
    %1 = arith.extui %0 : i1 to i32
    %c0_i32_0 = arith.constant 0 : i32
    %2 = arith.cmpi ne, %1, %c0_i32_0 : i32
    scf.if %2 {
      %cst_10 = arith.constant 0.000000e+00 : f32
      %12 = vector.broadcast %cst_10 : f32 to vector<16x128xf32>
      %c0_11 = arith.constant 0 : index
      %c0_12 = arith.constant 0 : index
      %13 = vector.load %arg7[%c0_11, %c0_12] : memref<16x128xf32, #tpu.memory_space<vmem>>, vector<16x128xf32>
      tpu.vector_store %arg7[%c0_11, %c0_12], %12 {strides = array<i32>} : memref<16x128xf32, #tpu.memory_space<vmem>>, vector<16x128xf32>,
    } else {
    }
    %c0 = arith.constant 0 : index
    %c0_1 = arith.constant 0 : index
    %3 = vector.load %arg3[%c0, %c0_1] : memref<16x128xbf16, #tpu.memory_space<vmem>>, vector<16x128xbf16>
    %c0_2 = arith.constant 0 : index
    %c0_3 = arith.constant 0 : index
    %4 = vector.load %arg4[%c0_2, %c0_3] : memref<128x128xbf16, #tpu.memory_space<vmem>>, vector<128x128xbf16>
    %c0_4 = arith.constant 0 : index
    %c0_5 = arith.constant 0 : index
    %5 = vector.load %arg7[%c0_4, %c0_5] : memref<16x128xf32, #tpu.memory_space<vmem>>, vector<16x128xf32>
    %cst = arith.constant dense<0.000000e+00> : vector<16x128xf32>
    %6 = tpu.matmul %3, %4, %cst {dimension_numbers = #tpu.dot_dimension_numbers<[1], [0], [0], [1], [0, 0, 1, 1], [], []>} : vector<16x128xbf16>, vector<128x128xbf16>, vector<16x128xf32> -> vector<16x128xf32>
    %7 = arith.addf %5, %6 : vector<16x128xf32>
    %c0_6 = arith.constant 0 : index
    %c0_7 = arith.constant 0 : index
    %8 = vector.load %arg7[%c0_6, %c0_7] : memref<16x128xf32, #tpu.memory_space<vmem>>, vector<16x128xf32>
    tpu.vector_store %arg7[%c0_6, %c0_7], %7 {strides = array<i32>} : memref<16x128xf32, #tpu.memory_space<vmem>>, vector<16x128xf32>,
    %c0_i32_8 = arith.constant 0 : i32
    %9 = arith.cmpi eq, %arg2, %c0_i32_8 : i32
    %10 = arith.extui %9 : i1 to i32
    %c0_i32_9 = arith.constant 0 : i32
    %11 = arith.cmpi ne, %10, %c0_i32_9 : i32
    scf.if %11 {
      %c0_10 = arith.constant 0 : index
      %c0_11 = arith.constant 0 : index
      %12 = vector.load %arg7[%c0_10, %c0_11] : memref<16x128xf32, #tpu.memory_space<vmem>>, vector<16x128xf32>
      %c0_12 = arith.constant 0 : index
      %c0_13 = arith.constant 0 : index
      %13 = vector.load %arg5[%c0_12, %c0_13] : memref<1x128xf32, #tpu.memory_space<vmem>>, vector<1x128xf32>
      %14 = vector.broadcast %13 : vector<1x128xf32> to vector<16x128xf32>
      %15 = arith.addf %12, %14 : vector<16x128xf32>
      %16 = arith.truncf %15 : vector<16x128xf32> to vector<16x128xbf16>
      %c0_14 = arith.constant 0 : index
      %c0_15 = arith.constant 0 : index
      %17 = vector.load %arg6[%c0_14, %c0_15] : memref<16x128xbf16, #tpu.memory_space<vmem>>, vector<16x128xbf16>
      tpu.vector_store %arg6[%c0_14, %c0_15], %16 {strides = array<i32>} : memref<16x128xbf16, #tpu.memory_space<vmem>>, vector<16x128xbf16>,
    } else {
    }
    return
  }
  func.func @transform_0(%arg0: i32, %arg1: i32, %arg2: i32) -> (i32, i32) {
    %c0_i32 = arith.constant 0 : i32
    return %arg0, %arg2 : i32, i32
  }
  func.func @transform_1(%arg0: i32, %arg1: i32, %arg2: i32) -> (i32, i32) {
    %c0_i32 = arith.constant 0 : i32
    return %arg2, %arg1 : i32, i32
  }
  func.func @transform_2(%arg0: i32, %arg1: i32, %arg2: i32) -> (i32, i32) {
    %c0_i32 = arith.constant 0 : i32
    %c0_i32_0 = arith.constant 0 : i32
    return %c0_i32, %arg1 : i32, i32
  }
  func.func @transform_3(%arg0: i32, %arg1: i32, %arg2: i32) -> (i32, i32) {
    %c0_i32 = arith.constant 0 : i32
    return %arg0, %arg1 : i32, i32
  }
}

module attributes {stable_mosaic.version = 11 : i64} {
  func.func @_layernorm_kernel(%arg0: i32, %arg1: memref<16x32xf32, #tpu.memory_space<vmem>>, %arg2: memref<1x32xf32, #tpu.memory_space<vmem>>, %arg3: memref<1x32xf32, #tpu.memory_space<vmem>>, %arg4: memref<16x32xbf16, #tpu.memory_space<vmem>>) attributes {dimension_semantics = [#tpu.dimension_semantics<parallel>], iteration_bounds = array<i64: 1>, scalar_prefetch = 0 : i64, scratch_operands = 0 : i64, tpu.core_type = #tpu.core_type<tc>, window_params = [{transform_indices = @transform_0, window_bounds = array<i64: 16, 32>}, {pipeline_mode = #tpu.pipeline_mode<synchronous>, transform_indices = @transform_1, window_bounds = array<i64: 1, 32>}, {pipeline_mode = #tpu.pipeline_mode<synchronous>, transform_indices = @transform_2, window_bounds = array<i64: 1, 32>}, {transform_indices = @transform_3, window_bounds = array<i64: 16, 32>}]} {
    %c0 = arith.constant 0 : index
    %c0_0 = arith.constant 0 : index
    %0 = vector.load %arg1[%c0, %c0_0] : memref<16x32xf32, #tpu.memory_space<vmem>>, vector<16x32xf32>
    %cst = arith.constant dense<0.000000e+00> : vector<16xf32>
    %1 = vector.multi_reduction <add>, %0, %cst [1] : vector<16x32xf32> to vector<16xf32>
    %2 = vector.shape_cast %1 : vector<16xf32> to vector<16x1xf32>
    %cst_1 = arith.constant 3.200000e+01 : f32
    %3 = vector.broadcast %cst_1 : f32 to vector<16x1xf32>
    %4 = arith.divf %2, %3 : vector<16x1xf32>
    %5 = vector.broadcast %4 : vector<16x1xf32> to vector<16x32xf32>
    %6 = arith.subf %0, %5 : vector<16x32xf32>
    %7 = arith.mulf %6, %6 : vector<16x32xf32>
    %cst_2 = arith.constant dense<0.000000e+00> : vector<16xf32>
    %8 = vector.multi_reduction <add>, %7, %cst_2 [1] : vector<16x32xf32> to vector<16xf32>
    %9 = vector.shape_cast %8 : vector<16xf32> to vector<16x1xf32>
    %cst_3 = arith.constant 3.200000e+01 : f32
    %10 = vector.broadcast %cst_3 : f32 to vector<16x1xf32>
    %11 = arith.divf %9, %10 : vector<16x1xf32>
    %cst_4 = arith.constant 9.99999974E-6 : f32
    %12 = vector.broadcast %cst_4 : f32 to vector<16x1xf32>
    %13 = arith.addf %11, %12 : vector<16x1xf32>
    %14 = math.rsqrt %13 : vector<16x1xf32>
    %15 = vector.broadcast %4 : vector<16x1xf32> to vector<16x32xf32>
    %16 = arith.subf %0, %15 : vector<16x32xf32>
    %17 = vector.broadcast %14 : vector<16x1xf32> to vector<16x32xf32>
    %18 = arith.mulf %16, %17 : vector<16x32xf32>
    %c0_5 = arith.constant 0 : index
    %c0_6 = arith.constant 0 : index
    %19 = vector.load %arg2[%c0_5, %c0_6] : memref<1x32xf32, #tpu.memory_space<vmem>>, vector<1x32xf32>
    %20 = vector.broadcast %19 : vector<1x32xf32> to vector<16x32xf32>
    %21 = arith.mulf %18, %20 : vector<16x32xf32>
    %c0_7 = arith.constant 0 : index
    %c0_8 = arith.constant 0 : index
    %22 = vector.load %arg3[%c0_7, %c0_8] : memref<1x32xf32, #tpu.memory_space<vmem>>, vector<1x32xf32>
    %23 = vector.broadcast %22 : vector<1x32xf32> to vector<16x32xf32>
    %24 = arith.addf %21, %23 : vector<16x32xf32>
    %25 = arith.truncf %24 : vector<16x32xf32> to vector<16x32xbf16>
    %c0_9 = arith.constant 0 : index
    %c0_10 = arith.constant 0 : index
    %26 = vector.load %arg4[%c0_9, %c0_10] : memref<16x32xbf16, #tpu.memory_space<vmem>>, vector<16x32xbf16>
    tpu.vector_store %arg4[%c0_9, %c0_10], %25 {strides = array<i32>} : memref<16x32xbf16, #tpu.memory_space<vmem>>, vector<16x32xbf16>,
    return
  }
  func.func @transform_0(%arg0: i32) -> (i32, i32) {
    %c0_i32 = arith.constant 0 : i32
    %c0_i32_0 = arith.constant 0 : i32
    return %arg0, %c0_i32 : i32, i32
  }
  func.func @transform_1(%arg0: i32) -> (i32, i32) {
    %c0_i32 = arith.constant 0 : i32
    %c0_i32_0 = arith.constant 0 : i32
    %c0_i32_1 = arith.constant 0 : i32
    return %c0_i32, %c0_i32_0 : i32, i32
  }
  func.func @transform_2(%arg0: i32) -> (i32, i32) {
    %c0_i32 = arith.constant 0 : i32
    %c0_i32_0 = arith.constant 0 : i32
    %c0_i32_1 = arith.constant 0 : i32
    return %c0_i32, %c0_i32_0 : i32, i32
  }
  func.func @transform_3(%arg0: i32) -> (i32, i32) {
    %c0_i32 = arith.constant 0 : i32
    %c0_i32_0 = arith.constant 0 : i32
    return %arg0, %c0_i32 : i32, i32
  }
}

module attributes {stable_mosaic.version = 11 : i64} {
  func.func @_attention_kernel(%arg0: i32, %arg1: i32, %arg2: i32, %arg3: memref<1x8x32xbf16, #tpu.memory_space<vmem>>, %arg4: memref<1x8x32xbf16, #tpu.memory_space<vmem>>, %arg5: memref<1x8x32xbf16, #tpu.memory_space<vmem>>, %arg6: memref<1x8x32xbf16, #tpu.memory_space<vmem>>, %arg7: memref<4x8x1xf32, #tpu.memory_space<vmem>>, %arg8: memref<4x8x1xf32, #tpu.memory_space<vmem>>, %arg9: memref<4x8x8xf32, #tpu.memory_space<vmem>>) attributes {dimension_semantics = [#tpu.dimension_semantics<parallel>, #tpu.dimension_semantics<parallel>, #tpu.dimension_semantics<arbitrary>], iteration_bounds = array<i64: 2, 1, 1>, scalar_prefetch = 0 : i64, scratch_operands = 3 : i64, tpu.core_type = #tpu.core_type<tc>, window_params = [{transform_indices = @transform_0, window_bounds = array<i64: 1, 8, 32>}, {transform_indices = @transform_1, window_bounds = array<i64: 1, 8, 32>}, {transform_indices = @transform_2, window_bounds = array<i64: 1, 8, 32>}, {transform_indices = @transform_3, window_bounds = array<i64: 1, 8, 32>}]} {
    %c0_i32 = arith.constant 0 : i32
    %0 = arith.cmpi eq, %arg2, %c0_i32 : i32
    %1 = arith.extui %0 : i1 to i32
    %c0_i32_0 = arith.constant 0 : i32
    %2 = arith.cmpi ne, %1, %c0_i32_0 : i32
    scf.if %2 {
      %cst_103 = arith.constant 0xFF800000 : f32
      %178 = vector.broadcast %cst_103 : f32 to vector<4x8x1xf32>
      %c0_104 = arith.constant 0 : index
      %c0_105 = arith.constant 0 : index
      %c0_106 = arith.constant 0 : index
      %179 = vector.load %arg7[%c0_104, %c0_105, %c0_106] : memref<4x8x1xf32, #tpu.memory_space<vmem>>, vector<4x8x1xf32>
      tpu.vector_store %arg7[%c0_104, %c0_105, %c0_106], %178 {strides = array<i32>} : memref<4x8x1xf32, #tpu.memory_space<vmem>>, vector<4x8x1xf32>,
      %cst_107 = arith.constant 0.000000e+00 : f32
      %180 = vector.broadcast %cst_107 : f32 to vector<4x8x1xf32>
      %c0_108 = arith.constant 0 : index
      %c0_109 = arith.constant 0 : index
      %c0_110 = arith.constant 0 : index
      %181 = vector.load %arg8[%c0_108, %c0_109, %c0_110] : memref<4x8x1xf32, #tpu.memory_space<vmem>>, vector<4x8x1xf32>
      tpu.vector_store %arg8[%c0_108, %c0_109, %c0_110], %180 {strides = array<i32>} : memref<4x8x1xf32, #tpu.memory_space<vmem>>, vector<4x8x1xf32>,
      %cst_111 = arith.constant 0.000000e+00 : f32
      %182 = vector.broadcast %cst_111 : f32 to vector<4x8x8xf32>
      %c0_112 = arith.constant 0 : index
      %c0_113 = arith.constant 0 : index
      %c0_114 = arith.constant 0 : index
      %183 = vector.load %arg9[%c0_112, %c0_113, %c0_114] : memref<4x8x8xf32, #tpu.memory_space<vmem>>, vector<4x8x8xf32>
      tpu.vector_store %arg9[%c0_112, %c0_113, %c0_114], %182 {strides = array<i32>} : memref<4x8x8xf32, #tpu.memory_space<vmem>>, vector<4x8x8xf32>,
    } else {
    }
    %c0 = arith.constant 0 : index
    %c0_1 = arith.constant 0 : index
    %c0_2 = arith.constant 0 : index
    %3 = vector.load %arg3[%c0, %c0_1, %c0_2] : memref<1x8x32xbf16, #tpu.memory_space<vmem>>, vector<1x8x32xbf16>
    %4 = vector.shape_cast %3 : vector<1x8x32xbf16> to vector<8x32xbf16>
    %c0_3 = arith.constant 0 : index
    %c0_4 = arith.constant 0 : index
    %c0_5 = arith.constant 0 : index
    %5 = vector.load %arg4[%c0_3, %c0_4, %c0_5] : memref<1x8x32xbf16, #tpu.memory_space<vmem>>, vector<1x8x32xbf16>
    %6 = vector.shape_cast %5 : vector<1x8x32xbf16> to vector<8x32xbf16>
    %c0_6 = arith.constant 0 : index
    %c0_7 = arith.constant 0 : index
    %c0_8 = arith.constant 0 : index
    %7 = vector.load %arg5[%c0_6, %c0_7, %c0_8] : memref<1x8x32xbf16, #tpu.memory_space<vmem>>, vector<1x8x32xbf16>
    %8 = vector.shape_cast %7 : vector<1x8x32xbf16> to vector<8x32xbf16>
    %c8_i32 = arith.constant 8 : i32
    %9 = arith.muli %arg2, %c8_i32 : i32
    %10 = tpu.iota {dimensions = array<i32: 1>} : vector<8x8xi32>
    %11 = vector.broadcast %9 : i32 to vector<8x8xi32>
    %12 = arith.addi %11, %10 : vector<8x8xi32>
    %13 = tpu.iota {dimensions = array<i32: 0>} : vector<8x8xi32>
    %14 = arith.cmpi sle, %12, %13 : vector<8x8xi32>
    %15 = vector.extract_strided_slice %4 {offsets = [0, 0], sizes = [8, 8], strides = [1, 1]} : vector<8x32xbf16> to vector<8x8xbf16>
    %16 = vector.extract_strided_slice %6 {offsets = [0, 0], sizes = [8, 8], strides = [1, 1]} : vector<8x32xbf16> to vector<8x8xbf16>
    %17 = vector.extract_strided_slice %8 {offsets = [0, 0], sizes = [8, 8], strides = [1, 1]} : vector<8x32xbf16> to vector<8x8xbf16>
    %cst = arith.constant dense<0.000000e+00> : vector<8x8xf32>
    %18 = tpu.matmul %15, %16, %cst {dimension_numbers = #tpu.dot_dimension_numbers<[1], [1], [0], [0], [0, 0, 1, 0], [], []>} : vector<8x8xbf16>, vector<8x8xbf16>, vector<8x8xf32> -> vector<8x8xf32>
    %cst_9 = arith.constant 0.353553385 : f32
    %19 = vector.broadcast %cst_9 : f32 to vector<8x8xf32>
    %20 = arith.mulf %18, %19 : vector<8x8xf32>
    %cst_10 = arith.constant -1.000000e+30 : f32
    %21 = vector.broadcast %cst_10 : f32 to vector<8x8xf32>
    %22 = arith.select %14, %20, %21 : vector<8x8xi1>, vector<8x8xf32>
    %c0_11 = arith.constant 0 : index
    %c0_12 = arith.constant 0 : index
    %c0_13 = arith.constant 0 : index
    %23 = vector.load %arg7[%c0_11, %c0_12, %c0_13] : memref<4x8x1xf32, #tpu.memory_space<vmem>>, vector<1x8x1xf32>
    %24 = vector.shape_cast %23 : vector<1x8x1xf32> to vector<8x1xf32>
    %cst_14 = arith.constant dense<0xFF800000> : vector<8xf32>
    %25 = vector.multi_reduction <maximumf>, %22, %cst_14 [1] : vector<8x8xf32> to vector<8xf32>
    %26 = vector.shape_cast %25 : vector<8xf32> to vector<8x1xf32>
    %27 = arith.maximumf %24, %26 : vector<8x1xf32>
    %28 = arith.subf %24, %27 : vector<8x1xf32>
    %29 = math.exp %28 : vector<8x1xf32>
    %30 = vector.broadcast %27 : vector<8x1xf32> to vector<8x8xf32>
    %31 = arith.subf %22, %30 : vector<8x8xf32>
    %32 = math.exp %31 : vector<8x8xf32>
    %c0_15 = arith.constant 0 : index
    %c0_16 = arith.constant 0 : index
    %c0_17 = arith.constant 0 : index
    %33 = vector.load %arg8[%c0_15, %c0_16, %c0_17] : memref<4x8x1xf32, #tpu.memory_space<vmem>>, vector<1x8x1xf32>
    %34 = vector.shape_cast %33 : vector<1x8x1xf32> to vector<8x1xf32>
    %35 = arith.mulf %29, %34 : vector<8x1xf32>
    %cst_18 = arith.constant dense<0.000000e+00> : vector<8xf32>
    %36 = vector.multi_reduction <add>, %32, %cst_18 [1] : vector<8x8xf32> to vector<8xf32>
    %37 = vector.shape_cast %36 : vector<8xf32> to vector<8x1xf32>
    %38 = arith.addf %35, %37 : vector<8x1xf32>
    %c0_19 = arith.constant 0 : index
    %c0_20 = arith.constant 0 : index
    %c0_21 = arith.constant 0 : index
    %39 = vector.load %arg8[%c0_19, %c0_20, %c0_21] : memref<4x8x1xf32, #tpu.memory_space<vmem>>, vector<1x8x1xf32>
    %40 = vector.shape_cast %39 : vector<1x8x1xf32> to vector<8x1xf32>
    %41 = vector.shape_cast %38 : vector<8x1xf32> to vector<1x8x1xf32>
    tpu.vector_store %arg8[%c0_19, %c0_20, %c0_21], %41 {strides = array<i32>} : memref<4x8x1xf32, #tpu.memory_space<vmem>>, vector<1x8x1xf32>,
    %c0_22 = arith.constant 0 : index
    %c0_23 = arith.constant 0 : index
    %c0_24 = arith.constant 0 : index
    %42 = vector.load %arg9[%c0_22, %c0_23, %c0_24] : memref<4x8x8xf32, #tpu.memory_space<vmem>>, vector<1x8x8xf32>
    %43 = vector.shape_cast %42 : vector<1x8x8xf32> to vector<8x8xf32>
    %44 = vector.broadcast %29 : vector<8x1xf32> to vector<8x8xf32>
    %45 = arith.mulf %44, %43 : vector<8x8xf32>
    %46 = arith.truncf %32 : vector<8x8xf32> to vector<8x8xbf16>
    %cst_25 = arith.constant dense<0.000000e+00> : vector<8x8xf32>
    %47 = tpu.matmul %46, %17, %cst_25 {dimension_numbers = #tpu.dot_dimension_numbers<[1], [0], [0], [1], [0, 0, 1, 1], [], []>} : vector<8x8xbf16>, vector<8x8xbf16>, vector<8x8xf32> -> vector<8x8xf32>
    %48 = arith.addf %45, %47 : vector<8x8xf32>
    %c0_26 = arith.constant 0 : index
    %c0_27 = arith.constant 0 : index
    %c0_28 = arith.constant 0 : index
    %49 = vector.load %arg9[%c0_26, %c0_27, %c0_28] : memref<4x8x8xf32, #tpu.memory_space<vmem>>, vector<1x8x8xf32>
    %50 = vector.shape_cast %49 : vector<1x8x8xf32> to vector<8x8xf32>
    %51 = vector.shape_cast %48 : vector<8x8xf32> to vector<1x8x8xf32>
    tpu.vector_store %arg9[%c0_26, %c0_27, %c0_28], %51 {strides = array<i32>} : memref<4x8x8xf32, #tpu.memory_space<vmem>>, vector<1x8x8xf32>,
    %c0_29 = arith.constant 0 : index
    %c0_30 = arith.constant 0 : index
    %c0_31 = arith.constant 0 : index
    %52 = vector.load %arg7[%c0_29, %c0_30, %c0_31] : memref<4x8x1xf32, #tpu.memory_space<vmem>>, vector<1x8x1xf32>
    %53 = vector.shape_cast %52 : vector<1x8x1xf32> to vector<8x1xf32>
    %54 = vector.shape_cast %27 : vector<8x1xf32> to vector<1x8x1xf32>
    tpu.vector_store %arg7[%c0_29, %c0_30, %c0_31], %54 {strides = array<i32>} : memref<4x8x1xf32, #tpu.memory_space<vmem>>, vector<1x8x1xf32>,
    %55 = vector.extract_strided_slice %4 {offsets = [0, 8], sizes = [8, 8], strides = [1, 1]} : vector<8x32xbf16> to vector<8x8xbf16>
    %56 = vector.extract_strided_slice %6 {offsets = [0, 8], sizes = [8, 8], strides = [1, 1]} : vector<8x32xbf16> to vector<8x8xbf16>
    %57 = vector.extract_strided_slice %8 {offsets = [0, 8], sizes = [8, 8], strides = [1, 1]} : vector<8x32xbf16> to vector<8x8xbf16>
    %cst_32 = arith.constant dense<0.000000e+00> : vector<8x8xf32>
    %58 = tpu.matmul %55, %56, %cst_32 {dimension_numbers = #tpu.dot_dimension_numbers<[1], [1], [0], [0], [0, 0, 1, 0], [], []>} : vector<8x8xbf16>, vector<8x8xbf16>, vector<8x8xf32> -> vector<8x8xf32>
    %cst_33 = arith.constant 0.353553385 : f32
    %59 = vector.broadcast %cst_33 : f32 to vector<8x8xf32>
    %60 = arith.mulf %58, %59 : vector<8x8xf32>
    %cst_34 = arith.constant -1.000000e+30 : f32
    %61 = vector.broadcast %cst_34 : f32 to vector<8x8xf32>
    %62 = arith.select %14, %60, %61 : vector<8x8xi1>, vector<8x8xf32>
    %c1 = arith.constant 1 : index
    %c0_35 = arith.constant 0 : index
    %c0_36 = arith.constant 0 : index
    %63 = vector.load %arg7[%c1, %c0_35, %c0_36] : memref<4x8x1xf32, #tpu.memory_space<vmem>>, vector<1x8x1xf32>
    %64 = vector.shape_cast %63 : vector<1x8x1xf32> to vector<8x1xf32>
    %cst_37 = arith.constant dense<0xFF800000> : vector<8xf32>
    %65 = vector.multi_reduction <maximumf>, %62, %cst_37 [1] : vector<8x8xf32> to vector<8xf32>
    %66 = vector.shape_cast %65 : vector<8xf32> to vector<8x1xf32>
    %67 = arith.maximumf %64, %66 : vector<8x1xf32>
    %68 = arith.subf %64, %67 : vector<8x1xf32>
    %69 = math.exp %68 : vector<8x1xf32>
    %70 = vector.broadcast %67 : vector<8x1xf32> to vector<8x8xf32>
    %71 = arith.subf %62, %70 : vector<8x8xf32>
    %72 = math.exp %71 : vector<8x8xf32>
    %c1_38 = arith.constant 1 : index
    %c0_39 = arith.constant 0 : index
    %c0_40 = arith.constant 0 : index
    %73 = vector.load %arg8[%c1_38, %c0_39, %c0_40] : memref<4x8x1xf32, #tpu.memory_space<vmem>>, vector<1x8x1xf32>
    %74 = vector.shape_cast %73 : vector<1x8x1xf32> to vector<8x1xf32>
    %75 = arith.mulf %69, %74 : vector<8x1xf32>
    %cst_41 = arith.constant dense<0.000000e+00> : vector<8xf32>
    %76 = vector.multi_reduction <add>, %72, %cst_41 [1] : vector<8x8xf32> to vector<8xf32>
    %77 = vector.shape_cast %76 : vector<8xf32> to vector<8x1xf32>
    %78 = arith.addf %75, %77 : vector<8x1xf32>
    %c1_42 = arith.constant 1 : index
    %c0_43 = arith.constant 0 : index
    %c0_44 = arith.constant 0 : index
    %79 = vector.load %arg8[%c1_42, %c0_43, %c0_44] : memref<4x8x1xf32, #tpu.memory_space<vmem>>, vector<1x8x1xf32>
    %80 = vector.shape_cast %79 : vector<1x8x1xf32> to vector<8x1xf32>
    %81 = vector.shape_cast %78 : vector<8x1xf32> to vector<1x8x1xf32>
    tpu.vector_store %arg8[%c1_42, %c0_43, %c0_44], %81 {strides = array<i32>} : memref<4x8x1xf32, #tpu.memory_space<vmem>>, vector<1x8x1xf32>,
    %c1_45 = arith.constant 1 : index
    %c0_46 = arith.constant 0 : index
    %c0_47 = arith.constant 0 : index
    %82 = vector.load %arg9[%c1_45, %c0_46, %c0_47] : memref<4x8x8xf32, #tpu.memory_space<vmem>>, vector<1x8x8xf32>
    %83 = vector.shape_cast %82 : vector<1x8x8xf32> to vector<8x8xf32>
    %84 = vector.broadcast %69 : vector<8x1xf32> to vector<8x8xf32>
    %85 = arith.mulf %84, %83 : vector<8x8xf32>
    %86 = arith.truncf %72 : vector<8x8xf32> to vector<8x8xbf16>
    %cst_48 = arith.constant dense<0.000000e+00> : vector<8x8xf32>
    %87 = tpu.matmul %86, %57, %cst_48 {dimension_numbers = #tpu.dot_dimension_numbers<[1], [0], [0], [1], [0, 0, 1, 1], [], []>} : vector<8x8xbf16>, vector<8x8xbf16>, vector<8x8xf32> -> vector<8x8xf32>
    %88 = arith.addf %85, %87 : vector<8x8xf32>
    %c1_49 = arith.constant 1 : index
    %c0_50 = arith.constant 0 : index
    %c0_51 = arith.constant 0 : index
    %89 = vector.load %arg9[%c1_49, %c0_50, %c0_51] : memref<4x8x8xf32, #tpu.memory_space<vmem>>, vector<1x8x8xf32>
    %90 = vector.shape_cast %89 : vector<1x8x8xf32> to vector<8x8xf32>
    %91 = vector.shape_cast %88 : vector<8x8xf32> to vector<1x8x8xf32>
    tpu.vector_store %arg9[%c1_49, %c0_50, %c0_51], %91 {strides = array<i32>} : memref<4x8x8xf32, #tpu.memory_space<vmem>>, vector<1x8x8xf32>,
    %c1_52 = arith.constant 1 : index
    %c0_53 = arith.constant 0 : index
    %c0_54 = arith.constant 0 : index
    %92 = vector.load %arg7[%c1_52, %c0_53, %c0_54] : memref<4x8x1xf32, #tpu.memory_space<vmem>>, vector<1x8x1xf32>
    %93 = vector.shape_cast %92 : vector<1x8x1xf32> to vector<8x1xf32>
    %94 = vector.shape_cast %67 : vector<8x1xf32> to vector<1x8x1xf32>
    tpu.vector_store %arg7[%c1_52, %c0_53, %c0_54], %94 {strides = array<i32>} : memref<4x8x1xf32, #tpu.memory_space<vmem>>, vector<1x8x1xf32>,
    %95 = vector.extract_strided_slice %4 {offsets = [0, 16], sizes = [8, 8], strides = [1, 1]} : vector<8x32xbf16> to vector<8x8xbf16>
    %96 = vector.extract_strided_slice %6 {offsets = [0, 16], sizes = [8, 8], strides = [1, 1]} : vector<8x32xbf16> to vector<8x8xbf16>
    %97 = vector.extract_strided_slice %8 {offsets = [0, 16], sizes = [8, 8], strides = [1, 1]} : vector<8x32xbf16> to vector<8x8xbf16>
    %cst_55 = arith.constant dense<0.000000e+00> : vector<8x8xf32>
    %98 = tpu.matmul %95, %96, %cst_55 {dimension_numbers = #tpu.dot_dimension_numbers<[1], [1], [0], [0], [0, 0, 1, 0], [], []>} : vector<8x8xbf16>, vector<8x8xbf16>, vector<8x8xf32> -> vector<8x8xf32>
    %cst_56 = arith.constant 0.353553385 : f32
    %99 = vector.broadcast %cst_56 : f32 to vector<8x8xf32>
    %100 = arith.mulf %98, %99 : vector<8x8xf32>
    %cst_57 = arith.constant -1.000000e+30 : f32
    %101 = vector.broadcast %cst_57 : f32 to vector<8x8xf32>
    %102 = arith.select %14, %100, %101 : vector<8x8xi1>, vector<8x8xf32>
    %c2 = arith.constant 2 : index
    %c0_58 = arith.constant 0 : index
    %c0_59 = arith.constant 0 : index
    %103 = vector.load %arg7[%c2, %c0_58, %c0_59] : memref<4x8x1xf32, #tpu.memory_space<vmem>>, vector<1x8x1xf32>
    %104 = vector.shape_cast %103 : vector<1x8x1xf32> to vector<8x1xf32>
    %cst_60 = arith.constant dense<0xFF800000> : vector<8xf32>
    %105 = vector.multi_reduction <maximumf>, %102, %cst_60 [1] : vector<8x8xf32> to vector<8xf32>
    %106 = vector.shape_cast %105 : vector<8xf32> to vector<8x1xf32>
    %107 = arith.maximumf %104, %106 : vector<8x1xf32>
    %108 = arith.subf %104, %107 : vector<8x1xf32>
    %109 = math.exp %108 : vector<8x1xf32>
    %110 = vector.broadcast %107 : vector<8x1xf32> to vector<8x8xf32>
    %111 = arith.subf %102, %110 : vector<8x8xf32>
    %112 = math.exp %111 : vector<8x8xf32>
    %c2_61 = arith.constant 2 : index
    %c0_62 = arith.constant 0 : index
    %c0_63 = arith.constant 0 : index
    %113 = vector.load %arg8[%c2_61, %c0_62, %c0_63] : memref<4x8x1xf32, #tpu.memory_space<vmem>>, vector<1x8x1xf32>
    %114 = vector.shape_cast %113 : vector<1x8x1xf32> to vector<8x1xf32>
    %115 = arith.mulf %109, %114 : vector<8x1xf32>
    %cst_64 = arith.constant dense<0.000000e+00> : vector<8xf32>
    %116 = vector.multi_reduction <add>, %112, %cst_64 [1] : vector<8x8xf32> to vector<8xf32>
    %117 = vector.shape_cast %116 : vector<8xf32> to vector<8x1xf32>
    %118 = arith.addf %115, %117 : vector<8x1xf32>
    %c2_65 = arith.constant 2 : index
    %c0_66 = arith.constant 0 : index
    %c0_67 = arith.constant 0 : index
    %119 = vector.load %arg8[%c2_65, %c0_66, %c0_67] : memref<4x8x1xf32, #tpu.memory_space<vmem>>, vector<1x8x1xf32>
    %120 = vector.shape_cast %119 : vector<1x8x1xf32> to vector<8x1xf32>
    %121 = vector.shape_cast %118 : vector<8x1xf32> to vector<1x8x1xf32>
    tpu.vector_store %arg8[%c2_65, %c0_66, %c0_67], %121 {strides = array<i32>} : memref<4x8x1xf32, #tpu.memory_space<vmem>>, vector<1x8x1xf32>,
    %c2_68 = arith.constant 2 : index
    %c0_69 = arith.constant 0 : index
    %c0_70 = arith.constant 0 : index
    %122 = vector.load %arg9[%c2_68, %c0_69, %c0_70] : memref<4x8x8xf32, #tpu.memory_space<vmem>>, vector<1x8x8xf32>
    %123 = vector.shape_cast %122 : vector<1x8x8xf32> to vector<8x8xf32>
    %124 = vector.broadcast %109 : vector<8x1xf32> to vector<8x8xf32>
    %125 = arith.mulf %124, %123 : vector<8x8xf32>
    %126 = arith.truncf %112 : vector<8x8xf32> to vector<8x8xbf16>
    %cst_71 = arith.constant dense<0.000000e+00> : vector<8x8xf32>
    %127 = tpu.matmul %126, %97, %cst_71 {dimension_numbers = #tpu.dot_dimension_numbers<[1], [0], [0], [1], [0, 0, 1, 1], [], []>} : vector<8x8xbf16>, vector<8x8xbf16>, vector<8x8xf32> -> vector<8x8xf32>
    %128 = arith.addf %125, %127 : vector<8x8xf32>
    %c2_72 = arith.constant 2 : index
    %c0_73 = arith.constant 0 : index
    %c0_74 = arith.constant 0 : index
    %129 = vector.load %arg9[%c2_72, %c0_73, %c0_74] : memref<4x8x8xf32, #tpu.memory_space<vmem>>, vector<1x8x8xf32>
    %130 = vector.shape_cast %129 : vector<1x8x8xf32> to vector<8x8xf32>
    %131 = vector.shape_cast %128 : vector<8x8xf32> to vector<1x8x8xf32>
    tpu.vector_store %arg9[%c2_72, %c0_73, %c0_74], %131 {strides = array<i32>} : memref<4x8x8xf32, #tpu.memory_space<vmem>>, vector<1x8x8xf32>,
    %c2_75 = arith.constant 2 : index
    %c0_76 = arith.constant 0 : index
    %c0_77 = arith.constant 0 : index
    %132 = vector.load %arg7[%c2_75, %c0_76, %c0_77] : memref<4x8x1xf32, #tpu.memory_space<vmem>>, vector<1x8x1xf32>
    %133 = vector.shape_cast %132 : vector<1x8x1xf32> to vector<8x1xf32>
    %134 = vector.shape_cast %107 : vector<8x1xf32> to vector<1x8x1xf32>
    tpu.vector_store %arg7[%c2_75, %c0_76, %c0_77], %134 {strides = array<i32>} : memref<4x8x1xf32, #tpu.memory_space<vmem>>, vector<1x8x1xf32>,
    %135 = vector.extract_strided_slice %4 {offsets = [0, 24], sizes = [8, 8], strides = [1, 1]} : vector<8x32xbf16> to vector<8x8xbf16>
    %136 = vector.extract_strided_slice %6 {offsets = [0, 24], sizes = [8, 8], strides = [1, 1]} : vector<8x32xbf16> to vector<8x8xbf16>
    %137 = vector.extract_strided_slice %8 {offsets = [0, 24], sizes = [8, 8], strides = [1, 1]} : vector<8x32xbf16> to vector<8x8xbf16>
    %cst_78 = arith.constant dense<0.000000e+00> : vector<8x8xf32>
    %138 = tpu.matmul %135, %136, %cst_78 {dimension_numbers = #tpu.dot_dimension_numbers<[1], [1], [0], [0], [0, 0, 1, 0], [], []>} : vector<8x8xbf16>, vector<8x8xbf16>, vector<8x8xf32> -> vector<8x8xf32>
    %cst_79 = arith.constant 0.353553385 : f32
    %139 = vector.broadcast %cst_79 : f32 to vector<8x8xf32>
    %140 = arith.mulf %138, %139 : vector<8x8xf32>
    %cst_80 = arith.constant -1.000000e+30 : f32
    %141 = vector.broadcast %cst_80 : f32 to vector<8x8xf32>
    %142 = arith.select %14, %140, %141 : vector<8x8xi1>, vector<8x8xf32>
    %c3 = arith.constant 3 : index
    %c0_81 = arith.constant 0 : index
    %c0_82 = arith.constant 0 : index
    %143 = vector.load %arg7[%c3, %c0_81, %c0_82] : memref<4x8x1xf32, #tpu.memory_space<vmem>>, vector<1x8x1xf32>
    %144 = vector.shape_cast %143 : vector<1x8x1xf32> to vector<8x1xf32>
    %cst_83 = arith.constant dense<0xFF800000> : vector<8xf32>
    %145 = vector.multi_reduction <maximumf>, %142, %cst_83 [1] : vector<8x8xf32> to vector<8xf32>
    %146 = vector.shape_cast %145 : vector<8xf32> to vector<8x1xf32>
    %147 = arith.maximumf %144, %146 : vector<8x1xf32>
    %148 = arith.subf %144, %147 : vector<8x1xf32>
    %149 = math.exp %148 : vector<8x1xf32>
    %150 = vector.broadcast %147 : vector<8x1xf32> to vector<8x8xf32>
    %151 = arith.subf %142, %150 : vector<8x8xf32>
    %152 = math.exp %151 : vector<8x8xf32>
    %c3_84 = arith.constant 3 : index
    %c0_85 = arith.constant 0 : index
    %c0_86 = arith.constant 0 : index
    %153 = vector.load %arg8[%c3_84, %c0_85, %c0_86] : memref<4x8x1xf32, #tpu.memory_space<vmem>>, vector<1x8x1xf32>
    %154 = vector.shape_cast %153 : vector<1x8x1xf32> to vector<8x1xf32>
    %155 = arith.mulf %149, %154 : vector<8x1xf32>
    %cst_87 = arith.constant dense<0.000000e+00> : vector<8xf32>
    %156 = vector.multi_reduction <add>, %152, %cst_87 [1] : vector<8x8xf32> to vector<8xf32>
    %157 = vector.shape_cast %156 : vector<8xf32> to vector<8x1xf32>
    %158 = arith.addf %155, %157 : vector<8x1xf32>
    %c3_88 = arith.constant 3 : index
    %c0_89 = arith.constant 0 : index
    %c0_90 = arith.constant 0 : index
    %159 = vector.load %arg8[%c3_88, %c0_89, %c0_90] : memref<4x8x1xf32, #tpu.memory_space<vmem>>, vector<1x8x1xf32>
    %160 = vector.shape_cast %159 : vector<1x8x1xf32> to vector<8x1xf32>
    %161 = vector.shape_cast %158 : vector<8x1xf32> to vector<1x8x1xf32>
    tpu.vector_store %arg8[%c3_88, %c0_89, %c0_90], %161 {strides = array<i32>} : memref<4x8x1xf32, #tpu.memory_space<vmem>>, vector<1x8x1xf32>,
    %c3_91 = arith.constant 3 : index
    %c0_92 = arith.constant 0 : index
    %c0_93 = arith.constant 0 : index
    %162 = vector.load %arg9[%c3_91, %c0_92, %c0_93] : memref<4x8x8xf32, #tpu.memory_space<vmem>>, vector<1x8x8xf32>
    %163 = vector.shape_cast %162 : vector<1x8x8xf32> to vector<8x8xf32>
    %164 = vector.broadcast %149 : vector<8x1xf32> to vector<8x8xf32>
    %165 = arith.mulf %164, %163 : vector<8x8xf32>
    %166 = arith.truncf %152 : vector<8x8xf32> to vector<8x8xbf16>
    %cst_94 = arith.constant dense<0.000000e+00> : vector<8x8xf32>
    %167 = tpu.matmul %166, %137, %cst_94 {dimension_numbers = #tpu.dot_dimension_numbers<[1], [0], [0], [1], [0, 0, 1, 1], [], []>} : vector<8x8xbf16>, vector<8x8xbf16>, vector<8x8xf32> -> vector<8x8xf32>
    %168 = arith.addf %165, %167 : vector<8x8xf32>
    %c3_95 = arith.constant 3 : index
    %c0_96 = arith.constant 0 : index
    %c0_97 = arith.constant 0 : index
    %169 = vector.load %arg9[%c3_95, %c0_96, %c0_97] : memref<4x8x8xf32, #tpu.memory_space<vmem>>, vector<1x8x8xf32>
    %170 = vector.shape_cast %169 : vector<1x8x8xf32> to vector<8x8xf32>
    %171 = vector.shape_cast %168 : vector<8x8xf32> to vector<1x8x8xf32>
    tpu.vector_store %arg9[%c3_95, %c0_96, %c0_97], %171 {strides = array<i32>} : memref<4x8x8xf32, #tpu.memory_space<vmem>>, vector<1x8x8xf32>,
    %c3_98 = arith.constant 3 : index
    %c0_99 = arith.constant 0 : index
    %c0_100 = arith.constant 0 : index
    %172 = vector.load %arg7[%c3_98, %c0_99, %c0_100] : memref<4x8x1xf32, #tpu.memory_space<vmem>>, vector<1x8x1xf32>
    %173 = vector.shape_cast %172 : vector<1x8x1xf32> to vector<8x1xf32>
    %174 = vector.shape_cast %147 : vector<8x1xf32> to vector<1x8x1xf32>
    tpu.vector_store %arg7[%c3_98, %c0_99, %c0_100], %174 {strides = array<i32>} : memref<4x8x1xf32, #tpu.memory_space<vmem>>, vector<1x8x1xf32>,
    %c0_i32_101 = arith.constant 0 : i32
    %175 = arith.cmpi eq, %arg2, %c0_i32_101 : i32
    %176 = arith.extui %175 : i1 to i32
    %c0_i32_102 = arith.constant 0 : i32
    %177 = arith.cmpi ne, %176, %c0_i32_102 : i32
    scf.if %177 {
      %c0_103 = arith.constant 0 : index
      %c0_104 = arith.constant 0 : index
      %c0_105 = arith.constant 0 : index
      %178 = vector.load %arg8[%c0_103, %c0_104, %c0_105] : memref<4x8x1xf32, #tpu.memory_space<vmem>>, vector<1x8x1xf32>
      %179 = vector.shape_cast %178 : vector<1x8x1xf32> to vector<8x1xf32>
      %180 = tpu.reciprocal %179 {approx = true} : vector<8x1xf32> -> vector<8x1xf32>
      %c0_106 = arith.constant 0 : index
      %c0_107 = arith.constant 0 : index
      %c0_108 = arith.constant 0 : index
      %181 = vector.load %arg9[%c0_106, %c0_107, %c0_108] : memref<4x8x8xf32, #tpu.memory_space<vmem>>, vector<1x8x8xf32>
      %182 = vector.shape_cast %181 : vector<1x8x8xf32> to vector<8x8xf32>
      %183 = vector.broadcast %180 : vector<8x1xf32> to vector<8x8xf32>
      %184 = arith.mulf %182, %183 : vector<8x8xf32>
      %185 = arith.truncf %184 : vector<8x8xf32> to vector<8x8xbf16>
      %c0_109 = arith.constant 0 : index
      %c0_110 = arith.constant 0 : index
      %c0_111 = arith.constant 0 : index
      %186 = vector.load %arg6[%c0_109, %c0_110, %c0_111] : memref<1x8x32xbf16, #tpu.memory_space<vmem>>, vector<1x8x8xbf16>
      %187 = vector.shape_cast %186 : vector<1x8x8xbf16> to vector<8x8xbf16>
      %188 = vector.shape_cast %185 : vector<8x8xbf16> to vector<1x8x8xbf16>
      tpu.vector_store %arg6[%c0_109, %c0_110, %c0_111], %188 {strides = array<i32>} : memref<1x8x32xbf16, #tpu.memory_space<vmem>>, vector<1x8x8xbf16>,
      %c1_112 = arith.constant 1 : index
      %c0_113 = arith.constant 0 : index
      %c0_114 = arith.constant 0 : index
      %189 = vector.load %arg8[%c1_112, %c0_113, %c0_114] : memref<4x8x1xf32, #tpu.memory_space<vmem>>, vector<1x8x1xf32>
      %190 = vector.shape_cast %189 : vector<1x8x1xf32> to vector<8x1xf32>
      %191 = tpu.reciprocal %190 {approx = true} : vector<8x1xf32> -> vector<8x1xf32>
      %c1_115 = arith.constant 1 : index
      %c0_116 = arith.constant 0 : index
      %c0_117 = arith.constant 0 : index
      %192 = vector.load %arg9[%c1_115, %c0_116, %c0_117] : memref<4x8x8xf32, #tpu.memory_space<vmem>>, vector<1x8x8xf32>
      %193 = vector.shape_cast %192 : vector<1x8x8xf32> to vector<8x8xf32>
      %194 = vector.broadcast %191 : vector<8x1xf32> to vector<8x8xf32>
      %195 = arith.mulf %193, %194 : vector<8x8xf32>
      %196 = arith.truncf %195 : vector<8x8xf32> to vector<8x8xbf16>
      %c0_118 = arith.constant 0 : index
      %c0_119 = arith.constant 0 : index
      %c8 = arith.constant 8 : index
      %197 = vector.load %arg6[%c0_118, %c0_119, %c8] : memref<1x8x32xbf16, #tpu.memory_space<vmem>>, vector<1x8x8xbf16>
      %198 = vector.shape_cast %197 : vector<1x8x8xbf16> to vector<8x8xbf16>
      %199 = vector.shape_cast %196 : vector<8x8xbf16> to vector<1x8x8xbf16>
      tpu.vector_store %arg6[%c0_118, %c0_119, %c8], %199 {strides = array<i32>} : memref<1x8x32xbf16, #tpu.memory_space<vmem>>, vector<1x8x8xbf16>,
      %c2_120 = arith.constant 2 : index
      %c0_121 = arith.constant 0 : index
      %c0_122 = arith.constant 0 : index
      %200 = vector.load %arg8[%c2_120, %c0_121, %c0_122] : memref<4x8x1xf32, #tpu.memory_space<vmem>>, vector<1x8x1xf32>
      %201 = vector.shape_cast %200 : vector<1x8x1xf32> to vector<8x1xf32>
      %202 = tpu.reciprocal %201 {approx = true} : vector<8x1xf32> -> vector<8x1xf32>
      %c2_123 = arith.constant 2 : index
      %c0_124 = arith.constant 0 : index
      %c0_125 = arith.constant 0 : index
      %203 = vector.load %arg9[%c2_123, %c0_124, %c0_125] : memref<4x8x8xf32, #tpu.memory_space<vmem>>, vector<1x8x8xf32>
      %204 = vector.shape_cast %203 : vector<1x8x8xf32> to vector<8x8xf32>
      %205 = vector.broadcast %202 : vector<8x1xf32> to vector<8x8xf32>
      %206 = arith.mulf %204, %205 : vector<8x8xf32>
      %207 = arith.truncf %206 : vector<8x8xf32> to vector<8x8xbf16>
      %c0_126 = arith.constant 0 : index
      %c0_127 = arith.constant 0 : index
      %c16 = arith.constant 16 : index
      %208 = vector.load %arg6[%c0_126, %c0_127, %c16] : memref<1x8x32xbf16, #tpu.memory_space<vmem>>, vector<1x8x8xbf16>
      %209 = vector.shape_cast %208 : vector<1x8x8xbf16> to vector<8x8xbf16>
      %210 = vector.shape_cast %207 : vector<8x8xbf16> to vector<1x8x8xbf16>
      tpu.vector_store %arg6[%c0_126, %c0_127, %c16], %210 {strides = array<i32>} : memref<1x8x32xbf16, #tpu.memory_space<vmem>>, vector<1x8x8xbf16>,
      %c3_128 = arith.constant 3 : index
      %c0_129 = arith.constant 0 : index
      %c0_130 = arith.constant 0 : index
      %211 = vector.load %arg8[%c3_128, %c0_129, %c0_130] : memref<4x8x1xf32, #tpu.memory_space<vmem>>, vector<1x8x1xf32>
      %212 = vector.shape_cast %211 : vector<1x8x1xf32> to vector<8x1xf32>
      %213 = tpu.reciprocal %212 {approx = true} : vector<8x1xf32> -> vector<8x1xf32>
      %c3_131 = arith.constant 3 : index
      %c0_132 = arith.constant 0 : index
      %c0_133 = arith.constant 0 : index
      %214 = vector.load %arg9[%c3_131, %c0_132, %c0_133] : memref<4x8x8xf32, #tpu.memory_space<vmem>>, vector<1x8x8xf32>
      %215 = vector.shape_cast %214 : vector<1x8x8xf32> to vector<8x8xf32>
      %216 = vector.broadcast %213 : vector<8x1xf32> to vector<8x8xf32>
      %217 = arith.mulf %215, %216 : vector<8x8xf32>
      %218 = arith.truncf %217 : vector<8x8xf32> to vector<8x8xbf16>
      %c0_134 = arith.constant 0 : index
      %c0_135 = arith.constant 0 : index
      %c24 = arith.constant 24 : index
      %219 = vector.load %arg6[%c0_134, %c0_135, %c24] : memref<1x8x32xbf16, #tpu.memory_space<vmem>>, vector<1x8x8xbf16>
      %220 = vector.shape_cast %219 : vector<1x8x8xbf16> to vector<8x8xbf16>
      %221 = vector.shape_cast %218 : vector<8x8xbf16> to vector<1x8x8xbf16>
      tpu.vector_store %arg6[%c0_134, %c0_135, %c24], %221 {strides = array<i32>} : memref<1x8x32xbf16, #tpu.memory_space<vmem>>, vector<1x8x8xbf16>,
    } else {
    }
    return
  }
  func.func @transform_0(%arg0: i32, %arg1: i32, %arg2: i32) -> (i32, i32, i32) {
    %c0_i32 = arith.constant 0 : i32
    %c0_i32_0 = arith.constant 0 : i32
    return %arg0, %c0_i32, %arg1 : i32, i32, i32
  }
  func.func @transform_1(%arg0: i32, %arg1: i32, %arg2: i32) -> (i32, i32, i32) {
    %c0_i32 = arith.constant 0 : i32
    return %arg0, %arg2, %arg1 : i32, i32, i32
  }
  func.func @transform_2(%arg0: i32, %arg1: i32, %arg2: i32) -> (i32, i32, i32) {
    %c0_i32 = arith.constant 0 : i32
    return %arg0, %arg2, %arg1 : i32, i32, i32
  }
  func.func @transform_3(%arg0: i32, %arg1: i32, %arg2: i32) -> (i32, i32, i32) {
    %c0_i32 = arith.constant 0 : i32
    %c0_i32_0 = arith.constant 0 : i32
    return %arg0, %c0_i32, %arg1 : i32, i32, i32
  }
}

module attributes {stable_mosaic.version = 11 : i64} {
  func.func @kernel(%arg0: i32, %arg1: i32, %arg2: i32, %arg3: memref<16x128xbf16, #tpu.memory_space<vmem>>, %arg4: memref<128x128xbf16, #tpu.memory_space<vmem>>, %arg5: memref<1x128xf32, #tpu.memory_space<vmem>>, %arg6: memref<16x128xf32, #tpu.memory_space<vmem>>, %arg7: memref<16x128xf32, #tpu.memory_space<vmem>>, %arg8: memref<16x128xf32, #tpu.memory_space<vmem>>) attributes {dimension_semantics = [#tpu.dimension_semantics<parallel>, #tpu.dimension_semantics<parallel>, #tpu.dimension_semantics<arbitrary>], iteration_bounds = array<i64: 1, 1, 1>, scalar_prefetch = 0 : i64, scratch_operands = 1 : i64, tpu.core_type = #tpu.core_type<tc>, window_params = [{transform_indices = @transform_0, window_bounds = array<i64: 16, 128>}, {transform_indices = @transform_1, window_bounds = array<i64: 128, 128>}, {transform_indices = @transform_2, window_bounds = array<i64: 1, 128>}, {transform_indices = @transform_3, window_bounds = array<i64: 16, 128>}, {transform_indices = @transform_4, window_bounds = array<i64: 16, 128>}]} {
    %c0_i32 = arith.constant 0 : i32
    %0 = arith.cmpi eq, %arg2, %c0_i32 : i32
    %1 = arith.extui %0 : i1 to i32
    %c0_i32_0 = arith.constant 0 : i32
    %2 = arith.cmpi ne, %1, %c0_i32_0 : i32
    scf.if %2 {
      %cst_10 = arith.constant 0.000000e+00 : f32
      %12 = vector.broadcast %cst_10 : f32 to vector<16x128xf32>
      %c0_11 = arith.constant 0 : index
      %c0_12 = arith.constant 0 : index
      %13 = vector.load %arg8[%c0_11, %c0_12] : memref<16x128xf32, #tpu.memory_space<vmem>>, vector<16x128xf32>
      tpu.vector_store %arg8[%c0_11, %c0_12], %12 {strides = array<i32>} : memref<16x128xf32, #tpu.memory_space<vmem>>, vector<16x128xf32>,
    } else {
    }
    %c0 = arith.constant 0 : index
    %c0_1 = arith.constant 0 : index
    %3 = vector.load %arg3[%c0, %c0_1] : memref<16x128xbf16, #tpu.memory_space<vmem>>, vector<16x128xbf16>
    %c0_2 = arith.constant 0 : index
    %c0_3 = arith.constant 0 : index
    %4 = vector.load %arg4[%c0_2, %c0_3] : memref<128x128xbf16, #tpu.memory_space<vmem>>, vector<128x128xbf16>
    %c0_4 = arith.constant 0 : index
    %c0_5 = arith.constant 0 : index
    %5 = vector.load %arg8[%c0_4, %c0_5] : memref<16x128xf32, #tpu.memory_space<vmem>>, vector<16x128xf32>
    %cst = arith.constant dense<0.000000e+00> : vector<16x128xf32>
    %6 = tpu.matmul %3, %4, %cst {dimension_numbers = #tpu.dot_dimension_numbers<[1], [0], [0], [1], [0, 0, 1, 1], [], []>} : vector<16x128xbf16>, vector<128x128xbf16>, vector<16x128xf32> -> vector<16x128xf32>
    %7 = arith.addf %5, %6 : vector<16x128xf32>
    %c0_6 = arith.constant 0 : index
    %c0_7 = arith.constant 0 : index
    %8 = vector.load %arg8[%c0_6, %c0_7] : memref<16x128xf32, #tpu.memory_space<vmem>>, vector<16x128xf32>
    tpu.vector_store %arg8[%c0_6, %c0_7], %7 {strides = array<i32>} : memref<16x128xf32, #tpu.memory_space<vmem>>, vector<16x128xf32>,
    %c0_i32_8 = arith.constant 0 : i32
    %9 = arith.cmpi eq, %arg2, %c0_i32_8 : i32
    %10 = arith.extui %9 : i1 to i32
    %c0_i32_9 = arith.constant 0 : i32
    %11 = arith.cmpi ne, %10, %c0_i32_9 : i32
    scf.if %11 {
      %c0_10 = arith.constant 0 : index
      %c0_11 = arith.constant 0 : index
      %12 = vector.load %arg8[%c0_10, %c0_11] : memref<16x128xf32, #tpu.memory_space<vmem>>, vector<16x128xf32>
      %c0_12 = arith.constant 0 : index
      %c0_13 = arith.constant 0 : index
      %13 = vector.load %arg5[%c0_12, %c0_13] : memref<1x128xf32, #tpu.memory_space<vmem>>, vector<1x128xf32>
      %14 = vector.broadcast %13 : vector<1x128xf32> to vector<16x128xf32>
      %15 = arith.addf %12, %14 : vector<16x128xf32>
      %c0_14 = arith.constant 0 : index
      %c0_15 = arith.constant 0 : index
      %16 = vector.load %arg6[%c0_14, %c0_15] : memref<16x128xf32, #tpu.memory_space<vmem>>, vector<16x128xf32>
      %17 = arith.addf %15, %16 : vector<16x128xf32>
      %c0_16 = arith.constant 0 : index
      %c0_17 = arith.constant 0 : index
      %18 = vector.load %arg7[%c0_16, %c0_17] : memref<16x128xf32, #tpu.memory_space<vmem>>, vector<16x128xf32>
      tpu.vector_store %arg7[%c0_16, %c0_17], %17 {strides = array<i32>} : memref<16x128xf32, #tpu.memory_space<vmem>>, vector<16x128xf32>,
    } else {
    }
    return
  }
  func.func @transform_0(%arg0: i32, %arg1: i32, %arg2: i32) -> (i32, i32) {
    %c0_i32 = arith.constant 0 : i32
    return %arg0, %arg2 : i32, i32
  }
  func.func @transform_1(%arg0: i32, %arg1: i32, %arg2: i32) -> (i32, i32) {
    %c0_i32 = arith.constant 0 : i32
    return %arg2, %arg1 : i32, i32
  }
  func.func @transform_2(%arg0: i32, %arg1: i32, %arg2: i32) -> (i32, i32) {
    %c0_i32 = arith.constant 0 : i32
    %c0_i32_0 = arith.constant 0 : i32
    return %c0_i32, %arg1 : i32, i32
  }
  func.func @transform_3(%arg0: i32, %arg1: i32, %arg2: i32) -> (i32, i32) {
    %c0_i32 = arith.constant 0 : i32
    return %arg0, %arg1 : i32, i32
  }
  func.func @transform_4(%arg0: i32, %arg1: i32, %arg2: i32) -> (i32, i32) {
    %c0_i32 = arith.constant 0 : i32
    return %arg0, %arg1 : i32, i32
  }
}

module attributes {stable_mosaic.version = 11 : i64} {
  func.func @kernel(%arg0: i32, %arg1: i32, %arg2: i32, %arg3: memref<32x128xbf16, #tpu.memory_space<vmem>>, %arg4: memref<128x128xbf16, #tpu.memory_space<vmem>>, %arg5: memref<1x128xf32, #tpu.memory_space<vmem>>, %arg6: memref<32x128xbf16, #tpu.memory_space<vmem>>, %arg7: memref<32x128xf32, #tpu.memory_space<vmem>>) attributes {dimension_semantics = [#tpu.dimension_semantics<parallel>, #tpu.dimension_semantics<parallel>, #tpu.dimension_semantics<arbitrary>], iteration_bounds = array<i64: 1, 1, 1>, scalar_prefetch = 0 : i64, scratch_operands = 1 : i64, tpu.core_type = #tpu.core_type<tc>, window_params = [{transform_indices = @transform_0, window_bounds = array<i64: 32, 128>}, {transform_indices = @transform_1, window_bounds = array<i64: 128, 128>}, {transform_indices = @transform_2, window_bounds = array<i64: 1, 128>}, {transform_indices = @transform_3, window_bounds = array<i64: 32, 128>}]} {
    %c0_i32 = arith.constant 0 : i32
    %0 = arith.cmpi eq, %arg2, %c0_i32 : i32
    %1 = arith.extui %0 : i1 to i32
    %c0_i32_0 = arith.constant 0 : i32
    %2 = arith.cmpi ne, %1, %c0_i32_0 : i32
    scf.if %2 {
      %cst_10 = arith.constant 0.000000e+00 : f32
      %12 = vector.broadcast %cst_10 : f32 to vector<32x128xf32>
      %c0_11 = arith.constant 0 : index
      %c0_12 = arith.constant 0 : index
      %13 = vector.load %arg7[%c0_11, %c0_12] : memref<32x128xf32, #tpu.memory_space<vmem>>, vector<32x128xf32>
      tpu.vector_store %arg7[%c0_11, %c0_12], %12 {strides = array<i32>} : memref<32x128xf32, #tpu.memory_space<vmem>>, vector<32x128xf32>,
    } else {
    }
    %c0 = arith.constant 0 : index
    %c0_1 = arith.constant 0 : index
    %3 = vector.load %arg3[%c0, %c0_1] : memref<32x128xbf16, #tpu.memory_space<vmem>>, vector<32x128xbf16>
    %c0_2 = arith.constant 0 : index
    %c0_3 = arith.constant 0 : index
    %4 = vector.load %arg4[%c0_2, %c0_3] : memref<128x128xbf16, #tpu.memory_space<vmem>>, vector<128x128xbf16>
    %c0_4 = arith.constant 0 : index
    %c0_5 = arith.constant 0 : index
    %5 = vector.load %arg7[%c0_4, %c0_5] : memref<32x128xf32, #tpu.memory_space<vmem>>, vector<32x128xf32>
    %cst = arith.constant dense<0.000000e+00> : vector<32x128xf32>
    %6 = tpu.matmul %3, %4, %cst {dimension_numbers = #tpu.dot_dimension_numbers<[1], [0], [0], [1], [0, 0, 1, 1], [], []>} : vector<32x128xbf16>, vector<128x128xbf16>, vector<32x128xf32> -> vector<32x128xf32>
    %7 = arith.addf %5, %6 : vector<32x128xf32>
    %c0_6 = arith.constant 0 : index
    %c0_7 = arith.constant 0 : index
    %8 = vector.load %arg7[%c0_6, %c0_7] : memref<32x128xf32, #tpu.memory_space<vmem>>, vector<32x128xf32>
    tpu.vector_store %arg7[%c0_6, %c0_7], %7 {strides = array<i32>} : memref<32x128xf32, #tpu.memory_space<vmem>>, vector<32x128xf32>,
    %c0_i32_8 = arith.constant 0 : i32
    %9 = arith.cmpi eq, %arg2, %c0_i32_8 : i32
    %10 = arith.extui %9 : i1 to i32
    %c0_i32_9 = arith.constant 0 : i32
    %11 = arith.cmpi ne, %10, %c0_i32_9 : i32
    scf.if %11 {
      %c0_10 = arith.constant 0 : index
      %c0_11 = arith.constant 0 : index
      %12 = vector.load %arg7[%c0_10, %c0_11] : memref<32x128xf32, #tpu.memory_space<vmem>>, vector<32x128xf32>
      %c0_12 = arith.constant 0 : index
      %c0_13 = arith.constant 0 : index
      %13 = vector.load %arg5[%c0_12, %c0_13] : memref<1x128xf32, #tpu.memory_space<vmem>>, vector<1x128xf32>
      %14 = vector.broadcast %13 : vector<1x128xf32> to vector<32x128xf32>
      %15 = arith.addf %12, %14 : vector<32x128xf32>
      %16 = arith.truncf %15 : vector<32x128xf32> to vector<32x128xbf16>
      %c0_14 = arith.constant 0 : index
      %c0_15 = arith.constant 0 : index
      %17 = vector.load %arg6[%c0_14, %c0_15] : memref<32x128xbf16, #tpu.memory_space<vmem>>, vector<32x128xbf16>
      tpu.vector_store %arg6[%c0_14, %c0_15], %16 {strides = array<i32>} : memref<32x128xbf16, #tpu.memory_space<vmem>>, vector<32x128xbf16>,
    } else {
    }
    return
  }
  func.func @transform_0(%arg0: i32, %arg1: i32, %arg2: i32) -> (i32, i32) {
    %c0_i32 = arith.constant 0 : i32
    return %arg0, %arg2 : i32, i32
  }
  func.func @transform_1(%arg0: i32, %arg1: i32, %arg2: i32) -> (i32, i32) {
    %c0_i32 = arith.constant 0 : i32
    return %arg2, %arg1 : i32, i32
  }
  func.func @transform_2(%arg0: i32, %arg1: i32, %arg2: i32) -> (i32, i32) {
    %c0_i32 = arith.constant 0 : i32
    %c0_i32_0 = arith.constant 0 : i32
    return %c0_i32, %arg1 : i32, i32
  }
  func.func @transform_3(%arg0: i32, %arg1: i32, %arg2: i32) -> (i32, i32) {
    %c0_i32 = arith.constant 0 : i32
    return %arg0, %arg1 : i32, i32
  }
}

module attributes {stable_mosaic.version = 11 : i64} {
  func.func @kernel(%arg0: i32, %arg1: i32, %arg2: i32, %arg3: memref<16x128xbf16, #tpu.memory_space<vmem>>, %arg4: memref<128x128xbf16, #tpu.memory_space<vmem>>, %arg5: memref<1x128xf32, #tpu.memory_space<vmem>>, %arg6: memref<16x128xbf16, #tpu.memory_space<vmem>>, %arg7: memref<16x128xf32, #tpu.memory_space<vmem>>) attributes {dimension_semantics = [#tpu.dimension_semantics<parallel>, #tpu.dimension_semantics<parallel>, #tpu.dimension_semantics<arbitrary>], iteration_bounds = array<i64: 1, 1, 1>, scalar_prefetch = 0 : i64, scratch_operands = 1 : i64, tpu.core_type = #tpu.core_type<tc>, window_params = [{transform_indices = @transform_0, window_bounds = array<i64: 16, 128>}, {transform_indices = @transform_1, window_bounds = array<i64: 128, 128>}, {transform_indices = @transform_2, window_bounds = array<i64: 1, 128>}, {transform_indices = @transform_3, window_bounds = array<i64: 16, 128>}]} {
    %c0_i32 = arith.constant 0 : i32
    %0 = arith.cmpi eq, %arg2, %c0_i32 : i32
    %1 = arith.extui %0 : i1 to i32
    %c0_i32_0 = arith.constant 0 : i32
    %2 = arith.cmpi ne, %1, %c0_i32_0 : i32
    scf.if %2 {
      %cst_10 = arith.constant 0.000000e+00 : f32
      %12 = vector.broadcast %cst_10 : f32 to vector<16x128xf32>
      %c0_11 = arith.constant 0 : index
      %c0_12 = arith.constant 0 : index
      %13 = vector.load %arg7[%c0_11, %c0_12] : memref<16x128xf32, #tpu.memory_space<vmem>>, vector<16x128xf32>
      tpu.vector_store %arg7[%c0_11, %c0_12], %12 {strides = array<i32>} : memref<16x128xf32, #tpu.memory_space<vmem>>, vector<16x128xf32>,
    } else {
    }
    %c0 = arith.constant 0 : index
    %c0_1 = arith.constant 0 : index
    %3 = vector.load %arg3[%c0, %c0_1] : memref<16x128xbf16, #tpu.memory_space<vmem>>, vector<16x128xbf16>
    %c0_2 = arith.constant 0 : index
    %c0_3 = arith.constant 0 : index
    %4 = vector.load %arg4[%c0_2, %c0_3] : memref<128x128xbf16, #tpu.memory_space<vmem>>, vector<128x128xbf16>
    %c0_4 = arith.constant 0 : index
    %c0_5 = arith.constant 0 : index
    %5 = vector.load %arg7[%c0_4, %c0_5] : memref<16x128xf32, #tpu.memory_space<vmem>>, vector<16x128xf32>
    %cst = arith.constant dense<0.000000e+00> : vector<16x128xf32>
    %6 = tpu.matmul %3, %4, %cst {dimension_numbers = #tpu.dot_dimension_numbers<[1], [0], [0], [1], [0, 0, 1, 1], [], []>} : vector<16x128xbf16>, vector<128x128xbf16>, vector<16x128xf32> -> vector<16x128xf32>
    %7 = arith.addf %5, %6 : vector<16x128xf32>
    %c0_6 = arith.constant 0 : index
    %c0_7 = arith.constant 0 : index
    %8 = vector.load %arg7[%c0_6, %c0_7] : memref<16x128xf32, #tpu.memory_space<vmem>>, vector<16x128xf32>
    tpu.vector_store %arg7[%c0_6, %c0_7], %7 {strides = array<i32>} : memref<16x128xf32, #tpu.memory_space<vmem>>, vector<16x128xf32>,
    %c0_i32_8 = arith.constant 0 : i32
    %9 = arith.cmpi eq, %arg2, %c0_i32_8 : i32
    %10 = arith.extui %9 : i1 to i32
    %c0_i32_9 = arith.constant 0 : i32
    %11 = arith.cmpi ne, %10, %c0_i32_9 : i32
    scf.if %11 {
      %c0_10 = arith.constant 0 : index
      %c0_11 = arith.constant 0 : index
      %12 = vector.load %arg7[%c0_10, %c0_11] : memref<16x128xf32, #tpu.memory_space<vmem>>, vector<16x128xf32>
      %c0_12 = arith.constant 0 : index
      %c0_13 = arith.constant 0 : index
      %13 = vector.load %arg5[%c0_12, %c0_13] : memref<1x128xf32, #tpu.memory_space<vmem>>, vector<1x128xf32>
      %14 = vector.broadcast %13 : vector<1x128xf32> to vector<16x128xf32>
      %15 = arith.addf %12, %14 : vector<16x128xf32>
      %cst_14 = arith.constant 5.000000e-01 : f32
      %16 = vector.broadcast %cst_14 : f32 to vector<16x128xf32>
      %17 = arith.mulf %16, %15 : vector<16x128xf32>
      %cst_15 = arith.constant 4.471500e-02 : f32
      %18 = vector.broadcast %cst_15 : f32 to vector<16x128xf32>
      %19 = arith.mulf %18, %15 : vector<16x128xf32>
      %20 = arith.mulf %19, %15 : vector<16x128xf32>
      %21 = arith.mulf %20, %15 : vector<16x128xf32>
      %22 = arith.addf %15, %21 : vector<16x128xf32>
      %cst_16 = arith.constant 0.797884583 : f32
      %23 = vector.broadcast %cst_16 : f32 to vector<16x128xf32>
      %24 = arith.mulf %23, %22 : vector<16x128xf32>
      %25 = math.tanh %24 : vector<16x128xf32>
      %cst_17 = arith.constant 1.000000e+00 : f32
      %26 = vector.broadcast %cst_17 : f32 to vector<16x128xf32>
      %27 = arith.addf %26, %25 : vector<16x128xf32>
      %28 = arith.mulf %17, %27 : vector<16x128xf32>
      %29 = arith.truncf %28 : vector<16x128xf32> to vector<16x128xbf16>
      %c0_18 = arith.constant 0 : index
      %c0_19 = arith.constant 0 : index
      %30 = vector.load %arg6[%c0_18, %c0_19] : memref<16x128xbf16, #tpu.memory_space<vmem>>, vector<16x128xbf16>
      tpu.vector_store %arg6[%c0_18, %c0_19], %29 {strides = array<i32>} : memref<16x128xbf16, #tpu.memory_space<vmem>>, vector<16x128xbf16>,
    } else {
    }
    return
  }
  func.func @transform_0(%arg0: i32, %arg1: i32, %arg2: i32) -> (i32, i32) {
    %c0_i32 = arith.constant 0 : i32
    return %arg0, %arg2 : i32, i32
  }
  func.func @transform_1(%arg0: i32, %arg1: i32, %arg2: i32) -> (i32, i32) {
    %c0_i32 = arith.constant 0 : i32
    return %arg2, %arg1 : i32, i32
  }
  func.func @transform_2(%arg0: i32, %arg1: i32, %arg2: i32) -> (i32, i32) {
    %c0_i32 = arith.constant 0 : i32
    %c0_i32_0 = arith.constant 0 : i32
    return %c0_i32, %arg1 : i32, i32
  }
  func.func @transform_3(%arg0: i32, %arg1: i32, %arg2: i32) -> (i32, i32) {
    %c0_i32 = arith.constant 0 : i32
    return %arg0, %arg1 : i32, i32
  }
}

module attributes {stable_mosaic.version = 11 : i64} {
  func.func @_attention_kernel(%arg0: i32, %arg1: i32, %arg2: i32, %arg3: memref<1x8x32xbf16, #tpu.memory_space<vmem>>, %arg4: memref<1x16x32xbf16, #tpu.memory_space<vmem>>, %arg5: memref<1x16x32xbf16, #tpu.memory_space<vmem>>, %arg6: memref<1x8x32xbf16, #tpu.memory_space<vmem>>, %arg7: memref<4x8x1xf32, #tpu.memory_space<vmem>>, %arg8: memref<4x8x1xf32, #tpu.memory_space<vmem>>, %arg9: memref<4x8x8xf32, #tpu.memory_space<vmem>>) attributes {dimension_semantics = [#tpu.dimension_semantics<parallel>, #tpu.dimension_semantics<parallel>, #tpu.dimension_semantics<arbitrary>], iteration_bounds = array<i64: 2, 1, 1>, scalar_prefetch = 0 : i64, scratch_operands = 3 : i64, tpu.core_type = #tpu.core_type<tc>, window_params = [{transform_indices = @transform_0, window_bounds = array<i64: 1, 8, 32>}, {transform_indices = @transform_1, window_bounds = array<i64: 1, 16, 32>}, {transform_indices = @transform_2, window_bounds = array<i64: 1, 16, 32>}, {transform_indices = @transform_3, window_bounds = array<i64: 1, 8, 32>}]} {
    %c0_i32 = arith.constant 0 : i32
    %0 = arith.cmpi eq, %arg2, %c0_i32 : i32
    %1 = arith.extui %0 : i1 to i32
    %c0_i32_0 = arith.constant 0 : i32
    %2 = arith.cmpi ne, %1, %c0_i32_0 : i32
    scf.if %2 {
      %cst_99 = arith.constant 0xFF800000 : f32
      %164 = vector.broadcast %cst_99 : f32 to vector<4x8x1xf32>
      %c0_100 = arith.constant 0 : index
      %c0_101 = arith.constant 0 : index
      %c0_102 = arith.constant 0 : index
      %165 = vector.load %arg7[%c0_100, %c0_101, %c0_102] : memref<4x8x1xf32, #tpu.memory_space<vmem>>, vector<4x8x1xf32>
      tpu.vector_store %arg7[%c0_100, %c0_101, %c0_102], %164 {strides = array<i32>} : memref<4x8x1xf32, #tpu.memory_space<vmem>>, vector<4x8x1xf32>,
      %cst_103 = arith.constant 0.000000e+00 : f32
      %166 = vector.broadcast %cst_103 : f32 to vector<4x8x1xf32>
      %c0_104 = arith.constant 0 : index
      %c0_105 = arith.constant 0 : index
      %c0_106 = arith.constant 0 : index
      %167 = vector.load %arg8[%c0_104, %c0_105, %c0_106] : memref<4x8x1xf32, #tpu.memory_space<vmem>>, vector<4x8x1xf32>
      tpu.vector_store %arg8[%c0_104, %c0_105, %c0_106], %166 {strides = array<i32>} : memref<4x8x1xf32, #tpu.memory_space<vmem>>, vector<4x8x1xf32>,
      %cst_107 = arith.constant 0.000000e+00 : f32
      %168 = vector.broadcast %cst_107 : f32 to vector<4x8x8xf32>
      %c0_108 = arith.constant 0 : index
      %c0_109 = arith.constant 0 : index
      %c0_110 = arith.constant 0 : index
      %169 = vector.load %arg9[%c0_108, %c0_109, %c0_110] : memref<4x8x8xf32, #tpu.memory_space<vmem>>, vector<4x8x8xf32>
      tpu.vector_store %arg9[%c0_108, %c0_109, %c0_110], %168 {strides = array<i32>} : memref<4x8x8xf32, #tpu.memory_space<vmem>>, vector<4x8x8xf32>,
    } else {
    }
    %c0 = arith.constant 0 : index
    %c0_1 = arith.constant 0 : index
    %c0_2 = arith.constant 0 : index
    %3 = vector.load %arg3[%c0, %c0_1, %c0_2] : memref<1x8x32xbf16, #tpu.memory_space<vmem>>, vector<1x8x32xbf16>
    %4 = vector.shape_cast %3 : vector<1x8x32xbf16> to vector<8x32xbf16>
    %c0_3 = arith.constant 0 : index
    %c0_4 = arith.constant 0 : index
    %c0_5 = arith.constant 0 : index
    %5 = vector.load %arg4[%c0_3, %c0_4, %c0_5] : memref<1x16x32xbf16, #tpu.memory_space<vmem>>, vector<1x16x32xbf16>
    %6 = vector.shape_cast %5 : vector<1x16x32xbf16> to vector<16x32xbf16>
    %c0_6 = arith.constant 0 : index
    %c0_7 = arith.constant 0 : index
    %c0_8 = arith.constant 0 : index
    %7 = vector.load %arg5[%c0_6, %c0_7, %c0_8] : memref<1x16x32xbf16, #tpu.memory_space<vmem>>, vector<1x16x32xbf16>
    %8 = vector.shape_cast %7 : vector<1x16x32xbf16> to vector<16x32xbf16>
    %9 = vector.extract_strided_slice %4 {offsets = [0, 0], sizes = [8, 8], strides = [1, 1]} : vector<8x32xbf16> to vector<8x8xbf16>
    %10 = vector.extract_strided_slice %6 {offsets = [0, 0], sizes = [16, 8], strides = [1, 1]} : vector<16x32xbf16> to vector<16x8xbf16>
    %11 = vector.extract_strided_slice %8 {offsets = [0, 0], sizes = [16, 8], strides = [1, 1]} : vector<16x32xbf16> to vector<16x8xbf16>
    %cst = arith.constant dense<0.000000e+00> : vector<8x16xf32>
    %12 = tpu.matmul %9, %10, %cst {dimension_numbers = #tpu.dot_dimension_numbers<[1], [1], [0], [0], [0, 0, 1, 0], [], []>} : vector<8x8xbf16>, vector<16x8xbf16>, vector<8x16xf32> -> vector<8x16xf32>
    %cst_9 = arith.constant 0.353553385 : f32
    %13 = vector.broadcast %cst_9 : f32 to vector<8x16xf32>
    %14 = arith.mulf %12, %13 : vector<8x16xf32>
    %c0_10 = arith.constant 0 : index
    %c0_11 = arith.constant 0 : index
    %c0_12 = arith.constant 0 : index
    %15 = vector.load %arg7[%c0_10, %c0_11, %c0_12] : memref<4x8x1xf32, #tpu.memory_space<vmem>>, vector<1x8x1xf32>
    %16 = vector.shape_cast %15 : vector<1x8x1xf32> to vector<8x1xf32>
    %cst_13 = arith.constant dense<0xFF800000> : vector<8xf32>
    %17 = vector.multi_reduction <maximumf>, %14, %cst_13 [1] : vector<8x16xf32> to vector<8xf32>
    %18 = vector.shape_cast %17 : vector<8xf32> to vector<8x1xf32>
    %19 = arith.maximumf %16, %18 : vector<8x1xf32>
    %20 = arith.subf %16, %19 : vector<8x1xf32>
    %21 = math.exp %20 : vector<8x1xf32>
    %22 = vector.broadcast %19 : vector<8x1xf32> to vector<8x16xf32>
    %23 = arith.subf %14, %22 : vector<8x16xf32>
    %24 = math.exp %23 : vector<8x16xf32>
    %c0_14 = arith.constant 0 : index
    %c0_15 = arith.constant 0 : index
    %c0_16 = arith.constant 0 : index
    %25 = vector.load %arg8[%c0_14, %c0_15, %c0_16] : memref<4x8x1xf32, #tpu.memory_space<vmem>>, vector<1x8x1xf32>
    %26 = vector.shape_cast %25 : vector<1x8x1xf32> to vector<8x1xf32>
    %27 = arith.mulf %21, %26 : vector<8x1xf32>
    %cst_17 = arith.constant dense<0.000000e+00> : vector<8xf32>
    %28 = vector.multi_reduction <add>, %24, %cst_17 [1] : vector<8x16xf32> to vector<8xf32>
    %29 = vector.shape_cast %28 : vector<8xf32> to vector<8x1xf32>
    %30 = arith.addf %27, %29 : vector<8x1xf32>
    %c0_18 = arith.constant 0 : index
    %c0_19 = arith.constant 0 : index
    %c0_20 = arith.constant 0 : index
    %31 = vector.load %arg8[%c0_18, %c0_19, %c0_20] : memref<4x8x1xf32, #tpu.memory_space<vmem>>, vector<1x8x1xf32>
    %32 = vector.shape_cast %31 : vector<1x8x1xf32> to vector<8x1xf32>
    %33 = vector.shape_cast %30 : vector<8x1xf32> to vector<1x8x1xf32>
    tpu.vector_store %arg8[%c0_18, %c0_19, %c0_20], %33 {strides = array<i32>} : memref<4x8x1xf32, #tpu.memory_space<vmem>>, vector<1x8x1xf32>,
    %c0_21 = arith.constant 0 : index
    %c0_22 = arith.constant 0 : index
    %c0_23 = arith.constant 0 : index
    %34 = vector.load %arg9[%c0_21, %c0_22, %c0_23] : memref<4x8x8xf32, #tpu.memory_space<vmem>>, vector<1x8x8xf32>
    %35 = vector.shape_cast %34 : vector<1x8x8xf32> to vector<8x8xf32>
    %36 = vector.broadcast %21 : vector<8x1xf32> to vector<8x8xf32>
    %37 = arith.mulf %36, %35 : vector<8x8xf32>
    %38 = arith.truncf %24 : vector<8x16xf32> to vector<8x16xbf16>
    %cst_24 = arith.constant dense<0.000000e+00> : vector<8x8xf32>
    %39 = tpu.matmul %38, %11, %cst_24 {dimension_numbers = #tpu.dot_dimension_numbers<[1], [0], [0], [1], [0, 0, 1, 1], [], []>} : vector<8x16xbf16>, vector<16x8xbf16>, vector<8x8xf32> -> vector<8x8xf32>
    %40 = arith.addf %37, %39 : vector<8x8xf32>
    %c0_25 = arith.constant 0 : index
    %c0_26 = arith.constant 0 : index
    %c0_27 = arith.constant 0 : index
    %41 = vector.load %arg9[%c0_25, %c0_26, %c0_27] : memref<4x8x8xf32, #tpu.memory_space<vmem>>, vector<1x8x8xf32>
    %42 = vector.shape_cast %41 : vector<1x8x8xf32> to vector<8x8xf32>
    %43 = vector.shape_cast %40 : vector<8x8xf32> to vector<1x8x8xf32>
    tpu.vector_store %arg9[%c0_25, %c0_26, %c0_27], %43 {strides = array<i32>} : memref<4x8x8xf32, #tpu.memory_space<vmem>>, vector<1x8x8xf32>,
    %c0_28 = arith.constant 0 : index
    %c0_29 = arith.constant 0 : index
    %c0_30 = arith.constant 0 : index
    %44 = vector.load %arg7[%c0_28, %c0_29, %c0_30] : memref<4x8x1xf32, #tpu.memory_space<vmem>>, vector<1x8x1xf32>
    %45 = vector.shape_cast %44 : vector<1x8x1xf32> to vector<8x1xf32>
    %46 = vector.shape_cast %19 : vector<8x1xf32> to vector<1x8x1xf32>
    tpu.vector_store %arg7[%c0_28, %c0_29, %c0_30], %46 {strides = array<i32>} : memref<4x8x1xf32, #tpu.memory_space<vmem>>, vector<1x8x1xf32>,
    %47 = vector.extract_strided_slice %4 {offsets = [0, 8], sizes = [8, 8], strides = [1, 1]} : vector<8x32xbf16> to vector<8x8xbf16>
    %48 = vector.extract_strided_slice %6 {offsets = [0, 8], sizes = [16, 8], strides = [1, 1]} : vector<16x32xbf16> to vector<16x8xbf16>
    %49 = vector.extract_strided_slice %8 {offsets = [0, 8], sizes = [16, 8], strides = [1, 1]} : vector<16x32xbf16> to vector<16x8xbf16>
    %cst_31 = arith.constant dense<0.000000e+00> : vector<8x16xf32>
    %50 = tpu.matmul %47, %48, %cst_31 {dimension_numbers = #tpu.dot_dimension_numbers<[1], [1], [0], [0], [0, 0, 1, 0], [], []>} : vector<8x8xbf16>, vector<16x8xbf16>, vector<8x16xf32> -> vector<8x16xf32>
    %cst_32 = arith.constant 0.353553385 : f32
    %51 = vector.broadcast %cst_32 : f32 to vector<8x16xf32>
    %52 = arith.mulf %50, %51 : vector<8x16xf32>
    %c1 = arith.constant 1 : index
    %c0_33 = arith.constant 0 : index
    %c0_34 = arith.constant 0 : index
    %53 = vector.load %arg7[%c1, %c0_33, %c0_34] : memref<4x8x1xf32, #tpu.memory_space<vmem>>, vector<1x8x1xf32>
    %54 = vector.shape_cast %53 : vector<1x8x1xf32> to vector<8x1xf32>
    %cst_35 = arith.constant dense<0xFF800000> : vector<8xf32>
    %55 = vector.multi_reduction <maximumf>, %52, %cst_35 [1] : vector<8x16xf32> to vector<8xf32>
    %56 = vector.shape_cast %55 : vector<8xf32> to vector<8x1xf32>
    %57 = arith.maximumf %54, %56 : vector<8x1xf32>
    %58 = arith.subf %54, %57 : vector<8x1xf32>
    %59 = math.exp %58 : vector<8x1xf32>
    %60 = vector.broadcast %57 : vector<8x1xf32> to vector<8x16xf32>
    %61 = arith.subf %52, %60 : vector<8x16xf32>
    %62 = math.exp %61 : vector<8x16xf32>
    %c1_36 = arith.constant 1 : index
    %c0_37 = arith.constant 0 : index
    %c0_38 = arith.constant 0 : index
    %63 = vector.load %arg8[%c1_36, %c0_37, %c0_38] : memref<4x8x1xf32, #tpu.memory_space<vmem>>, vector<1x8x1xf32>
    %64 = vector.shape_cast %63 : vector<1x8x1xf32> to vector<8x1xf32>
    %65 = arith.mulf %59, %64 : vector<8x1xf32>
    %cst_39 = arith.constant dense<0.000000e+00> : vector<8xf32>
    %66 = vector.multi_reduction <add>, %62, %cst_39 [1] : vector<8x16xf32> to vector<8xf32>
    %67 = vector.shape_cast %66 : vector<8xf32> to vector<8x1xf32>
    %68 = arith.addf %65, %67 : vector<8x1xf32>
    %c1_40 = arith.constant 1 : index
    %c0_41 = arith.constant 0 : index
    %c0_42 = arith.constant 0 : index
    %69 = vector.load %arg8[%c1_40, %c0_41, %c0_42] : memref<4x8x1xf32, #tpu.memory_space<vmem>>, vector<1x8x1xf32>
    %70 = vector.shape_cast %69 : vector<1x8x1xf32> to vector<8x1xf32>
    %71 = vector.shape_cast %68 : vector<8x1xf32> to vector<1x8x1xf32>
    tpu.vector_store %arg8[%c1_40, %c0_41, %c0_42], %71 {strides = array<i32>} : memref<4x8x1xf32, #tpu.memory_space<vmem>>, vector<1x8x1xf32>,
    %c1_43 = arith.constant 1 : index
    %c0_44 = arith.constant 0 : index
    %c0_45 = arith.constant 0 : index
    %72 = vector.load %arg9[%c1_43, %c0_44, %c0_45] : memref<4x8x8xf32, #tpu.memory_space<vmem>>, vector<1x8x8xf32>
    %73 = vector.shape_cast %72 : vector<1x8x8xf32> to vector<8x8xf32>
    %74 = vector.broadcast %59 : vector<8x1xf32> to vector<8x8xf32>
    %75 = arith.mulf %74, %73 : vector<8x8xf32>
    %76 = arith.truncf %62 : vector<8x16xf32> to vector<8x16xbf16>
    %cst_46 = arith.constant dense<0.000000e+00> : vector<8x8xf32>
    %77 = tpu.matmul %76, %49, %cst_46 {dimension_numbers = #tpu.dot_dimension_numbers<[1], [0], [0], [1], [0, 0, 1, 1], [], []>} : vector<8x16xbf16>, vector<16x8xbf16>, vector<8x8xf32> -> vector<8x8xf32>
    %78 = arith.addf %75, %77 : vector<8x8xf32>
    %c1_47 = arith.constant 1 : index
    %c0_48 = arith.constant 0 : index
    %c0_49 = arith.constant 0 : index
    %79 = vector.load %arg9[%c1_47, %c0_48, %c0_49] : memref<4x8x8xf32, #tpu.memory_space<vmem>>, vector<1x8x8xf32>
    %80 = vector.shape_cast %79 : vector<1x8x8xf32> to vector<8x8xf32>
    %81 = vector.shape_cast %78 : vector<8x8xf32> to vector<1x8x8xf32>
    tpu.vector_store %arg9[%c1_47, %c0_48, %c0_49], %81 {strides = array<i32>} : memref<4x8x8xf32, #tpu.memory_space<vmem>>, vector<1x8x8xf32>,
    %c1_50 = arith.constant 1 : index
    %c0_51 = arith.constant 0 : index
    %c0_52 = arith.constant 0 : index
    %82 = vector.load %arg7[%c1_50, %c0_51, %c0_52] : memref<4x8x1xf32, #tpu.memory_space<vmem>>, vector<1x8x1xf32>
    %83 = vector.shape_cast %82 : vector<1x8x1xf32> to vector<8x1xf32>
    %84 = vector.shape_cast %57 : vector<8x1xf32> to vector<1x8x1xf32>
    tpu.vector_store %arg7[%c1_50, %c0_51, %c0_52], %84 {strides = array<i32>} : memref<4x8x1xf32, #tpu.memory_space<vmem>>, vector<1x8x1xf32>,
    %85 = vector.extract_strided_slice %4 {offsets = [0, 16], sizes = [8, 8], strides = [1, 1]} : vector<8x32xbf16> to vector<8x8xbf16>
    %86 = vector.extract_strided_slice %6 {offsets = [0, 16], sizes = [16, 8], strides = [1, 1]} : vector<16x32xbf16> to vector<16x8xbf16>
    %87 = vector.extract_strided_slice %8 {offsets = [0, 16], sizes = [16, 8], strides = [1, 1]} : vector<16x32xbf16> to vector<16x8xbf16>
    %cst_53 = arith.constant dense<0.000000e+00> : vector<8x16xf32>
    %88 = tpu.matmul %85, %86, %cst_53 {dimension_numbers = #tpu.dot_dimension_numbers<[1], [1], [0], [0], [0, 0, 1, 0], [], []>} : vector<8x8xbf16>, vector<16x8xbf16>, vector<8x16xf32> -> vector<8x16xf32>
    %cst_54 = arith.constant 0.353553385 : f32
    %89 = vector.broadcast %cst_54 : f32 to vector<8x16xf32>
    %90 = arith.mulf %88, %89 : vector<8x16xf32>
    %c2 = arith.constant 2 : index
    %c0_55 = arith.constant 0 : index
    %c0_56 = arith.constant 0 : index
    %91 = vector.load %arg7[%c2, %c0_55, %c0_56] : memref<4x8x1xf32, #tpu.memory_space<vmem>>, vector<1x8x1xf32>
    %92 = vector.shape_cast %91 : vector<1x8x1xf32> to vector<8x1xf32>
    %cst_57 = arith.constant dense<0xFF800000> : vector<8xf32>
    %93 = vector.multi_reduction <maximumf>, %90, %cst_57 [1] : vector<8x16xf32> to vector<8xf32>
    %94 = vector.shape_cast %93 : vector<8xf32> to vector<8x1xf32>
    %95 = arith.maximumf %92, %94 : vector<8x1xf32>
    %96 = arith.subf %92, %95 : vector<8x1xf32>
    %97 = math.exp %96 : vector<8x1xf32>
    %98 = vector.broadcast %95 : vector<8x1xf32> to vector<8x16xf32>
    %99 = arith.subf %90, %98 : vector<8x16xf32>
    %100 = math.exp %99 : vector<8x16xf32>
    %c2_58 = arith.constant 2 : index
    %c0_59 = arith.constant 0 : index
    %c0_60 = arith.constant 0 : index
    %101 = vector.load %arg8[%c2_58, %c0_59, %c0_60] : memref<4x8x1xf32, #tpu.memory_space<vmem>>, vector<1x8x1xf32>
    %102 = vector.shape_cast %101 : vector<1x8x1xf32> to vector<8x1xf32>
    %103 = arith.mulf %97, %102 : vector<8x1xf32>
    %cst_61 = arith.constant dense<0.000000e+00> : vector<8xf32>
    %104 = vector.multi_reduction <add>, %100, %cst_61 [1] : vector<8x16xf32> to vector<8xf32>
    %105 = vector.shape_cast %104 : vector<8xf32> to vector<8x1xf32>
    %106 = arith.addf %103, %105 : vector<8x1xf32>
    %c2_62 = arith.constant 2 : index
    %c0_63 = arith.constant 0 : index
    %c0_64 = arith.constant 0 : index
    %107 = vector.load %arg8[%c2_62, %c0_63, %c0_64] : memref<4x8x1xf32, #tpu.memory_space<vmem>>, vector<1x8x1xf32>
    %108 = vector.shape_cast %107 : vector<1x8x1xf32> to vector<8x1xf32>
    %109 = vector.shape_cast %106 : vector<8x1xf32> to vector<1x8x1xf32>
    tpu.vector_store %arg8[%c2_62, %c0_63, %c0_64], %109 {strides = array<i32>} : memref<4x8x1xf32, #tpu.memory_space<vmem>>, vector<1x8x1xf32>,
    %c2_65 = arith.constant 2 : index
    %c0_66 = arith.constant 0 : index
    %c0_67 = arith.constant 0 : index
    %110 = vector.load %arg9[%c2_65, %c0_66, %c0_67] : memref<4x8x8xf32, #tpu.memory_space<vmem>>, vector<1x8x8xf32>
    %111 = vector.shape_cast %110 : vector<1x8x8xf32> to vector<8x8xf32>
    %112 = vector.broadcast %97 : vector<8x1xf32> to vector<8x8xf32>
    %113 = arith.mulf %112, %111 : vector<8x8xf32>
    %114 = arith.truncf %100 : vector<8x16xf32> to vector<8x16xbf16>
    %cst_68 = arith.constant dense<0.000000e+00> : vector<8x8xf32>
    %115 = tpu.matmul %114, %87, %cst_68 {dimension_numbers = #tpu.dot_dimension_numbers<[1], [0], [0], [1], [0, 0, 1, 1], [], []>} : vector<8x16xbf16>, vector<16x8xbf16>, vector<8x8xf32> -> vector<8x8xf32>
    %116 = arith.addf %113, %115 : vector<8x8xf32>
    %c2_69 = arith.constant 2 : index
    %c0_70 = arith.constant 0 : index
    %c0_71 = arith.constant 0 : index
    %117 = vector.load %arg9[%c2_69, %c0_70, %c0_71] : memref<4x8x8xf32, #tpu.memory_space<vmem>>, vector<1x8x8xf32>
    %118 = vector.shape_cast %117 : vector<1x8x8xf32> to vector<8x8xf32>
    %119 = vector.shape_cast %116 : vector<8x8xf32> to vector<1x8x8xf32>
    tpu.vector_store %arg9[%c2_69, %c0_70, %c0_71], %119 {strides = array<i32>} : memref<4x8x8xf32, #tpu.memory_space<vmem>>, vector<1x8x8xf32>,
    %c2_72 = arith.constant 2 : index
    %c0_73 = arith.constant 0 : index
    %c0_74 = arith.constant 0 : index
    %120 = vector.load %arg7[%c2_72, %c0_73, %c0_74] : memref<4x8x1xf32, #tpu.memory_space<vmem>>, vector<1x8x1xf32>
    %121 = vector.shape_cast %120 : vector<1x8x1xf32> to vector<8x1xf32>
    %122 = vector.shape_cast %95 : vector<8x1xf32> to vector<1x8x1xf32>
    tpu.vector_store %arg7[%c2_72, %c0_73, %c0_74], %122 {strides = array<i32>} : memref<4x8x1xf32, #tpu.memory_space<vmem>>, vector<1x8x1xf32>,
    %123 = vector.extract_strided_slice %4 {offsets = [0, 24], sizes = [8, 8], strides = [1, 1]} : vector<8x32xbf16> to vector<8x8xbf16>
    %124 = vector.extract_strided_slice %6 {offsets = [0, 24], sizes = [16, 8], strides = [1, 1]} : vector<16x32xbf16> to vector<16x8xbf16>
    %125 = vector.extract_strided_slice %8 {offsets = [0, 24], sizes = [16, 8], strides = [1, 1]} : vector<16x32xbf16> to vector<16x8xbf16>
    %cst_75 = arith.constant dense<0.000000e+00> : vector<8x16xf32>
    %126 = tpu.matmul %123, %124, %cst_75 {dimension_numbers = #tpu.dot_dimension_numbers<[1], [1], [0], [0], [0, 0, 1, 0], [], []>} : vector<8x8xbf16>, vector<16x8xbf16>, vector<8x16xf32> -> vector<8x16xf32>
    %cst_76 = arith.constant 0.353553385 : f32
    %127 = vector.broadcast %cst_76 : f32 to vector<8x16xf32>
    %128 = arith.mulf %126, %127 : vector<8x16xf32>
    %c3 = arith.constant 3 : index
    %c0_77 = arith.constant 0 : index
    %c0_78 = arith.constant 0 : index
    %129 = vector.load %arg7[%c3, %c0_77, %c0_78] : memref<4x8x1xf32, #tpu.memory_space<vmem>>, vector<1x8x1xf32>
    %130 = vector.shape_cast %129 : vector<1x8x1xf32> to vector<8x1xf32>
    %cst_79 = arith.constant dense<0xFF800000> : vector<8xf32>
    %131 = vector.multi_reduction <maximumf>, %128, %cst_79 [1] : vector<8x16xf32> to vector<8xf32>
    %132 = vector.shape_cast %131 : vector<8xf32> to vector<8x1xf32>
    %133 = arith.maximumf %130, %132 : vector<8x1xf32>
    %134 = arith.subf %130, %133 : vector<8x1xf32>
    %135 = math.exp %134 : vector<8x1xf32>
    %136 = vector.broadcast %133 : vector<8x1xf32> to vector<8x16xf32>
    %137 = arith.subf %128, %136 : vector<8x16xf32>
    %138 = math.exp %137 : vector<8x16xf32>
    %c3_80 = arith.constant 3 : index
    %c0_81 = arith.constant 0 : index
    %c0_82 = arith.constant 0 : index
    %139 = vector.load %arg8[%c3_80, %c0_81, %c0_82] : memref<4x8x1xf32, #tpu.memory_space<vmem>>, vector<1x8x1xf32>
    %140 = vector.shape_cast %139 : vector<1x8x1xf32> to vector<8x1xf32>
    %141 = arith.mulf %135, %140 : vector<8x1xf32>
    %cst_83 = arith.constant dense<0.000000e+00> : vector<8xf32>
    %142 = vector.multi_reduction <add>, %138, %cst_83 [1] : vector<8x16xf32> to vector<8xf32>
    %143 = vector.shape_cast %142 : vector<8xf32> to vector<8x1xf32>
    %144 = arith.addf %141, %143 : vector<8x1xf32>
    %c3_84 = arith.constant 3 : index
    %c0_85 = arith.constant 0 : index
    %c0_86 = arith.constant 0 : index
    %145 = vector.load %arg8[%c3_84, %c0_85, %c0_86] : memref<4x8x1xf32, #tpu.memory_space<vmem>>, vector<1x8x1xf32>
    %146 = vector.shape_cast %145 : vector<1x8x1xf32> to vector<8x1xf32>
    %147 = vector.shape_cast %144 : vector<8x1xf32> to vector<1x8x1xf32>
    tpu.vector_store %arg8[%c3_84, %c0_85, %c0_86], %147 {strides = array<i32>} : memref<4x8x1xf32, #tpu.memory_space<vmem>>, vector<1x8x1xf32>,
    %c3_87 = arith.constant 3 : index
    %c0_88 = arith.constant 0 : index
    %c0_89 = arith.constant 0 : index
    %148 = vector.load %arg9[%c3_87, %c0_88, %c0_89] : memref<4x8x8xf32, #tpu.memory_space<vmem>>, vector<1x8x8xf32>
    %149 = vector.shape_cast %148 : vector<1x8x8xf32> to vector<8x8xf32>
    %150 = vector.broadcast %135 : vector<8x1xf32> to vector<8x8xf32>
    %151 = arith.mulf %150, %149 : vector<8x8xf32>
    %152 = arith.truncf %138 : vector<8x16xf32> to vector<8x16xbf16>
    %cst_90 = arith.constant dense<0.000000e+00> : vector<8x8xf32>
    %153 = tpu.matmul %152, %125, %cst_90 {dimension_numbers = #tpu.dot_dimension_numbers<[1], [0], [0], [1], [0, 0, 1, 1], [], []>} : vector<8x16xbf16>, vector<16x8xbf16>, vector<8x8xf32> -> vector<8x8xf32>
    %154 = arith.addf %151, %153 : vector<8x8xf32>
    %c3_91 = arith.constant 3 : index
    %c0_92 = arith.constant 0 : index
    %c0_93 = arith.constant 0 : index
    %155 = vector.load %arg9[%c3_91, %c0_92, %c0_93] : memref<4x8x8xf32, #tpu.memory_space<vmem>>, vector<1x8x8xf32>
    %156 = vector.shape_cast %155 : vector<1x8x8xf32> to vector<8x8xf32>
    %157 = vector.shape_cast %154 : vector<8x8xf32> to vector<1x8x8xf32>
    tpu.vector_store %arg9[%c3_91, %c0_92, %c0_93], %157 {strides = array<i32>} : memref<4x8x8xf32, #tpu.memory_space<vmem>>, vector<1x8x8xf32>,
    %c3_94 = arith.constant 3 : index
    %c0_95 = arith.constant 0 : index
    %c0_96 = arith.constant 0 : index
    %158 = vector.load %arg7[%c3_94, %c0_95, %c0_96] : memref<4x8x1xf32, #tpu.memory_space<vmem>>, vector<1x8x1xf32>
    %159 = vector.shape_cast %158 : vector<1x8x1xf32> to vector<8x1xf32>
    %160 = vector.shape_cast %133 : vector<8x1xf32> to vector<1x8x1xf32>
    tpu.vector_store %arg7[%c3_94, %c0_95, %c0_96], %160 {strides = array<i32>} : memref<4x8x1xf32, #tpu.memory_space<vmem>>, vector<1x8x1xf32>,
    %c0_i32_97 = arith.constant 0 : i32
    %161 = arith.cmpi eq, %arg2, %c0_i32_97 : i32
    %162 = arith.extui %161 : i1 to i32
    %c0_i32_98 = arith.constant 0 : i32
    %163 = arith.cmpi ne, %162, %c0_i32_98 : i32
    scf.if %163 {
      %c0_99 = arith.constant 0 : index
      %c0_100 = arith.constant 0 : index
      %c0_101 = arith.constant 0 : index
      %164 = vector.load %arg8[%c0_99, %c0_100, %c0_101] : memref<4x8x1xf32, #tpu.memory_space<vmem>>, vector<1x8x1xf32>
      %165 = vector.shape_cast %164 : vector<1x8x1xf32> to vector<8x1xf32>
      %166 = tpu.reciprocal %165 {approx = true} : vector<8x1xf32> -> vector<8x1xf32>
      %c0_102 = arith.constant 0 : index
      %c0_103 = arith.constant 0 : index
      %c0_104 = arith.constant 0 : index
      %167 = vector.load %arg9[%c0_102, %c0_103, %c0_104] : memref<4x8x8xf32, #tpu.memory_space<vmem>>, vector<1x8x8xf32>
      %168 = vector.shape_cast %167 : vector<1x8x8xf32> to vector<8x8xf32>
      %169 = vector.broadcast %166 : vector<8x1xf32> to vector<8x8xf32>
      %170 = arith.mulf %168, %169 : vector<8x8xf32>
      %171 = arith.truncf %170 : vector<8x8xf32> to vector<8x8xbf16>
      %c0_105 = arith.constant 0 : index
      %c0_106 = arith.constant 0 : index
      %c0_107 = arith.constant 0 : index
      %172 = vector.load %arg6[%c0_105, %c0_106, %c0_107] : memref<1x8x32xbf16, #tpu.memory_space<vmem>>, vector<1x8x8xbf16>
      %173 = vector.shape_cast %172 : vector<1x8x8xbf16> to vector<8x8xbf16>
      %174 = vector.shape_cast %171 : vector<8x8xbf16> to vector<1x8x8xbf16>
      tpu.vector_store %arg6[%c0_105, %c0_106, %c0_107], %174 {strides = array<i32>} : memref<1x8x32xbf16, #tpu.memory_space<vmem>>, vector<1x8x8xbf16>,
      %c1_108 = arith.constant 1 : index
      %c0_109 = arith.constant 0 : index
      %c0_110 = arith.constant 0 : index
      %175 = vector.load %arg8[%c1_108, %c0_109, %c0_110] : memref<4x8x1xf32, #tpu.memory_space<vmem>>, vector<1x8x1xf32>
      %176 = vector.shape_cast %175 : vector<1x8x1xf32> to vector<8x1xf32>
      %177 = tpu.reciprocal %176 {approx = true} : vector<8x1xf32> -> vector<8x1xf32>
      %c1_111 = arith.constant 1 : index
      %c0_112 = arith.constant 0 : index
      %c0_113 = arith.constant 0 : index
      %178 = vector.load %arg9[%c1_111, %c0_112, %c0_113] : memref<4x8x8xf32, #tpu.memory_space<vmem>>, vector<1x8x8xf32>
      %179 = vector.shape_cast %178 : vector<1x8x8xf32> to vector<8x8xf32>
      %180 = vector.broadcast %177 : vector<8x1xf32> to vector<8x8xf32>
      %181 = arith.mulf %179, %180 : vector<8x8xf32>
      %182 = arith.truncf %181 : vector<8x8xf32> to vector<8x8xbf16>
      %c0_114 = arith.constant 0 : index
      %c0_115 = arith.constant 0 : index
      %c8 = arith.constant 8 : index
      %183 = vector.load %arg6[%c0_114, %c0_115, %c8] : memref<1x8x32xbf16, #tpu.memory_space<vmem>>, vector<1x8x8xbf16>
      %184 = vector.shape_cast %183 : vector<1x8x8xbf16> to vector<8x8xbf16>
      %185 = vector.shape_cast %182 : vector<8x8xbf16> to vector<1x8x8xbf16>
      tpu.vector_store %arg6[%c0_114, %c0_115, %c8], %185 {strides = array<i32>} : memref<1x8x32xbf16, #tpu.memory_space<vmem>>, vector<1x8x8xbf16>,
      %c2_116 = arith.constant 2 : index
      %c0_117 = arith.constant 0 : index
      %c0_118 = arith.constant 0 : index
      %186 = vector.load %arg8[%c2_116, %c0_117, %c0_118] : memref<4x8x1xf32, #tpu.memory_space<vmem>>, vector<1x8x1xf32>
      %187 = vector.shape_cast %186 : vector<1x8x1xf32> to vector<8x1xf32>
      %188 = tpu.reciprocal %187 {approx = true} : vector<8x1xf32> -> vector<8x1xf32>
      %c2_119 = arith.constant 2 : index
      %c0_120 = arith.constant 0 : index
      %c0_121 = arith.constant 0 : index
      %189 = vector.load %arg9[%c2_119, %c0_120, %c0_121] : memref<4x8x8xf32, #tpu.memory_space<vmem>>, vector<1x8x8xf32>
      %190 = vector.shape_cast %189 : vector<1x8x8xf32> to vector<8x8xf32>
      %191 = vector.broadcast %188 : vector<8x1xf32> to vector<8x8xf32>
      %192 = arith.mulf %190, %191 : vector<8x8xf32>
      %193 = arith.truncf %192 : vector<8x8xf32> to vector<8x8xbf16>
      %c0_122 = arith.constant 0 : index
      %c0_123 = arith.constant 0 : index
      %c16 = arith.constant 16 : index
      %194 = vector.load %arg6[%c0_122, %c0_123, %c16] : memref<1x8x32xbf16, #tpu.memory_space<vmem>>, vector<1x8x8xbf16>
      %195 = vector.shape_cast %194 : vector<1x8x8xbf16> to vector<8x8xbf16>
      %196 = vector.shape_cast %193 : vector<8x8xbf16> to vector<1x8x8xbf16>
      tpu.vector_store %arg6[%c0_122, %c0_123, %c16], %196 {strides = array<i32>} : memref<1x8x32xbf16, #tpu.memory_space<vmem>>, vector<1x8x8xbf16>,
      %c3_124 = arith.constant 3 : index
      %c0_125 = arith.constant 0 : index
      %c0_126 = arith.constant 0 : index
      %197 = vector.load %arg8[%c3_124, %c0_125, %c0_126] : memref<4x8x1xf32, #tpu.memory_space<vmem>>, vector<1x8x1xf32>
      %198 = vector.shape_cast %197 : vector<1x8x1xf32> to vector<8x1xf32>
      %199 = tpu.reciprocal %198 {approx = true} : vector<8x1xf32> -> vector<8x1xf32>
      %c3_127 = arith.constant 3 : index
      %c0_128 = arith.constant 0 : index
      %c0_129 = arith.constant 0 : index
      %200 = vector.load %arg9[%c3_127, %c0_128, %c0_129] : memref<4x8x8xf32, #tpu.memory_space<vmem>>, vector<1x8x8xf32>
      %201 = vector.shape_cast %200 : vector<1x8x8xf32> to vector<8x8xf32>
      %202 = vector.broadcast %199 : vector<8x1xf32> to vector<8x8xf32>
      %203 = arith.mulf %201, %202 : vector<8x8xf32>
      %204 = arith.truncf %203 : vector<8x8xf32> to vector<8x8xbf16>
      %c0_130 = arith.constant 0 : index
      %c0_131 = arith.constant 0 : index
      %c24 = arith.constant 24 : index
      %205 = vector.load %arg6[%c0_130, %c0_131, %c24] : memref<1x8x32xbf16, #tpu.memory_space<vmem>>, vector<1x8x8xbf16>
      %206 = vector.shape_cast %205 : vector<1x8x8xbf16> to vector<8x8xbf16>
      %207 = vector.shape_cast %204 : vector<8x8xbf16> to vector<1x8x8xbf16>
      tpu.vector_store %arg6[%c0_130, %c0_131, %c24], %207 {strides = array<i32>} : memref<1x8x32xbf16, #tpu.memory_space<vmem>>, vector<1x8x8xbf16>,
    } else {
    }
    return
  }
  func.func @transform_0(%arg0: i32, %arg1: i32, %arg2: i32) -> (i32, i32, i32) {
    %c0_i32 = arith.constant 0 : i32
    %c0_i32_0 = arith.constant 0 : i32
    return %arg0, %c0_i32, %arg1 : i32, i32, i32
  }
  func.func @transform_1(%arg0: i32, %arg1: i32, %arg2: i32) -> (i32, i32, i32) {
    %c0_i32 = arith.constant 0 : i32
    return %arg0, %arg2, %arg1 : i32, i32, i32
  }
  func.func @transform_2(%arg0: i32, %arg1: i32, %arg2: i32) -> (i32, i32, i32) {
    %c0_i32 = arith.constant 0 : i32
    return %arg0, %arg2, %arg1 : i32, i32, i32
  }
  func.func @transform_3(%arg0: i32, %arg1: i32, %arg2: i32) -> (i32, i32, i32) {
    %c0_i32 = arith.constant 0 : i32
    %c0_i32_0 = arith.constant 0 : i32
    return %arg0, %c0_i32, %arg1 : i32, i32, i32
  }
}

module attributes {stable_mosaic.version = 11 : i64} {
  func.func @kernel(%arg0: i32, %arg1: i32, %arg2: i32, %arg3: memref<16x128xbf16, #tpu.memory_space<vmem>>, %arg4: memref<512x128xbf16, #tpu.memory_space<vmem>>, %arg5: memref<16x512xf32, #tpu.memory_space<vmem>>, %arg6: memref<16x512xf32, #tpu.memory_space<vmem>>) attributes {dimension_semantics = [#tpu.dimension_semantics<parallel>, #tpu.dimension_semantics<parallel>, #tpu.dimension_semantics<arbitrary>], iteration_bounds = array<i64: 1, 1, 1>, scalar_prefetch = 0 : i64, scratch_operands = 1 : i64, tpu.core_type = #tpu.core_type<tc>, window_params = [{transform_indices = @transform_0, window_bounds = array<i64: 16, 128>}, {transform_indices = @transform_1, window_bounds = array<i64: 512, 128>}, {transform_indices = @transform_2, window_bounds = array<i64: 16, 512>}]} {
    %c0_i32 = arith.constant 0 : i32
    %0 = arith.cmpi eq, %arg2, %c0_i32 : i32
    %1 = arith.extui %0 : i1 to i32
    %c0_i32_0 = arith.constant 0 : i32
    %2 = arith.cmpi ne, %1, %c0_i32_0 : i32
    scf.if %2 {
      %cst_10 = arith.constant 0.000000e+00 : f32
      %12 = vector.broadcast %cst_10 : f32 to vector<16x512xf32>
      %c0_11 = arith.constant 0 : index
      %c0_12 = arith.constant 0 : index
      %13 = vector.load %arg6[%c0_11, %c0_12] : memref<16x512xf32, #tpu.memory_space<vmem>>, vector<16x512xf32>
      tpu.vector_store %arg6[%c0_11, %c0_12], %12 {strides = array<i32>} : memref<16x512xf32, #tpu.memory_space<vmem>>, vector<16x512xf32>,
    } else {
    }
    %c0 = arith.constant 0 : index
    %c0_1 = arith.constant 0 : index
    %3 = vector.load %arg3[%c0, %c0_1] : memref<16x128xbf16, #tpu.memory_space<vmem>>, vector<16x128xbf16>
    %c0_2 = arith.constant 0 : index
    %c0_3 = arith.constant 0 : index
    %4 = vector.load %arg4[%c0_2, %c0_3] : memref<512x128xbf16, #tpu.memory_space<vmem>>, vector<512x128xbf16>
    %c0_4 = arith.constant 0 : index
    %c0_5 = arith.constant 0 : index
    %5 = vector.load %arg6[%c0_4, %c0_5] : memref<16x512xf32, #tpu.memory_space<vmem>>, vector<16x512xf32>
    %cst = arith.constant dense<0.000000e+00> : vector<16x512xf32>
    %6 = tpu.matmul %3, %4, %cst {dimension_numbers = #tpu.dot_dimension_numbers<[1], [1], [0], [0], [0, 0, 1, 0], [], []>} : vector<16x128xbf16>, vector<512x128xbf16>, vector<16x512xf32> -> vector<16x512xf32>
    %7 = arith.addf %5, %6 : vector<16x512xf32>
    %c0_6 = arith.constant 0 : index
    %c0_7 = arith.constant 0 : index
    %8 = vector.load %arg6[%c0_6, %c0_7] : memref<16x512xf32, #tpu.memory_space<vmem>>, vector<16x512xf32>
    tpu.vector_store %arg6[%c0_6, %c0_7], %7 {strides = array<i32>} : memref<16x512xf32, #tpu.memory_space<vmem>>, vector<16x512xf32>,
    %c0_i32_8 = arith.constant 0 : i32
    %9 = arith.cmpi eq, %arg2, %c0_i32_8 : i32
    %10 = arith.extui %9 : i1 to i32
    %c0_i32_9 = arith.constant 0 : i32
    %11 = arith.cmpi ne, %10, %c0_i32_9 : i32
    scf.if %11 {
      %c0_10 = arith.constant 0 : index
      %c0_11 = arith.constant 0 : index
      %12 = vector.load %arg6[%c0_10, %c0_11] : memref<16x512xf32, #tpu.memory_space<vmem>>, vector<16x512xf32>
      %c0_12 = arith.constant 0 : index
      %c0_13 = arith.constant 0 : index
      %13 = vector.load %arg5[%c0_12, %c0_13] : memref<16x512xf32, #tpu.memory_space<vmem>>, vector<16x512xf32>
      tpu.vector_store %arg5[%c0_12, %c0_13], %12 {strides = array<i32>} : memref<16x512xf32, #tpu.memory_space<vmem>>, vector<16x512xf32>,
    } else {
    }
    return
  }
  func.func @transform_0(%arg0: i32, %arg1: i32, %arg2: i32) -> (i32, i32) {
    %c0_i32 = arith.constant 0 : i32
    return %arg0, %arg2 : i32, i32
  }
  func.func @transform_1(%arg0: i32, %arg1: i32, %arg2: i32) -> (i32, i32) {
    %c0_i32 = arith.constant 0 : i32
    return %arg1, %arg2 : i32, i32
  }
  func.func @transform_2(%arg0: i32, %arg1: i32, %arg2: i32) -> (i32, i32) {
    %c0_i32 = arith.constant 0 : i32
    return %arg0, %arg1 : i32, i32
  }
}

</mosaic_0001>

<llo_original>
// kernel: text_decoder_forward.26
$region0: #{text_decoder_forward.26}
  #allocation0 [shape = 'u32[]', space=smem, size = 0x4, offset = 0x4, fixed_abs, tag = 'smem constant byte address 0x4 - core index']
  #allocation1 [shape = 'u32[144,128]{1,0:T(1,128)}', space=vmem, size = 0x12000, scoped, tag = 'internal scratch']
  %s0 = inlined_call_operand.vmem [shape: f32[16,32], index: 0, kind: input, shape index: {}]
  %s1 = inlined_call_operand.vmem [shape: f32[1,32], index: 1, kind: input, shape index: {}]
  %s2 = inlined_call_operand.vmem [shape: f32[1,32], index: 2, kind: input, shape index: {}]
  %s3 = inlined_call_operand.vmem [shape: bf16[16,32], index: 3, kind: output, shape index: {}]
  %s4 = sld [smem:[#allocation0]]
  $region22: #{text_decoder_forward.26} parent=0
    _
  %s6 = ssub.s32 1, %s4
  %s7 = scalar_select 0, %s6, %s4
  // Predicated region
  $region2: #{text_decoder_forward.26} parent=0 // pred_check
    _
  $region3: #{text_decoder_forward.26} parent=0 // pred_check_branch
    %9 = sbr.rel (0) target = $region5
  $region4: #{text_decoder_forward.26} parent=0 // pred_region
    _
  $region5: #{text_decoder_forward.26} parent=0 // pred_fallthru
    _
  // Predicated region
  $region6: #{text_decoder_forward.26} parent=0 // pred_check
    _
  $region7: #{text_decoder_forward.26} parent=0 // pred_check_branch
    %11 = sbr.rel (0) target = $region9
  $region8: #{text_decoder_forward.26} parent=0 // pred_region
    _
  $region9: #{text_decoder_forward.26} parent=0 // pred_fallthru
    _
  // Predicated region
  $region10: #{text_decoder_forward.26} parent=0 // pred_check
    _
  $region11: #{text_decoder_forward.26} parent=0 // pred_check_branch
    %13 = sbr.rel (0) target = $region13
  $region12: #{text_decoder_forward.26} parent=0 // pred_region
    _
  $region13: #{text_decoder_forward.26} parent=0 // pred_fallthru
    _
  %v14 = vld [vmem:[%s0] sm:$0xff]
  %v15 = vld [vmem:[%s0 + $0x8] sm:$0xff]
  %vm16 = vcmask 261120
  %v17 = vsel %vm16, %v14, 0.0
  %18 = vadd.xlane.f32.xlu0 %v17
  %v19 = vpop.xlane.xlu0 %18
  %v20 = vsel %vm16, %v15, 0.0
  %21 = vadd.xlane.f32.xlu0 %v20
  %v22 = vpop.xlane.xlu0 %21
  %v23 = vrcp.pop 32.0
  %v24 = vmul.f32 %v19, %v23
  %v25 = vmul.f32 %v22, %v23
  %v26 = vsub.f32 %v14, %v24
  %v27 = vsub.f32 %v15, %v25
  %v28 = vmul.f32 %v26, %v26
  %v29 = vmul.f32 %v27, %v27
  %v30 = vsel %vm16, %v28, 0.0
  %31 = vadd.xlane.f32.xlu0 %v30
  %v32 = vpop.xlane.xlu0 %31
  %v33 = vsel %vm16, %v29, 0.0
  %34 = vadd.xlane.f32.xlu0 %v33
  %v35 = vpop.xlane.xlu0 %34
  %v36 = vmul.f32 %v32, %v23
  %v37 = vmul.f32 %v35, %v23
  %v38 = vadd.f32 %v36, 1e-05
  %v39 = vadd.f32 %v37, 1e-05
  %v40 = vrsqrt.pop %v38
  %v41 = vrsqrt.pop %v39
  %v42 = vmul.f32 %v26, %v40
  %v43 = vmul.f32 %v27, %v41
  %v44 = vld [vmem:[%s1] sm:$0x1]
  %v46 = vlaneseq
  %v47 = vshrl.u32 %v46, 7
  %v48 = vsub.s32 0, %v47
  %v49 = vrot.slane %v44, %v48
  %v51 = vmul.f32 %v42, %v49
  %v52 = vmul.f32 %v43, %v49
  %v53 = vld [vmem:[%s2] sm:$0x1]
  %v55 = vlaneseq
  %v56 = vshrl.u32 %v55, 7
  %v57 = vsub.s32 0, %v56
  %v58 = vrot.slane %v53, %v57
  %v60 = vadd.f32 %v51, %v58
  %v61 = vadd.f32 %v52, %v58
  %v62 = vpack.c.bf16 %v61, %v60
  %v64 = vunpack.c.l.b16 %v62
  %v65 = vunpack.c.h.b16 %v62
  %v66 = vpack.c.b16 %v64, %v64
  %v67 = vpack.c.b16 %v65, %v65
  %vm70 = vcmask 257024
  %71 = vst.msk [vmem:[%s3] sm:$0xf] %vm70, %v66
  %72 = vst.msk [vmem:[%s3 + $0x4] sm:$0xf] %vm70, %v67
  // Predicated region
  $region14: #{text_decoder_forward.26} parent=0 // pred_check
    _
  $region15: #{text_decoder_forward.26} parent=0 // pred_check_branch
    %74 = sbr.rel (0) target = $region17
  $region16: #{text_decoder_forward.26} parent=0 // pred_region
    _
  $region17: #{text_decoder_forward.26} parent=0 // pred_fallthru
    _
  // Predicated region
  $region18: #{text_decoder_forward.26} parent=0 // pred_check
    _
  $region19: #{text_decoder_forward.26} parent=0 // pred_check_branch
    %76 = sbr.rel (0) target = $region21
  $region20: #{text_decoder_forward.26} parent=0 // pred_region
    _
  $region21: #{text_decoder_forward.26} parent=0 // pred_fallthru
    _

// kernel: text_decoder_forward.27
$region0: #{text_decoder_forward.27}
  #allocation0 [shape = 'u32[]', space=smem, size = 0x4, offset = 0x4, fixed_abs, tag = 'smem constant byte address 0x4 - core index']
  #allocation1 [shape = 'u32[144,128]{1,0:T(1,128)}', space=vmem, size = 0x12000, scoped, tag = 'internal scratch']
  #allocation2 [shape = 'f32[16,128]{1,0:T(8,128)}', space=vmem, size = 0x2000, scoped, tag = 'scratch operand']
  %s0 = inlined_call_operand.vmem [shape: bf16[16,128], index: 0, kind: input, shape index: {}]
  %s1 = inlined_call_operand.vmem [shape: bf16[128,128], index: 1, kind: input, shape index: {}]
  %s2 = inlined_call_operand.vmem [shape: f32[1,128], index: 2, kind: input, shape index: {}]
  %s3 = inlined_call_operand.vmem [shape: bf16[16,128], index: 3, kind: output, shape index: {}]
  %s4 = sld [smem:[#allocation0]]
  $region30: #{text_decoder_forward.27} parent=0
    _
  %s6 = ssub.s32 1, %s4
  %s7 = scalar_select 0, %s6, %s4
  // Predicated region
  $region2: #{text_decoder_forward.27} parent=0 // pred_check
    _
  $region3: #{text_decoder_forward.27} parent=0 // pred_check_branch
    %9 = sbr.rel (0) target = $region5
  $region4: #{text_decoder_forward.27} parent=0 // pred_region
    _
  $region5: #{text_decoder_forward.27} parent=0 // pred_fallthru
    _
  // Predicated region
  $region6: #{text_decoder_forward.27} parent=0 // pred_check
    _
  $region7: #{text_decoder_forward.27} parent=0 // pred_check_branch
    %11 = sbr.rel (0) target = $region9
  $region8: #{text_decoder_forward.27} parent=0 // pred_region
    _
  $region9: #{text_decoder_forward.27} parent=0 // pred_fallthru
    _
  // Predicated region
  $region10: #{text_decoder_forward.27} parent=0 // pred_check
    _
  $region11: #{text_decoder_forward.27} parent=0 // pred_check_branch
    %13 = sbr.rel (0) target = $region13
  $region12: #{text_decoder_forward.27} parent=0 // pred_region
    _
  $region13: #{text_decoder_forward.27} parent=0 // pred_fallthru
    _
  %p15 = scmp.eq.s32.totalorder 0, 0
  // Predicated region
  $region14: #{text_decoder_forward.27} parent=0 // pred_check
    %p16 = pneg %p15
  $region15: #{text_decoder_forward.27} parent=0 // pred_check_branch
    %18 = sbr.rel (%p16) target = $region17
  $region16: #{text_decoder_forward.27} parent=0 // pred_region
    %19 = vst [vmem:[#allocation2] sm:$0xff] 0.0
    %20 = vst [vmem:[#allocation2 + $0x8] sm:$0xff] 0.0
  $region17: #{text_decoder_forward.27} parent=0 // pred_fallthru
    _
  %v21 = vld [vmem:[%s0] sm:$0xf]
  %v22 = vld [vmem:[%s0 + $0x4] sm:$0xf]
  %v23 = vld [vmem:[%s1] sm:$0xf]
  %v24 = vld [vmem:[%s1 + $0x4] sm:$0xf]
  %v25 = vld [vmem:[%s1 + $0x8] sm:$0xf]
  %v26 = vld [vmem:[%s1 + $0xc] sm:$0xf]
  %v27 = vld [vmem:[%s1 + $0x10] sm:$0xf]
  %v28 = vld [vmem:[%s1 + $0x14] sm:$0xf]
  %v29 = vld [vmem:[%s1 + $0x18] sm:$0xf]
  %v30 = vld [vmem:[%s1 + $0x1c] sm:$0xf]
  %v31 = vld [vmem:[%s1 + $0x20] sm:$0xf]
  %v32 = vld [vmem:[%s1 + $0x24] sm:$0xf]
  %v33 = vld [vmem:[%s1 + $0x28] sm:$0xf]
  %v34 = vld [vmem:[%s1 + $0x2c] sm:$0xf]
  %v35 = vld [vmem:[%s1 + $0x30] sm:$0xf]
  %v36 = vld [vmem:[%s1 + $0x34] sm:$0xf]
  %v37 = vld [vmem:[%s1 + $0x38] sm:$0xf]
  %v38 = vld [vmem:[%s1 + $0x3c] sm:$0xf]
  %v39 = vld [vmem:[#allocation2] sm:$0xff]
  %v40 = vld [vmem:[#allocation2 + $0x8] sm:$0xff]
  %v43 = vunpack.c.l.b16 %v21
  %v44 = vunpack.c.l.b16 %v22
  %v45 = vpack.c.b16 %v44, %v43
  %v63 = vunpack.c.l.b16 %v23
  %v64 = vunpack.c.l.b16 %v24
  %v65 = vunpack.c.l.b16 %v25
  %v66 = vunpack.c.l.b16 %v26
  %v67 = vunpack.c.l.b16 %v27
  %v68 = vunpack.c.l.b16 %v28
  %v69 = vunpack.c.l.b16 %v29
  %v70 = vunpack.c.l.b16 %v30
  %v71 = vunpack.c.l.b16 %v31
  %v72 = vunpack.c.l.b16 %v32
  %v73 = vunpack.c.l.b16 %v33
  %v74 = vunpack.c.l.b16 %v34
  %v75 = vunpack.c.l.b16 %v35
  %v76 = vunpack.c.l.b16 %v36
  %v77 = vunpack.c.l.b16 %v37
  %v78 = vunpack.c.l.b16 %v38
  %v79 = vpack.c.b16 %v64, %v63
  %v80 = vpack.c.b16 %v66, %v65
  %v81 = vpack.c.b16 %v68, %v67
  %v82 = vpack.c.b16 %v70, %v69
  %v83 = vpack.c.b16 %v72, %v71
  %v84 = vpack.c.b16 %v74, %v73
  %v85 = vpack.c.b16 %v76, %v75
  %v86 = vpack.c.b16 %v78, %v77
  %95 = vmatprep.subr.bf16.mxu0 0
  %96 = vmatpush1.bf16.msra.mxu0 %v86
  %97 = vmatprep.subr.bf16.mxu0 0
  %98 = vmatpush1.bf16.msra.mxu0 %v85
  %99 = vmatprep.subr.bf16.mxu0 0
  %100 = vmatpush1.bf16.msra.mxu0 %v84
  %101 = vmatprep.subr.bf16.mxu0 0
  %102 = vmatpush1.bf16.msra.mxu0 %v83
  %103 = vmatprep.subr.bf16.mxu0 0
  %104 = vmatpush1.bf16.msra.mxu0 %v82
  %105 = vmatprep.subr.bf16.mxu0 0
  %106 = vmatpush1.bf16.msra.mxu0 %v81
  %107 = vmatprep.subr.bf16.mxu0 0
  %108 = vmatpush1.bf16.msra.mxu0 %v80
  %109 = vmatprep.subr.bf16.mxu0 0
  %110 = vmatpush1.bf16.msra.mxu0 %v79
  %111 = vmatprep.subr.bf16.mxu0 0
  %112 = vmatpush2.bf16.msra.mxu0 0
  %113 = vmatprep.subr.bf16.mxu0 0
  %114 = vmatpush2.bf16.msra.mxu0 0
  %115 = vmatprep.subr.bf16.mxu0 0
  %116 = vmatpush2.bf16.msra.mxu0 0
  %117 = vmatprep.subr.bf16.mxu0 0
  %118 = vmatpush2.bf16.msra.mxu0 0
  %119 = vmatprep.subr.bf16.mxu0 0
  %120 = vmatpush2.bf16.msra.mxu0 0
  %121 = vmatprep.subr.bf16.mxu0 0
  %122 = vmatpush2.bf16.msra.mxu0 0
  %123 = vmatprep.subr.bf16.mxu0 0
  %124 = vmatpush2.bf16.msra.mxu0 0
  %125 = vmatprep.subr.bf16.mxu0 0
  %126 = vmatpush2.bf16.msra.mxu0 0
  %127 = vmatprep.mubr.bf16.mxu0 0
  %128 = vmatmul.mubr.bf16.gmra.mxu0 %v45
  %v129 = vpop.f32.mrf.mxu0
  %v130 = vadd.f32 0.0, %v129
  %v131 = vpop.f32.mrf.mxu0
  %v132 = vpop.f32.mrf.mxu0
  %v133 = vadd.f32 0.0, %v132
  %v134 = vpop.f32.mrf.mxu0
  %135 = vdwg.mxu0
  %v136 = vadd.f32 %v39, %v130
  %v137 = vadd.f32 %v40, %v133
  %138 = vst [vmem:[#allocation2] sm:$0xff] %v136
  %139 = vst [vmem:[#allocation2 + $0x8] sm:$0xff] %v137
  // Predicated region
  $region18: #{text_decoder_forward.27} parent=0 // pred_check
    %p140 = pneg %p15
  $region19: #{text_decoder_forward.27} parent=0 // pred_check_branch
    %142 = sbr.rel (%p140) target = $region21
  $region20: #{text_decoder_forward.27} parent=0 // pred_region
    %v143 = vld [vmem:[#allocation2] sm:$0xff]
    %v144 = vld [vmem:[#allocation2 + $0x8] sm:$0xff]
    %v145 = vld [vmem:[%s2] sm:$0x1]
    %v147 = vlaneseq
    %v148 = vshrl.u32 %v147, 7
    %v149 = vsub.s32 0, %v148
    %v150 = vrot.slane %v145, %v149
    %v152 = vadd.f32 %v143, %v150
    %v153 = vadd.f32 %v144, %v150
    %v154 = vpack.c.bf16 %v153, %v152
    %v156 = vunpack.c.l.b16 %v154
    %v157 = vunpack.c.h.b16 %v154
    %v158 = vpack.c.b16 %v156, %v156
    %v159 = vpack.c.b16 %v157, %v157
    %162 = vst [vmem:[%s3] sm:$0xf] %v158
    %163 = vst [vmem:[%s3 + $0x4] sm:$0xf] %v159
  $region21: #{text_decoder_forward.27} parent=0 // pred_fallthru
    _
  // Predicated region
  $region22: #{text_decoder_forward.27} parent=0 // pred_check
    _
  $region23: #{text_decoder_forward.27} parent=0 // pred_check_branch
    %165 = sbr.rel (0) target = $region25
  $region24: #{text_decoder_forward.27} parent=0 // pred_region
    _
  $region25: #{text_decoder_forward.27} parent=0 // pred_fallthru
    _
  // Predicated region
  $region26: #{text_decoder_forward.27} parent=0 // pred_check
    _
  $region27: #{text_decoder_forward.27} parent=0 // pred_check_branch
    %167 = sbr.rel (0) target = $region29
  $region28: #{text_decoder_forward.27} parent=0 // pred_region
    _
  $region29: #{text_decoder_forward.27} parent=0 // pred_fallthru
    _

// kernel: text_decoder_forward.29
$region0: #{text_decoder_forward.29}
  #allocation0 [shape = 'u32[]', space=smem, size = 0x4, offset = 0x4, fixed_abs, tag = 'smem constant byte address 0x4 - core index']
  #allocation1 [shape = 'u32[144,128]{1,0:T(1,128)}', space=vmem, size = 0x12000, scoped, tag = 'internal scratch']
  #allocation2 [shape = 'f32[16,128]{1,0:T(8,128)}', space=vmem, size = 0x2000, scoped, tag = 'scratch operand']
  %s0 = inlined_call_operand.vmem [shape: bf16[16,128], index: 0, kind: input, shape index: {}]
  %s1 = inlined_call_operand.vmem [shape: bf16[128,128], index: 1, kind: input, shape index: {}]
  %s2 = inlined_call_operand.vmem [shape: f32[1,128], index: 2, kind: input, shape index: {}]
  %s3 = inlined_call_operand.vmem [shape: f32[16,128], index: 3, kind: input, shape index: {}]
  %s4 = inlined_call_operand.vmem [shape: f32[16,128], index: 4, kind: output, shape index: {}]
  %s5 = sld [smem:[#allocation0]]
  $region34: #{text_decoder_forward.29} parent=0
    _
  %s7 = ssub.s32 1, %s5
  %s8 = scalar_select 0, %s7, %s5
  // Predicated region
  $region2: #{text_decoder_forward.29} parent=0 // pred_check
    _
  $region3: #{text_decoder_forward.29} parent=0 // pred_check_branch
    %10 = sbr.rel (0) target = $region5
  $region4: #{text_decoder_forward.29} parent=0 // pred_region
    _
  $region5: #{text_decoder_forward.29} parent=0 // pred_fallthru
    _
  // Predicated region
  $region6: #{text_decoder_forward.29} parent=0 // pred_check
    _
  $region7: #{text_decoder_forward.29} parent=0 // pred_check_branch
    %12 = sbr.rel (0) target = $region9
  $region8: #{text_decoder_forward.29} parent=0 // pred_region
    _
  $region9: #{text_decoder_forward.29} parent=0 // pred_fallthru
    _
  // Predicated region
  $region10: #{text_decoder_forward.29} parent=0 // pred_check
    _
  $region11: #{text_decoder_forward.29} parent=0 // pred_check_branch
    %14 = sbr.rel (0) target = $region13
  $region12: #{text_decoder_forward.29} parent=0 // pred_region
    _
  $region13: #{text_decoder_forward.29} parent=0 // pred_fallthru
    _
  // Predicated region
  $region14: #{text_decoder_forward.29} parent=0 // pred_check
    _
  $region15: #{text_decoder_forward.29} parent=0 // pred_check_branch
    %16 = sbr.rel (0) target = $region17
  $region16: #{text_decoder_forward.29} parent=0 // pred_region
    _
  $region17: #{text_decoder_forward.29} parent=0 // pred_fallthru
    _
  %p18 = scmp.eq.s32.totalorder 0, 0
  // Predicated region
  $region18: #{text_decoder_forward.29} parent=0 // pred_check
    %p19 = pneg %p18
  $region19: #{text_decoder_forward.29} parent=0 // pred_check_branch
    %21 = sbr.rel (%p19) target = $region21
  $region20: #{text_decoder_forward.29} parent=0 // pred_region
    %22 = vst [vmem:[#allocation2] sm:$0xff] 0.0
    %23 = vst [vmem:[#allocation2 + $0x8] sm:$0xff] 0.0
  $region21: #{text_decoder_forward.29} parent=0 // pred_fallthru
    _
  %v24 = vld [vmem:[%s0] sm:$0xf]
  %v25 = vld [vmem:[%s0 + $0x4] sm:$0xf]
  %v26 = vld [vmem:[%s1] sm:$0xf]
  %v27 = vld [vmem:[%s1 + $0x4] sm:$0xf]
  %v28 = vld [vmem:[%s1 + $0x8] sm:$0xf]
  %v29 = vld [vmem:[%s1 + $0xc] sm:$0xf]
  %v30 = vld [vmem:[%s1 + $0x10] sm:$0xf]
  %v31 = vld [vmem:[%s1 + $0x14] sm:$0xf]
  %v32 = vld [vmem:[%s1 + $0x18] sm:$0xf]
  %v33 = vld [vmem:[%s1 + $0x1c] sm:$0xf]
  %v34 = vld [vmem:[%s1 + $0x20] sm:$0xf]
  %v35 = vld [vmem:[%s1 + $0x24] sm:$0xf]
  %v36 = vld [vmem:[%s1 + $0x28] sm:$0xf]
  %v37 = vld [vmem:[%s1 + $0x2c] sm:$0xf]
  %v38 = vld [vmem:[%s1 + $0x30] sm:$0xf]
  %v39 = vld [vmem:[%s1 + $0x34] sm:$0xf]
  %v40 = vld [vmem:[%s1 + $0x38] sm:$0xf]
  %v41 = vld [vmem:[%s1 + $0x3c] sm:$0xf]
  %v42 = vld [vmem:[#allocation2] sm:$0xff]
  %v43 = vld [vmem:[#allocation2 + $0x8] sm:$0xff]
  %v46 = vunpack.c.l.b16 %v24
  %v47 = vunpack.c.l.b16 %v25
  %v48 = vpack.c.b16 %v47, %v46
  %v66 = vunpack.c.l.b16 %v26
  %v67 = vunpack.c.l.b16 %v27
  %v68 = vunpack.c.l.b16 %v28
  %v69 = vunpack.c.l.b16 %v29
  %v70 = vunpack.c.l.b16 %v30
  %v71 = vunpack.c.l.b16 %v31
  %v72 = vunpack.c.l.b16 %v32
  %v73 = vunpack.c.l.b16 %v33
  %v74 = vunpack.c.l.b16 %v34
  %v75 = vunpack.c.l.b16 %v35
  %v76 = vunpack.c.l.b16 %v36
  %v77 = vunpack.c.l.b16 %v37
  %v78 = vunpack.c.l.b16 %v38
  %v79 = vunpack.c.l.b16 %v39
  %v80 = vunpack.c.l.b16 %v40
  %v81 = vunpack.c.l.b16 %v41
  %v82 = vpack.c.b16 %v67, %v66
  %v83 = vpack.c.b16 %v69, %v68
  %v84 = vpack.c.b16 %v71, %v70
  %v85 = vpack.c.b16 %v73, %v72
  %v86 = vpack.c.b16 %v75, %v74
  %v87 = vpack.c.b16 %v77, %v76
  %v88 = vpack.c.b16 %v79, %v78
  %v89 = vpack.c.b16 %v81, %v80
  %98 = vmatprep.subr.bf16.mxu0 0
  %99 = vmatpush1.bf16.msra.mxu0 %v89
  %100 = vmatprep.subr.bf16.mxu0 0
  %101 = vmatpush1.bf16.msra.mxu0 %v88
  %102 = vmatprep.subr.bf16.mxu0 0
  %103 = vmatpush1.bf16.msra.mxu0 %v87
  %104 = vmatprep.subr.bf16.mxu0 0
  %105 = vmatpush1.bf16.msra.mxu0 %v86
  %106 = vmatprep.subr.bf16.mxu0 0
  %107 = vmatpush1.bf16.msra.mxu0 %v85
  %108 = vmatprep.subr.bf16.mxu0 0
  %109 = vmatpush1.bf16.msra.mxu0 %v84
  %110 = vmatprep.subr.bf16.mxu0 0
  %111 = vmatpush1.bf16.msra.mxu0 %v83
  %112 = vmatprep.subr.bf16.mxu0 0
  %113 = vmatpush1.bf16.msra.mxu0 %v82
  %114 = vmatprep.subr.bf16.mxu0 0
  %115 = vmatpush2.bf16.msra.mxu0 0
  %116 = vmatprep.subr.bf16.mxu0 0
  %117 = vmatpush2.bf16.msra.mxu0 0
  %118 = vmatprep.subr.bf16.mxu0 0
  %119 = vmatpush2.bf16.msra.mxu0 0
  %120 = vmatprep.subr.bf16.mxu0 0
  %121 = vmatpush2.bf16.msra.mxu0 0
  %122 = vmatprep.subr.bf16.mxu0 0
  %123 = vmatpush2.bf16.msra.mxu0 0
  %124 = vmatprep.subr.bf16.mxu0 0
  %125 = vmatpush2.bf16.msra.mxu0 0
  %126 = vmatprep.subr.bf16.mxu0 0
  %127 = vmatpush2.bf16.msra.mxu0 0
  %128 = vmatprep.subr.bf16.mxu0 0
  %129 = vmatpush2.bf16.msra.mxu0 0
  %130 = vmatprep.mubr.bf16.mxu0 0
  %131 = vmatmul.mubr.bf16.gmra.mxu0 %v48
  %v132 = vpop.f32.mrf.mxu0
  %v133 = vadd.f32 0.0, %v132
  %v134 = vpop.f32.mrf.mxu0
  %v135 = vpop.f32.mrf.mxu0
  %v136 = vadd.f32 0.0, %v135
  %v137 = vpop.f32.mrf.mxu0
  %138 = vdwg.mxu0
  %v139 = vadd.f32 %v42, %v133
  %v140 = vadd.f32 %v43, %v136
  %141 = vst [vmem:[#allocation2] sm:$0xff] %v139
  %142 = vst [vmem:[#allocation2 + $0x8] sm:$0xff] %v140
  // Predicated region
  $region22: #{text_decoder_forward.29} parent=0 // pred_check
    %p143 = pneg %p18
  $region23: #{text_decoder_forward.29} parent=0 // pred_check_branch
    %145 = sbr.rel (%p143) target = $region25
  $region24: #{text_decoder_forward.29} parent=0 // pred_region
    %v146 = vld [vmem:[#allocation2] sm:$0xff]
    %v147 = vld [vmem:[#allocation2 + $0x8] sm:$0xff]
    %v148 = vld [vmem:[%s2] sm:$0x1]
    %v150 = vlaneseq
    %v151 = vshrl.u32 %v150, 7
    %v152 = vsub.s32 0, %v151
    %v153 = vrot.slane %v148, %v152
    %v155 = vadd.f32 %v146, %v153
    %v156 = vadd.f32 %v147, %v153
    %v157 = vld [vmem:[%s3] sm:$0xff]
    %v158 = vld [vmem:[%s3 + $0x8] sm:$0xff]
    %v159 = vadd.f32 %v155, %v157
    %v160 = vadd.f32 %v156, %v158
    %161 = vst [vmem:[%s4] sm:$0xff] %v159
    %162 = vst [vmem:[%s4 + $0x8] sm:$0xff] %v160
  $region25: #{text_decoder_forward.29} parent=0 // pred_fallthru
    _
  // Predicated region
  $region26: #{text_decoder_forward.29} parent=0 // pred_check
    _
  $region27: #{text_decoder_forward.29} parent=0 // pred_check_branch
    %164 = sbr.rel (0) target = $region29
  $region28: #{text_decoder_forward.29} parent=0 // pred_region
    _
  $region29: #{text_decoder_forward.29} parent=0 // pred_fallthru
    _
  // Predicated region
  $region30: #{text_decoder_forward.29} parent=0 // pred_check
    _
  $region31: #{text_decoder_forward.29} parent=0 // pred_check_branch
    %166 = sbr.rel (0) target = $region33
  $region32: #{text_decoder_forward.29} parent=0 // pred_region
    _
  $region33: #{text_decoder_forward.29} parent=0 // pred_fallthru
    _

// kernel: text_decoder_forward.28
$region0: #{text_decoder_forward.28}
  #allocation0 [shape = 'u32[]', space=smem, size = 0x4, offset = 0x4, fixed_abs, tag = 'smem constant byte address 0x4 - core index']
  #allocation1 [shape = 'u32[144,128]{1,0:T(1,128)}', space=vmem, size = 0x12000, scoped, tag = 'internal scratch']
  #allocation2 [shape = 'f32[4,8,1]{2,1,0:T(8,128)}', space=vmem, size = 0x4000, scoped, tag = 'scratch operand']
  #allocation3 [shape = 'f32[4,8,1]{2,1,0:T(8,128)}', space=vmem, size = 0x4000, scoped, tag = 'scratch operand']
  #allocation4 [shape = 'f32[4,8,8]{2,1,0:T(8,128)}', space=vmem, size = 0x4000, scoped, tag = 'scratch operand']
  %s0 = inlined_call_operand.vmem [shape: bf16[2,8,32], index: 0, kind: input, shape index: {}]
  %s1 = inlined_call_operand.vmem [shape: bf16[2,8,32], index: 1, kind: input, shape index: {}]
  %s2 = inlined_call_operand.vmem [shape: bf16[2,8,32], index: 2, kind: input, shape index: {}]
  %s3 = inlined_call_operand.vmem [shape: bf16[2,8,32], index: 3, kind: output, shape index: {}]
  %s4 = sld [smem:[#allocation0]]
  $region53: #{text_decoder_forward.28} parent=0
    _
  %s6 = ssub.s32 1, %s4
  %s7 = scalar_select 0, %s6, %s4
  loop: start=0, step=1, limit=4
  $region2: #{text_decoder_forward.28} parent=0 // loop_pre_header
    _
  $region3: #{text_decoder_forward.28} parent=0 // loop_header
    %s9 = sphi 0, %s13
    %p10 = scmp.ge.s32.totalorder %s9, 4
    %s16 = sphi 0, %s35
    %s17 = sphi 0, %s31
    %s18 = sphi 0, %s27
    %s19 = sphi 0, %s16
    %s20 = sphi 0, %s17
    %s21 = sphi 0, %s18
    %s22 = sphi 0, %s19
    %s23 = sphi 0, %s20
    %s24 = sphi 0, %s21
    %s40 = sphi 0, %s42
    %s43 = sphi 0, %s40
    %s44 = sphi 0, %s43
    %s60 = sphi 0, %s44
    %s70 = sphi 0, %s72
    %s73 = sphi 0, %s70
    %s74 = sphi 0, %s73
    %s90 = sphi 0, %s74
    %s100 = sphi 0, %s102
    %s103 = sphi 0, %s100
    %s104 = sphi 0, %s103
    %s120 = sphi 0, %s104
    %s128 = sphi 0, %s130
    %s131 = sphi 0, %s128
    %s132 = sphi 0, %s131
    %s148 = sphi 0, %s132
  $region4: #{text_decoder_forward.28} parent=0 // loop_header_branch
    %12 = sbr.rel (%p10) target = $region8
  $region5: #{text_decoder_forward.28} parent=0 // loop_body
    %s14 = ssub.s32 %s9, 1
    %s15 = ssub.s32 %s9, 2
    %s25 = sadd.s32 1, %s18
    %p26 = scmp.ge.s32.totalorder %s25, 1
    %s27 = scalar_select %p26, 0, %s25
    %s28 = sadd.s32 1, %s17
    %s29 = scalar_select %p26, %s28, %s17
    %p30 = scmp.ge.s32.totalorder %s29, 1
    %s31 = scalar_select %p30, 0, %s29
    %s32 = sadd.s32 1, %s16
    %s33 = scalar_select %p30, %s32, %s16
    %p34 = scmp.ge.s32.totalorder %s33, 2
    %s35 = scalar_select %p34, 0, %s33
    %s36 = ssub.s32 %s16, %s35
    %s37 = ssub.s32 %s17, %s31
    %s38 = sor.u32 %s36, %s37
    %p39 = scmp.eq.s32.totalorder %s38, 0
    %s41 = sadd.s32 %s40, 1
    %s42 = scalar_select %p39, %s40, %s41
    %p45 = pneg %p39
    %p46 = scmp.eq.s32.totalorder %s9, 1
    %p47 = por %p45, %p46
    %p48 = scmp.ne.s32.totalorder %s40, %s43
    %p49 = scmp.eq.s32.totalorder %s9, 0
    %p50 = por %p48, %p49
    %p51 = scmp.ne.s32.totalorder %s40, %s43
    %p52 = scmp.eq.s32.totalorder %s14, 1
    %p53 = por %p51, %p52
    %p54 = scmp.ne.s32.totalorder %s43, %s44
    %p55 = scmp.eq.s32.totalorder %s14, 0
    %p56 = por %p54, %p55
    %p57 = scmp.ne.s32.totalorder %s43, %s44
    %p58 = scmp.eq.s32.totalorder %s15, 1
    %p59 = por %p57, %p58
    %p61 = scmp.ne.s32.totalorder %s44, %s60
    %p62 = scmp.eq.s32.totalorder %s15, 0
    %p63 = por %p61, %p62
    %s64 = ssub.s32 %s16, %s35
    %s65 = ssub.s32 %s18, %s27
    %s66 = sor.u32 %s64, %s65
    %s67 = ssub.s32 %s17, %s31
    %s68 = sor.u32 %s66, %s67
    %p69 = scmp.eq.s32.totalorder %s68, 0
    %s71 = sadd.s32 %s70, 1
    %s72 = scalar_select %p69, %s70, %s71
    %p75 = pneg %p69
    %p76 = scmp.eq.s32.totalorder %s9, 1
    %p77 = por %p75, %p76
    %p78 = scmp.ne.s32.totalorder %s70, %s73
    %p79 = scmp.eq.s32.totalorder %s9, 0
    %p80 = por %p78, %p79
    %p81 = scmp.ne.s32.totalorder %s70, %s73
    %p82 = scmp.eq.s32.totalorder %s14, 1
    %p83 = por %p81, %p82
    %p84 = scmp.ne.s32.totalorder %s73, %s74
    %p85 = scmp.eq.s32.totalorder %s14, 0
    %p86 = por %p84, %p85
    %p87 = scmp.ne.s32.totalorder %s73, %s74
    %p88 = scmp.eq.s32.totalorder %s15, 1
    %p89 = por %p87, %p88
    %p91 = scmp.ne.s32.totalorder %s74, %s90
    %p92 = scmp.eq.s32.totalorder %s15, 0
    %p93 = por %p91, %p92
    %s94 = ssub.s32 %s16, %s35
    %s95 = ssub.s32 %s18, %s27
    %s96 = sor.u32 %s94, %s95
    %s97 = ssub.s32 %s17, %s31
    %s98 = sor.u32 %s96, %s97
    %p99 = scmp.eq.s32.totalorder %s98, 0
    %s101 = sadd.s32 %s100, 1
    %s102 = scalar_select %p99, %s100, %s101
    %p105 = pneg %p99
    %p106 = scmp.eq.s32.totalorder %s9, 1
    %p107 = por %p105, %p106
    %p108 = scmp.ne.s32.totalorder %s100, %s103
    %p109 = scmp.eq.s32.totalorder %s9, 0
    %p110 = por %p108, %p109
    %p111 = scmp.ne.s32.totalorder %s100, %s103
    %p112 = scmp.eq.s32.totalorder %s14, 1
    %p113 = por %p111, %p112
    %p114 = scmp.ne.s32.totalorder %s103, %s104
    %p115 = scmp.eq.s32.totalorder %s14, 0
    %p116 = por %p114, %p115
    %p117 = scmp.ne.s32.totalorder %s103, %s104
    %p118 = scmp.eq.s32.totalorder %s15, 1
    %p119 = por %p117, %p118
    %p121 = scmp.ne.s32.totalorder %s104, %s120
    %p122 = scmp.eq.s32.totalorder %s15, 0
    %p123 = por %p121, %p122
    %s124 = ssub.s32 %s16, %s35
    %s125 = ssub.s32 %s17, %s31
    %s126 = sor.u32 %s124, %s125
    %p127 = scmp.eq.s32.totalorder %s126, 0
    %s129 = sadd.s32 %s128, 1
    %s130 = scalar_select %p127, %s128, %s129
    %p133 = pneg %p127
    %p134 = scmp.eq.s32.totalorder %s9, 1
    %p135 = por %p133, %p134
    %p136 = scmp.ne.s32.totalorder %s128, %s131
    %p137 = scmp.eq.s32.totalorder %s9, 0
    %p138 = por %p136, %p137
    %p139 = scmp.ne.s32.totalorder %s128, %s131
    %p140 = scmp.eq.s32.totalorder %s14, 1
    %p141 = por %p139, %p140
    %p142 = scmp.ne.s32.totalorder %s131, %s132
    %p143 = scmp.eq.s32.totalorder %s14, 0
    %p144 = por %p142, %p143
    %p145 = scmp.ne.s32.totalorder %s131, %s132
    %p146 = scmp.eq.s32.totalorder %s15, 1
    %p147 = por %p145, %p146
    %p149 = scmp.ne.s32.totalorder %s132, %s148
    %p150 = scmp.eq.s32.totalorder %s15, 0
    %p151 = por %p149, %p150
    %p152 = scmp.le.s32.totalorder 1, %s9
    %p153 = scmp.lt.s32.totalorder %s9, 3
    %p154 = pnand %p152, %p153
    %p155 = pneg %p154
    // Predicated region
    $region9: #{text_decoder_forward.28} parent=5 // pred_check
      _
    $region10: #{text_decoder_forward.28} parent=5 // pred_check_branch
      %157 = sbr.rel (%p154) target = $region12
    $region11: #{text_decoder_forward.28} parent=5 // pred_region
      %s158 = ssub.s32 %s9, 1
    $region12: #{text_decoder_forward.28} parent=5 // pred_fallthru
      _
    %p159 = scmp.lt.s32.totalorder %s9, 2
    // Predicated region
    $region13: #{text_decoder_forward.28} parent=5 // pred_check
      %p160 = pneg %p159
    $region14: #{text_decoder_forward.28} parent=5 // pred_check_branch
      %162 = sbr.rel (%p160) target = $region16
    $region15: #{text_decoder_forward.28} parent=5 // pred_region
      // Predicated region
      $region17: #{text_decoder_forward.28} parent=15 // pred_check
        %p163 = pneg %p50
      $region18: #{text_decoder_forward.28} parent=15 // pred_check_branch
        %165 = sbr.rel (%p163) target = $region20
      $region19: #{text_decoder_forward.28} parent=15 // pred_region
        %p166 = scmp.lt.s32.totalorder %s16, 1
        %s167 = scalar_select %p166, %s16, 1
        %p168 = scmp.lt.s32.totalorder %s17, 0
        %s169 = scalar_select %p168, %s17, 0
        %s170 = sadd.s32 %s169, %s167
        %s171 = smul.addr %s170, 4
        %s172 = scalar_lea.vmem %s0, %s171
      $region20: #{text_decoder_forward.28} parent=15 // pred_fallthru
        _
      // Predicated region
      $region21: #{text_decoder_forward.28} parent=15 // pred_check
        %p173 = pneg %p80
      $region22: #{text_decoder_forward.28} parent=15 // pred_check_branch
        %175 = sbr.rel (%p173) target = $region24
      $region23: #{text_decoder_forward.28} parent=15 // pred_region
        %p176 = scmp.lt.s32.totalorder %s16, 1
        %s177 = scalar_select %p176, %s16, 1
        %p178 = scmp.lt.s32.totalorder %s18, 0
        %s179 = scalar_select %p178, %s18, 0
        %p180 = scmp.lt.s32.totalorder %s17, 0
        %s181 = scalar_select %p180, %s17, 0
        %s182 = sadd.s32 %s181, %s179
        %s183 = sadd.s32 %s182, %s177
        %s184 = smul.addr %s183, 4
        %s185 = scalar_lea.vmem %s1, %s184
      $region24: #{text_decoder_forward.28} parent=15 // pred_fallthru
        _
      // Predicated region
      $region25: #{text_decoder_forward.28} parent=15 // pred_check
        %p186 = pneg %p110
      $region26: #{text_decoder_forward.28} parent=15 // pred_check_branch
        %188 = sbr.rel (%p186) target = $region28
      $region27: #{text_decoder_forward.28} parent=15 // pred_region
        %p189 = scmp.lt.s32.totalorder %s16, 1
        %s190 = scalar_select %p189, %s16, 1
        %p191 = scmp.lt.s32.totalorder %s18, 0
        %s192 = scalar_select %p191, %s18, 0
        %p193 = scmp.lt.s32.totalorder %s17, 0
        %s194 = scalar_select %p193, %s17, 0
        %s195 = sadd.s32 %s194, %s192
        %s196 = sadd.s32 %s195, %s190
        %s197 = smul.addr %s196, 4
        %s198 = scalar_lea.vmem %s2, %s197
      $region28: #{text_decoder_forward.28} parent=15 // pred_fallthru
        _
    $region16: #{text_decoder_forward.28} parent=5 // pred_fallthru
      _
    %p199 = scmp.le.s32.totalorder 1, %s9
    %p200 = scmp.lt.s32.totalorder %s9, 3
    %p201 = pnand %p199, %p200
    %p202 = pneg %p201
    // Predicated region
    $region29: #{text_decoder_forward.28} parent=5 // pred_check
      _
    $region30: #{text_decoder_forward.28} parent=5 // pred_check_branch
      %204 = sbr.rel (%p201) target = $region32
    $region31: #{text_decoder_forward.28} parent=5 // pred_region
      %s205 = ssub.s32 %s9, 1
      %p206 = scmp.lt.s32.totalorder %s19, 1
      %s207 = scalar_select %p206, %s19, 1
      %p208 = scmp.lt.s32.totalorder %s20, 0
      %s209 = scalar_select %p208, %s20, 0
      %s210 = sadd.s32 %s209, %s207
      %s211 = smul.addr %s210, 4
      %s212 = scalar_lea.vmem %s0, %s211
      %p213 = pneg %p56
      %p214 = pneg %p53
      %p215 = scmp.lt.s32.totalorder %s19, 1
      %s216 = scalar_select %p215, %s19, 1
      %p217 = scmp.lt.s32.totalorder %s21, 0
      %s218 = scalar_select %p217, %s21, 0
      %p219 = scmp.lt.s32.totalorder %s20, 0
      %s220 = scalar_select %p219, %s20, 0
      %s221 = sadd.s32 %s220, %s218
      %s222 = sadd.s32 %s221, %s216
      %s223 = smul.addr %s222, 4
      %s224 = scalar_lea.vmem %s1, %s223
      %p225 = pneg %p86
      %p226 = pneg %p83
      %p227 = scmp.lt.s32.totalorder %s19, 1
      %s228 = scalar_select %p227, %s19, 1
      %p229 = scmp.lt.s32.totalorder %s21, 0
      %s230 = scalar_select %p229, %s21, 0
      %p231 = scmp.lt.s32.totalorder %s20, 0
      %s232 = scalar_select %p231, %s20, 0
      %s233 = sadd.s32 %s232, %s230
      %s234 = sadd.s32 %s233, %s228
      %s235 = smul.addr %s234, 4
      %s236 = scalar_lea.vmem %s2, %s235
      %p237 = pneg %p116
      %p238 = pneg %p113
      %p239 = pneg %p144
      %p240 = pneg %p141
      %p241 = scmp.lt.s32.totalorder %s19, 1
      %s242 = scalar_select %p241, %s19, 1
      %p243 = scmp.lt.s32.totalorder %s20, 0
      %s244 = scalar_select %p243, %s20, 0
      %s245 = sadd.s32 %s244, %s242
      %s246 = smul.addr %s245, 4
      %s247 = scalar_lea.vmem %s3, %s246
      %p248 = scmp.lt.s32.totalorder %s19, 1
      %s249 = scalar_select %p248, %s19, 1
      %p250 = scmp.lt.s32.totalorder %s20, 0
      %s251 = scalar_select %p250, %s20, 0
      %s252 = sadd.s32 %s251, %s249
      %s253 = smul.addr %s252, 4
      %s254 = scalar_lea.vmem %s0, %s253
      %p255 = scmp.lt.s32.totalorder %s19, 1
      %s256 = scalar_select %p255, %s19, 1
      %p257 = scmp.lt.s32.totalorder %s21, 0
      %s258 = scalar_select %p257, %s21, 0
      %p259 = scmp.lt.s32.totalorder %s20, 0
      %s260 = scalar_select %p259, %s20, 0
      %s261 = sadd.s32 %s260, %s258
      %s262 = sadd.s32 %s261, %s256
      %s263 = smul.addr %s262, 4
      %s264 = scalar_lea.vmem %s1, %s263
      %p265 = scmp.lt.s32.totalorder %s19, 1
      %s266 = scalar_select %p265, %s19, 1
      %p267 = scmp.lt.s32.totalorder %s21, 0
      %s268 = scalar_select %p267, %s21, 0
      %p269 = scmp.lt.s32.totalorder %s20, 0
      %s270 = scalar_select %p269, %s20, 0
      %s271 = sadd.s32 %s270, %s268
      %s272 = sadd.s32 %s271, %s266
      %s273 = smul.addr %s272, 4
      %s274 = scalar_lea.vmem %s2, %s273
      %p275 = scmp.lt.s32.totalorder %s19, 1
      %s276 = scalar_select %p275, %s19, 1
      %p277 = scmp.lt.s32.totalorder %s20, 0
      %s278 = scalar_select %p277, %s20, 0
      %s279 = sadd.s32 %s278, %s276
      %s280 = smul.addr %s279, 4
      %s281 = scalar_lea.vmem %s3, %s280
      %p283 = scmp.eq.s32.totalorder %s21, 0
      // Predicated region
      $region33: #{text_decoder_forward.28} parent=31 // pred_check
        %p284 = pneg %p283
      $region34: #{text_decoder_forward.28} parent=31 // pred_check_branch
        %286 = sbr.rel (%p284) target = $region36
      $region35: #{text_decoder_forward.28} parent=31 // pred_region
        %vm287 = vcmask 7168
        %288 = vst.msk [vmem:[#allocation2] sm:$0xff] %vm287, -inf
        %289 = vst.msk [vmem:[#allocation2 + $0x8] sm:$0xff] %vm287, -inf
        %290 = vst.msk [vmem:[#allocation2 + $0x10] sm:$0xff] %vm287, -inf
        %291 = vst.msk [vmem:[#allocation2 + $0x18] sm:$0xff] %vm287, -inf
        %292 = vst.msk [vmem:[#allocation3] sm:$0xff] %vm287, 0.0
        %293 = vst.msk [vmem:[#allocation3 + $0x8] sm:$0xff] %vm287, 0.0
        %294 = vst.msk [vmem:[#allocation3 + $0x10] sm:$0xff] %vm287, 0.0
        %295 = vst.msk [vmem:[#allocation3 + $0x18] sm:$0xff] %vm287, 0.0
        %vm296 = vcmask 64512
        %297 = vst.msk [vmem:[#allocation4] sm:$0xff] %vm296, 0.0
        %298 = vst.msk [vmem:[#allocation4 + $0x8] sm:$0xff] %vm296, 0.0
        %299 = vst.msk [vmem:[#allocation4 + $0x10] sm:$0xff] %vm296, 0.0
        %300 = vst.msk [vmem:[#allocation4 + $0x18] sm:$0xff] %vm296, 0.0
      $region36: #{text_decoder_forward.28} parent=31 // pred_fallthru
        _
      %v301 = vld [vmem:[%s254] sm:$0xf]
      %v302 = vld [vmem:[%s264] sm:$0xf]
      %v303 = vld [vmem:[%s274] sm:$0xf]
      %s304 = smul.u32 %s21, 8
      %v305 = vlaneseq
      %v306 = vand.u32 %v305, 127
      %v307 = vstv %s304
      %v308 = vadd.s32 %v307, %v306
      %v309 = vlaneseq
      %v310 = vshrl.u32 %v309, 7
      %vm311 = vcmp.le.s32.totalorder %v308, %v310
      %vm312 = vcmask 64512
      %v314 = vsel %vm312, %v301, 0
      %v317 = vsel %vm312, %v302, 0
      %319 = vmatprep.subr.bf16.mxu0 0
      %320 = vmatpush1.bf16.xpose.msra.mxu0 0
      %321 = vmatprep.subr.bf16.mxu0 0
      %322 = vmatpush1.bf16.xpose.msra.mxu0 0
      %323 = vmatprep.subr.bf16.mxu0 0
      %324 = vmatpush1.bf16.xpose.msra.mxu0 0
      %325 = vmatprep.subr.bf16.mxu0 0
      %326 = vmatpush1.bf16.xpose.msra.mxu0 0
      %327 = vmatprep.subr.bf16.mxu0 0
      %328 = vmatpush1.bf16.xpose.msra.mxu0 0
      %329 = vmatprep.subr.bf16.mxu0 0
      %330 = vmatpush1.bf16.xpose.msra.mxu0 0
      %331 = vmatprep.subr.bf16.mxu0 0
      %332 = vmatpush1.bf16.xpose.msra.mxu0 0
      %333 = vmatprep.subr.bf16.mxu0 0
      %334 = vmatpush1.bf16.xpose.msra.mxu0 %v317
      %335 = vmatprep.subr.bf16.mxu0 0
      %336 = vmatpush2.bf16.xpose.msra.mxu0 0
      %337 = vmatprep.subr.bf16.mxu0 0
      %338 = vmatpush2.bf16.xpose.msra.mxu0 0
      %339 = vmatprep.subr.bf16.mxu0 0
      %340 = vmatpush2.bf16.xpose.msra.mxu0 0
      %341 = vmatprep.subr.bf16.mxu0 0
      %342 = vmatpush2.bf16.xpose.msra.mxu0 0
      %343 = vmatprep.subr.bf16.mxu0 0
      %344 = vmatpush2.bf16.xpose.msra.mxu0 0
      %345 = vmatprep.subr.bf16.mxu0 0
      %346 = vmatpush2.bf16.xpose.msra.mxu0 0
      %347 = vmatprep.subr.bf16.mxu0 0
      %348 = vmatpush2.bf16.xpose.msra.mxu0 0
      %349 = vmatprep.subr.bf16.mxu0 0
      %350 = vmatpush2.bf16.xpose.msra.mxu0 0
      %351 = vmatprep.mubr.bf16.mxu0 0
      %352 = vmatmul.mubr.bf16.gmra.mxu0 %v314
      %v353 = vpop.f32.mrf.mxu0
      %v354 = vadd.f32 0.0, %v353
      %v355 = vpop.f32.mrf.mxu0
      %v356 = vpop.f32.mrf.mxu0
      %v357 = vpop.f32.mrf.mxu0
      %358 = vdwg.mxu0
      %v359 = vmul.f32 %v354, 0.35355338
      %v360 = vsel %vm311, %v359, -1e+30
      %v361 = vld [vmem:[#allocation2] sm:$0xff]
      %v362 = vsel %vm312, %v360, -inf
      %363 = vmax.xlane.f32.xlu0 %v362
      %v364 = vpop.xlane.xlu0 %363
      %v365 = vmax.f32 %v361, %v364
      %v366 = vsub.f32 %v361, %v365
      %v367 = vmul.f32 %v366, 1.442695
      %v368 = vpow.pop %v367
      %370 = vset.pattern.permute.xlu0 0
      %371 = vperm.xlu0 %370, %v365
      %v372 = vpop.permute.xlu0 %371
      %v374 = vsub.f32 %v360, %v372
      %v375 = vmul.f32 %v374, 1.442695
      %v376 = vpow.pop %v375
      %v377 = vld [vmem:[#allocation3] sm:$0xff]
      %v378 = vmul.f32 %v368, %v377
      %v379 = vsel %vm312, %v376, 0.0
      %380 = vadd.xlane.f32.xlu0 %v379
      %v381 = vpop.xlane.xlu0 %380
      %v382 = vadd.f32 %v378, %v381
      %vm383 = vcmask 7168
      %384 = vst.msk [vmem:[#allocation3] sm:$0xff] %vm383, %v382
      %v385 = vld [vmem:[#allocation4] sm:$0xff]
      %387 = vset.pattern.permute.xlu0 0
      %388 = vperm.xlu0 %387, %v368
      %v389 = vpop.permute.xlu0 %388
      %v391 = vmul.f32 %v389, %v385
      %v392 = vpack.c.bf16 %v376, %v376
      %v394 = vsel %vm312, %v392, 0
      %vm396 = vcmask 1043456
      %v398 = vsel %vm396, %v303, 0
      %400 = vmatprep.subr.bf16.mxu0 0
      %401 = vmatpush1.bf16.msra.mxu0 0
      %402 = vmatprep.subr.bf16.mxu0 0
      %403 = vmatpush1.bf16.msra.mxu0 0
      %404 = vmatprep.subr.bf16.mxu0 0
      %405 = vmatpush1.bf16.msra.mxu0 0
      %406 = vmatprep.subr.bf16.mxu0 0
      %407 = vmatpush1.bf16.msra.mxu0 0
      %408 = vmatprep.subr.bf16.mxu0 0
      %409 = vmatpush1.bf16.msra.mxu0 0
      %410 = vmatprep.subr.bf16.mxu0 0
      %411 = vmatpush1.bf16.msra.mxu0 0
      %412 = vmatprep.subr.bf16.mxu0 0
      %413 = vmatpush1.bf16.msra.mxu0 0
      %414 = vmatprep.subr.bf16.mxu0 0
      %415 = vmatpush1.bf16.msra.mxu0 %v398
      %416 = vmatprep.subr.bf16.mxu0 0
      %417 = vmatpush2.bf16.msra.mxu0 0
      %418 = vmatprep.subr.bf16.mxu0 0
      %419 = vmatpush2.bf16.msra.mxu0 0
      %420 = vmatprep.subr.bf16.mxu0 0
      %421 = vmatpush2.bf16.msra.mxu0 0
      %422 = vmatprep.subr.bf16.mxu0 0
      %423 = vmatpush2.bf16.msra.mxu0 0
      %424 = vmatprep.subr.bf16.mxu0 0
      %425 = vmatpush2.bf16.msra.mxu0 0
      %426 = vmatprep.subr.bf16.mxu0 0
      %427 = vmatpush2.bf16.msra.mxu0 0
      %428 = vmatprep.subr.bf16.mxu0 0
      %429 = vmatpush2.bf16.msra.mxu0 0
      %430 = vmatprep.subr.bf16.mxu0 0
      %431 = vmatpush2.bf16.msra.mxu0 0
      %432 = vmatprep.mubr.bf16.mxu0 0
      %433 = vmatmul.mubr.bf16.gmra.mxu0 %v394
      %v434 = vpop.f32.mrf.mxu0
      %v435 = vadd.f32 0.0, %v434
      %v436 = vpop.f32.mrf.mxu0
      %v437 = vpop.f32.mrf.mxu0
      %v438 = vpop.f32.mrf.mxu0
      %439 = vdwg.mxu0
      %v440 = vadd.f32 %v391, %v435
      %441 = vst.msk [vmem:[#allocation4] sm:$0xff] %vm312, %v440
      %442 = vst.msk [vmem:[#allocation2] sm:$0xff] %vm383, %v365
      %v444 = vunpack.c.l.b16 %v301
      %v445 = vpack.c.b16 %v444, %v444
      %446 = vrot.lane.b32.xlu0 %v445, 120
      %v447 = vpop.permute.xlu0 %446
      %v449 = vunpack.c.l.b16 %v302
      %v450 = vpack.c.b16 %v449, %v449
      %451 = vrot.lane.b32.xlu0 %v450, 120
      %v452 = vpop.permute.xlu0 %451
      %v454 = vsel %vm312, %v447, 0
      %v457 = vsel %vm312, %v452, 0
      %459 = vmatprep.subr.bf16.mxu0 0
      %460 = vmatpush1.bf16.xpose.msra.mxu0 0
      %461 = vmatprep.subr.bf16.mxu0 0
      %462 = vmatpush1.bf16.xpose.msra.mxu0 0
      %463 = vmatprep.subr.bf16.mxu0 0
      %464 = vmatpush1.bf16.xpose.msra.mxu0 0
      %465 = vmatprep.subr.bf16.mxu0 0
      %466 = vmatpush1.bf16.xpose.msra.mxu0 0
      %467 = vmatprep.subr.bf16.mxu0 0
      %468 = vmatpush1.bf16.xpose.msra.mxu0 0
      %469 = vmatprep.subr.bf16.mxu0 0
      %470 = vmatpush1.bf16.xpose.msra.mxu0 0
      %471 = vmatprep.subr.bf16.mxu0 0
      %472 = vmatpush1.bf16.xpose.msra.mxu0 0
      %473 = vmatprep.subr.bf16.mxu0 0
      %474 = vmatpush1.bf16.xpose.msra.mxu0 %v457
      %475 = vmatprep.subr.bf16.mxu0 0
      %476 = vmatpush2.bf16.xpose.msra.mxu0 0
      %477 = vmatprep.subr.bf16.mxu0 0
      %478 = vmatpush2.bf16.xpose.msra.mxu0 0
      %479 = vmatprep.subr.bf16.mxu0 0
      %480 = vmatpush2.bf16.xpose.msra.mxu0 0
      %481 = vmatprep.subr.bf16.mxu0 0
      %482 = vmatpush2.bf16.xpose.msra.mxu0 0
      %483 = vmatprep.subr.bf16.mxu0 0
      %484 = vmatpush2.bf16.xpose.msra.mxu0 0
      %485 = vmatprep.subr.bf16.mxu0 0
      %486 = vmatpush2.bf16.xpose.msra.mxu0 0
      %487 = vmatprep.subr.bf16.mxu0 0
      %488 = vmatpush2.bf16.xpose.msra.mxu0 0
      %489 = vmatprep.subr.bf16.mxu0 0
      %490 = vmatpush2.bf16.xpose.msra.mxu0 0
      %491 = vmatprep.mubr.bf16.mxu0 0
      %492 = vmatmul.mubr.bf16.gmra.mxu0 %v454
      %v493 = vpop.f32.mrf.mxu0
      %v494 = vadd.f32 0.0, %v493
      %v495 = vpop.f32.mrf.mxu0
      %v496 = vpop.f32.mrf.mxu0
      %v497 = vpop.f32.mrf.mxu0
      %498 = vdwg.mxu0
      %v499 = vmul.f32 %v494, 0.35355338
      %v500 = vsel %vm311, %v499, -1e+30
      %s501 = scalar_lea.vmem [#allocation2], 8
      %v502 = vld [vmem:[%s501] sm:$0xff]
      %v503 = vsel %vm312, %v500, -inf
      %504 = vmax.xlane.f32.xlu0 %v503
      %v505 = vpop.xlane.xlu0 %504
      %v506 = vmax.f32 %v502, %v505
      %v507 = vsub.f32 %v502, %v506
      %v508 = vmul.f32 %v507, 1.442695
      %v509 = vpow.pop %v508
      %511 = vset.pattern.permute.xlu0 0
      %512 = vperm.xlu0 %511, %v506
      %v513 = vpop.permute.xlu0 %512
      %v515 = vsub.f32 %v500, %v513
      %v516 = vmul.f32 %v515, 1.442695
      %v517 = vpow.pop %v516
      %s518 = scalar_lea.vmem [#allocation3], 8
      %v519 = vld [vmem:[%s518] sm:$0xff]
      %v520 = vmul.f32 %v509, %v519
      %v521 = vsel %vm312, %v517, 0.0
      %522 = vadd.xlane.f32.xlu0 %v521
      %v523 = vpop.xlane.xlu0 %522
      %v524 = vadd.f32 %v520, %v523
      %525 = vst.msk [vmem:[%s518] sm:$0xff] %vm383, %v524
      %s526 = scalar_lea.vmem [#allocation4], 8
      %v527 = vld [vmem:[%s526] sm:$0xff]
      %529 = vset.pattern.permute.xlu0 0
      %530 = vperm.xlu0 %529, %v509
      %v531 = vpop.permute.xlu0 %530
      %v533 = vmul.f32 %v531, %v527
      %v534 = vpack.c.bf16 %v517, %v517
      %v536 = vunpack.c.l.b16 %v303
      %v537 = vpack.c.b16 %v536, %v536
      %538 = vrot.lane.b32.xlu0 %v537, 120
      %v539 = vpop.permute.xlu0 %538
      %v541 = vsel %vm312, %v534, 0
      %v544 = vsel %vm396, %v539, 0
      %546 = vmatprep.subr.bf16.mxu0 0
      %547 = vmatpush1.bf16.msra.mxu0 0
      %548 = vmatprep.subr.bf16.mxu0 0
      %549 = vmatpush1.bf16.msra.mxu0 0
      %550 = vmatprep.subr.bf16.mxu0 0
      %551 = vmatpush1.bf16.msra.mxu0 0
      %552 = vmatprep.subr.bf16.mxu0 0
      %553 = vmatpush1.bf16.msra.mxu0 0
      %554 = vmatprep.subr.bf16.mxu0 0
      %555 = vmatpush1.bf16.msra.mxu0 0
      %556 = vmatprep.subr.bf16.mxu0 0
      %557 = vmatpush1.bf16.msra.mxu0 0
      %558 = vmatprep.subr.bf16.mxu0 0
      %559 = vmatpush1.bf16.msra.mxu0 0
      %560 = vmatprep.subr.bf16.mxu0 0
      %561 = vmatpush1.bf16.msra.mxu0 %v544
      %562 = vmatprep.subr.bf16.mxu0 0
      %563 = vmatpush2.bf16.msra.mxu0 0
      %564 = vmatprep.subr.bf16.mxu0 0
      %565 = vmatpush2.bf16.msra.mxu0 0
      %566 = vmatprep.subr.bf16.mxu0 0
      %567 = vmatpush2.bf16.msra.mxu0 0
      %568 = vmatprep.subr.bf16.mxu0 0
      %569 = vmatpush2.bf16.msra.mxu0 0
      %570 = vmatprep.subr.bf16.mxu0 0
      %571 = vmatpush2.bf16.msra.mxu0 0
      %572 = vmatprep.subr.bf16.mxu0 0
      %573 = vmatpush2.bf16.msra.mxu0 0
      %574 = vmatprep.subr.bf16.mxu0 0
      %575 = vmatpush2.bf16.msra.mxu0 0
      %576 = vmatprep.subr.bf16.mxu0 0
      %577 = vmatpush2.bf16.msra.mxu0 0
      %578 = vmatprep.mubr.bf16.mxu0 0
      %579 = vmatmul.mubr.bf16.gmra.mxu0 %v541
      %v580 = vpop.f32.mrf.mxu0
      %v581 = vadd.f32 0.0, %v580
      %v582 = vpop.f32.mrf.mxu0
      %v583 = vpop.f32.mrf.mxu0
      %v584 = vpop.f32.mrf.mxu0
      %585 = vdwg.mxu0
      %v586 = vadd.f32 %v533, %v581
      %587 = vst.msk [vmem:[%s526] sm:$0xff] %vm312, %v586
      %588 = vst.msk [vmem:[%s501] sm:$0xff] %vm383, %v506
      %589 = vrot.lane.b32.xlu0 %v445, 112
      %v590 = vpop.permute.xlu0 %589
      %591 = vrot.lane.b32.xlu0 %v450, 112
      %v592 = vpop.permute.xlu0 %591
      %v594 = vsel %vm312, %v590, 0
      %v597 = vsel %vm312, %v592, 0
      %599 = vmatprep.subr.bf16.mxu0 0
      %600 = vmatpush1.bf16.xpose.msra.mxu0 0
      %601 = vmatprep.subr.bf16.mxu0 0
      %602 = vmatpush1.bf16.xpose.msra.mxu0 0
      %603 = vmatprep.subr.bf16.mxu0 0
      %604 = vmatpush1.bf16.xpose.msra.mxu0 0
      %605 = vmatprep.subr.bf16.mxu0 0
      %606 = vmatpush1.bf16.xpose.msra.mxu0 0
      %607 = vmatprep.subr.bf16.mxu0 0
      %608 = vmatpush1.bf16.xpose.msra.mxu0 0
      %609 = vmatprep.subr.bf16.mxu0 0
      %610 = vmatpush1.bf16.xpose.msra.mxu0 0
      %611 = vmatprep.subr.bf16.mxu0 0
      %612 = vmatpush1.bf16.xpose.msra.mxu0 0
      %613 = vmatprep.subr.bf16.mxu0 0
      %614 = vmatpush1.bf16.xpose.msra.mxu0 %v597
      %615 = vmatprep.subr.bf16.mxu0 0
      %616 = vmatpush2.bf16.xpose.msra.mxu0 0
      %617 = vmatprep.subr.bf16.mxu0 0
      %618 = vmatpush2.bf16.xpose.msra.mxu0 0
      %619 = vmatprep.subr.bf16.mxu0 0
      %620 = vmatpush2.bf16.xpose.msra.mxu0 0
      %621 = vmatprep.subr.bf16.mxu0 0
      %622 = vmatpush2.bf16.xpose.msra.mxu0 0
      %623 = vmatprep.subr.bf16.mxu0 0
      %624 = vmatpush2.bf16.xpose.msra.mxu0 0
      %625 = vmatprep.subr.bf16.mxu0 0
      %626 = vmatpush2.bf16.xpose.msra.mxu0 0
      %627 = vmatprep.subr.bf16.mxu0 0
      %628 = vmatpush2.bf16.xpose.msra.mxu0 0
      %629 = vmatprep.subr.bf16.mxu0 0
      %630 = vmatpush2.bf16.xpose.msra.mxu0 0
      %631 = vmatprep.mubr.bf16.mxu0 0
      %632 = vmatmul.mubr.bf16.gmra.mxu0 %v594
      %v633 = vpop.f32.mrf.mxu0
      %v634 = vadd.f32 0.0, %v633
      %v635 = vpop.f32.mrf.mxu0
      %v636 = vpop.f32.mrf.mxu0
      %v637 = vpop.f32.mrf.mxu0
      %638 = vdwg.mxu0
      %v639 = vmul.f32 %v634, 0.35355338
      %v640 = vsel %vm311, %v639, -1e+30
      %s641 = scalar_lea.vmem [#allocation2], 16
      %v642 = vld [vmem:[%s641] sm:$0xff]
      %v643 = vsel %vm312, %v640, -inf
      %644 = vmax.xlane.f32.xlu0 %v643
      %v645 = vpop.xlane.xlu0 %644
      %v646 = vmax.f32 %v642, %v645
      %v647 = vsub.f32 %v642, %v646
      %v648 = vmul.f32 %v647, 1.442695
      %v649 = vpow.pop %v648
      %651 = vset.pattern.permute.xlu0 0
      %652 = vperm.xlu0 %651, %v646
      %v653 = vpop.permute.xlu0 %652
      %v655 = vsub.f32 %v640, %v653
      %v656 = vmul.f32 %v655, 1.442695
      %v657 = vpow.pop %v656
      %s658 = scalar_lea.vmem [#allocation3], 16
      %v659 = vld [vmem:[%s658] sm:$0xff]
      %v660 = vmul.f32 %v649, %v659
      %v661 = vsel %vm312, %v657, 0.0
      %662 = vadd.xlane.f32.xlu0 %v661
      %v663 = vpop.xlane.xlu0 %662
      %v664 = vadd.f32 %v660, %v663
      %665 = vst.msk [vmem:[%s658] sm:$0xff] %vm383, %v664
      %s666 = scalar_lea.vmem [#allocation4], 16
      %v667 = vld [vmem:[%s666] sm:$0xff]
      %669 = vset.pattern.permute.xlu0 0
      %670 = vperm.xlu0 %669, %v649
      %v671 = vpop.permute.xlu0 %670
      %v673 = vmul.f32 %v671, %v667
      %v674 = vpack.c.bf16 %v657, %v657
      %675 = vrot.lane.b32.xlu0 %v537, 112
      %v676 = vpop.permute.xlu0 %675
      %v678 = vsel %vm312, %v674, 0
      %v681 = vsel %vm396, %v676, 0
      %683 = vmatprep.subr.bf16.mxu0 0
      %684 = vmatpush1.bf16.msra.mxu0 0
      %685 = vmatprep.subr.bf16.mxu0 0
      %686 = vmatpush1.bf16.msra.mxu0 0
      %687 = vmatprep.subr.bf16.mxu0 0
      %688 = vmatpush1.bf16.msra.mxu0 0
      %689 = vmatprep.subr.bf16.mxu0 0
      %690 = vmatpush1.bf16.msra.mxu0 0
      %691 = vmatprep.subr.bf16.mxu0 0
      %692 = vmatpush1.bf16.msra.mxu0 0
      %693 = vmatprep.subr.bf16.mxu0 0
      %694 = vmatpush1.bf16.msra.mxu0 0
      %695 = vmatprep.subr.bf16.mxu0 0
      %696 = vmatpush1.bf16.msra.mxu0 0
      %697 = vmatprep.subr.bf16.mxu0 0
      %698 = vmatpush1.bf16.msra.mxu0 %v681
      %699 = vmatprep.subr.bf16.mxu0 0
      %700 = vmatpush2.bf16.msra.mxu0 0
      %701 = vmatprep.subr.bf16.mxu0 0
      %702 = vmatpush2.bf16.msra.mxu0 0
      %703 = vmatprep.subr.bf16.mxu0 0
      %704 = vmatpush2.bf16.msra.mxu0 0
      %705 = vmatprep.subr.bf16.mxu0 0
      %706 = vmatpush2.bf16.msra.mxu0 0
      %707 = vmatprep.subr.bf16.mxu0 0
      %708 = vmatpush2.bf16.msra.mxu0 0
      %709 = vmatprep.subr.bf16.mxu0 0
      %710 = vmatpush2.bf16.msra.mxu0 0
      %711 = vmatprep.subr.bf16.mxu0 0
      %712 = vmatpush2.bf16.msra.mxu0 0
      %713 = vmatprep.subr.bf16.mxu0 0
      %714 = vmatpush2.bf16.msra.mxu0 0
      %715 = vmatprep.mubr.bf16.mxu0 0
      %716 = vmatmul.mubr.bf16.gmra.mxu0 %v678
      %v717 = vpop.f32.mrf.mxu0
      %v718 = vadd.f32 0.0, %v717
      %v719 = vpop.f32.mrf.mxu0
      %v720 = vpop.f32.mrf.mxu0
      %v721 = vpop.f32.mrf.mxu0
      %722 = vdwg.mxu0
      %v723 = vadd.f32 %v673, %v718
      %724 = vst.msk [vmem:[%s666] sm:$0xff] %vm312, %v723
      %725 = vst.msk [vmem:[%s641] sm:$0xff] %vm383, %v646
      %726 = vrot.lane.b32.xlu0 %v445, 104
      %v727 = vpop.permute.xlu0 %726
      %728 = vrot.lane.b32.xlu0 %v450, 104
      %v729 = vpop.permute.xlu0 %728
      %v731 = vsel %vm312, %v727, 0
      %v734 = vsel %vm312, %v729, 0
      %736 = vmatprep.subr.bf16.mxu0 0
      %737 = vmatpush1.bf16.xpose.msra.mxu0 0
      %738 = vmatprep.subr.bf16.mxu0 0
      %739 = vmatpush1.bf16.xpose.msra.mxu0 0
      %740 = vmatprep.subr.bf16.mxu0 0
      %741 = vmatpush1.bf16.xpose.msra.mxu0 0
      %742 = vmatprep.subr.bf16.mxu0 0
      %743 = vmatpush1.bf16.xpose.msra.mxu0 0
      %744 = vmatprep.subr.bf16.mxu0 0
      %745 = vmatpush1.bf16.xpose.msra.mxu0 0
      %746 = vmatprep.subr.bf16.mxu0 0
      %747 = vmatpush1.bf16.xpose.msra.mxu0 0
      %748 = vmatprep.subr.bf16.mxu0 0
      %749 = vmatpush1.bf16.xpose.msra.mxu0 0
      %750 = vmatprep.subr.bf16.mxu0 0
      %751 = vmatpush1.bf16.xpose.msra.mxu0 %v734
      %752 = vmatprep.subr.bf16.mxu0 0
      %753 = vmatpush2.bf16.xpose.msra.mxu0 0
      %754 = vmatprep.subr.bf16.mxu0 0
      %755 = vmatpush2.bf16.xpose.msra.mxu0 0
      %756 = vmatprep.subr.bf16.mxu0 0
      %757 = vmatpush2.bf16.xpose.msra.mxu0 0
      %758 = vmatprep.subr.bf16.mxu0 0
      %759 = vmatpush2.bf16.xpose.msra.mxu0 0
      %760 = vmatprep.subr.bf16.mxu0 0
      %761 = vmatpush2.bf16.xpose.msra.mxu0 0
      %762 = vmatprep.subr.bf16.mxu0 0
      %763 = vmatpush2.bf16.xpose.msra.mxu0 0
      %764 = vmatprep.subr.bf16.mxu0 0
      %765 = vmatpush2.bf16.xpose.msra.mxu0 0
      %766 = vmatprep.subr.bf16.mxu0 0
      %767 = vmatpush2.bf16.xpose.msra.mxu0 0
      %768 = vmatprep.mubr.bf16.mxu0 0
      %769 = vmatmul.mubr.bf16.gmra.mxu0 %v731
      %v770 = vpop.f32.mrf.mxu0
      %v771 = vadd.f32 0.0, %v770
      %v772 = vpop.f32.mrf.mxu0
      %v773 = vpop.f32.mrf.mxu0
      %v774 = vpop.f32.mrf.mxu0
      %775 = vdwg.mxu0
      %v776 = vmul.f32 %v771, 0.35355338
      %v777 = vsel %vm311, %v776, -1e+30
      %s778 = scalar_lea.vmem [#allocation2], 24
      %v779 = vld [vmem:[%s778] sm:$0xff]
      %v780 = vsel %vm312, %v777, -inf
      %781 = vmax.xlane.f32.xlu0 %v780
      %v782 = vpop.xlane.xlu0 %781
      %v783 = vmax.f32 %v779, %v782
      %v784 = vsub.f32 %v779, %v783
      %v785 = vmul.f32 %v784, 1.442695
      %v786 = vpow.pop %v785
      %788 = vset.pattern.permute.xlu0 0
      %789 = vperm.xlu0 %788, %v783
      %v790 = vpop.permute.xlu0 %789
      %v792 = vsub.f32 %v777, %v790
      %v793 = vmul.f32 %v792, 1.442695
      %v794 = vpow.pop %v793
      %s795 = scalar_lea.vmem [#allocation3], 24
      %v796 = vld [vmem:[%s795] sm:$0xff]
      %v797 = vmul.f32 %v786, %v796
      %v798 = vsel %vm312, %v794, 0.0
      %799 = vadd.xlane.f32.xlu0 %v798
      %v800 = vpop.xlane.xlu0 %799
      %v801 = vadd.f32 %v797, %v800
      %802 = vst.msk [vmem:[%s795] sm:$0xff] %vm383, %v801
      %s803 = scalar_lea.vmem [#allocation4], 24
      %v804 = vld [vmem:[%s803] sm:$0xff]
      %806 = vset.pattern.permute.xlu0 0
      %807 = vperm.xlu0 %806, %v786
      %v808 = vpop.permute.xlu0 %807
      %v810 = vmul.f32 %v808, %v804
      %v811 = vpack.c.bf16 %v794, %v794
      %812 = vrot.lane.b32.xlu0 %v537, 104
      %v813 = vpop.permute.xlu0 %812
      %v815 = vsel %vm312, %v811, 0
      %v818 = vsel %vm396, %v813, 0
      %820 = vmatprep.subr.bf16.mxu0 0
      %821 = vmatpush1.bf16.msra.mxu0 0
      %822 = vmatprep.subr.bf16.mxu0 0
      %823 = vmatpush1.bf16.msra.mxu0 0
      %824 = vmatprep.subr.bf16.mxu0 0
      %825 = vmatpush1.bf16.msra.mxu0 0
      %826 = vmatprep.subr.bf16.mxu0 0
      %827 = vmatpush1.bf16.msra.mxu0 0
      %828 = vmatprep.subr.bf16.mxu0 0
      %829 = vmatpush1.bf16.msra.mxu0 0
      %830 = vmatprep.subr.bf16.mxu0 0
      %831 = vmatpush1.bf16.msra.mxu0 0
      %832 = vmatprep.subr.bf16.mxu0 0
      %833 = vmatpush1.bf16.msra.mxu0 0
      %834 = vmatprep.subr.bf16.mxu0 0
      %835 = vmatpush1.bf16.msra.mxu0 %v818
      %836 = vmatprep.subr.bf16.mxu0 0
      %837 = vmatpush2.bf16.msra.mxu0 0
      %838 = vmatprep.subr.bf16.mxu0 0
      %839 = vmatpush2.bf16.msra.mxu0 0
      %840 = vmatprep.subr.bf16.mxu0 0
      %841 = vmatpush2.bf16.msra.mxu0 0
      %842 = vmatprep.subr.bf16.mxu0 0
      %843 = vmatpush2.bf16.msra.mxu0 0
      %844 = vmatprep.subr.bf16.mxu0 0
      %845 = vmatpush2.bf16.msra.mxu0 0
      %846 = vmatprep.subr.bf16.mxu0 0
      %847 = vmatpush2.bf16.msra.mxu0 0
      %848 = vmatprep.subr.bf16.mxu0 0
      %849 = vmatpush2.bf16.msra.mxu0 0
      %850 = vmatprep.subr.bf16.mxu0 0
      %851 = vmatpush2.bf16.msra.mxu0 0
      %852 = vmatprep.mubr.bf16.mxu0 0
      %853 = vmatmul.mubr.bf16.gmra.mxu0 %v815
      %v854 = vpop.f32.mrf.mxu0
      %v855 = vadd.f32 0.0, %v854
      %v856 = vpop.f32.mrf.mxu0
      %v857 = vpop.f32.mrf.mxu0
      %v858 = vpop.f32.mrf.mxu0
      %859 = vdwg.mxu0
      %v860 = vadd.f32 %v810, %v855
      %861 = vst.msk [vmem:[%s803] sm:$0xff] %vm312, %v860
      %862 = vst.msk [vmem:[%s778] sm:$0xff] %vm383, %v783
      // Predicated region
      $region37: #{text_decoder_forward.28} parent=31 // pred_check
        %p863 = pneg %p283
      $region38: #{text_decoder_forward.28} parent=31 // pred_check_branch
        %865 = sbr.rel (%p863) target = $region40
      $region39: #{text_decoder_forward.28} parent=31 // pred_region
        %v866 = vld [vmem:[#allocation3] sm:$0xff]
        %v867 = vrcp.pop %v866
        %v868 = vld [vmem:[#allocation4] sm:$0xff]
        %870 = vset.pattern.permute.xlu0 0
        %871 = vperm.xlu0 %870, %v867
        %v872 = vpop.permute.xlu0 %871
        %v874 = vmul.f32 %v868, %v872
        %v875 = vpack.c.bf16 %v874, %v874
        %vm876 = vcmask 60416
        %877 = vst.msk [vmem:[%s281] sm:$0xf] %vm876, %v875
        %v878 = vld [vmem:[%s518] sm:$0xff]
        %v879 = vrcp.pop %v878
        %v880 = vld [vmem:[%s526] sm:$0xff]
        %882 = vset.pattern.permute.xlu0 0
        %883 = vperm.xlu0 %882, %v879
        %v884 = vpop.permute.xlu0 %883
        %v886 = vmul.f32 %v880, %v884
        %v887 = vpack.c.bf16 %v886, %v886
        %v889 = vunpack.c.l.b16 %v887
        %v890 = vpack.c.b16 %v889, %v889
        %891 = vrot.lane.b32.xlu0 %v890, 8
        %v892 = vpop.permute.xlu0 %891
        %vm894 = vcmask 126016
        %895 = vst.msk [vmem:[%s281] sm:$0xf] %vm894, %v892
        %v896 = vld [vmem:[%s658] sm:$0xff]
        %v897 = vrcp.pop %v896
        %v898 = vld [vmem:[%s666] sm:$0xff]
        %900 = vset.pattern.permute.xlu0 0
        %901 = vperm.xlu0 %900, %v897
        %v902 = vpop.permute.xlu0 %901
        %v904 = vmul.f32 %v898, %v902
        %v905 = vpack.c.bf16 %v904, %v904
        %v907 = vunpack.c.l.b16 %v905
        %v908 = vpack.c.b16 %v907, %v907
        %909 = vrot.lane.b32.xlu0 %v908, 16
        %v910 = vpop.permute.xlu0 %909
        %vm912 = vcmask 191616
        %913 = vst.msk [vmem:[%s281] sm:$0xf] %vm912, %v910
        %v914 = vld [vmem:[%s795] sm:$0xff]
        %v915 = vrcp.pop %v914
        %v916 = vld [vmem:[%s803] sm:$0xff]
        %918 = vset.pattern.permute.xlu0 0
        %919 = vperm.xlu0 %918, %v915
        %v920 = vpop.permute.xlu0 %919
        %v922 = vmul.f32 %v916, %v920
        %v923 = vpack.c.bf16 %v922, %v922
        %v925 = vunpack.c.l.b16 %v923
        %v926 = vpack.c.b16 %v925, %v925
        %927 = vrot.lane.b32.xlu0 %v926, 24
        %v928 = vpop.permute.xlu0 %927
        %vm930 = vcmask 257216
        %931 = vst.msk [vmem:[%s281] sm:$0xf] %vm930, %v928
      $region40: #{text_decoder_forward.28} parent=31 // pred_fallthru
        _
      %p932 = scmp.lt.s32.totalorder %s19, 1
      %s933 = scalar_select %p932, %s19, 1
      %p934 = scmp.lt.s32.totalorder %s20, 0
      %s935 = scalar_select %p934, %s20, 0
      %s936 = sadd.s32 %s935, %s933
      %s937 = smul.addr %s936, 4
      %s938 = scalar_lea.vmem %s3, %s937
      // Predicated region
      $region41: #{text_decoder_forward.28} parent=31 // pred_check
        %p939 = pneg %p141
      $region42: #{text_decoder_forward.28} parent=31 // pred_check_branch
        %941 = sbr.rel (%p939) target = $region44
      $region43: #{text_decoder_forward.28} parent=31 // pred_region
        _
      $region44: #{text_decoder_forward.28} parent=31 // pred_fallthru
        _
    $region32: #{text_decoder_forward.28} parent=5 // pred_fallthru
      _
    %p942 = scmp.le.s32.totalorder 2, %s9
    // Predicated region
    $region45: #{text_decoder_forward.28} parent=5 // pred_check
      %p943 = pneg %p942
    $region46: #{text_decoder_forward.28} parent=5 // pred_check_branch
      %945 = sbr.rel (%p943) target = $region48
    $region47: #{text_decoder_forward.28} parent=5 // pred_region
      %s946 = ssub.s32 %s9, 2
      // Predicated region
      $region49: #{text_decoder_forward.28} parent=47 // pred_check
        %p947 = pneg %p147
      $region50: #{text_decoder_forward.28} parent=47 // pred_check_branch
        %949 = sbr.rel (%p947) target = $region52
      $region51: #{text_decoder_forward.28} parent=47 // pred_region
        %p950 = scmp.lt.s32.totalorder %s22, 1
        %s951 = scalar_select %p950, %s22, 1
        %p952 = scmp.lt.s32.totalorder %s23, 0
        %s953 = scalar_select %p952, %s23, 0
        %s954 = sadd.s32 %s953, %s951
        %s955 = smul.addr %s954, 4
        %s956 = scalar_lea.vmem %s3, %s955
      $region52: #{text_decoder_forward.28} parent=47 // pred_fallthru
        _
    $region48: #{text_decoder_forward.28} parent=5 // pred_fallthru
      _
  $region6: #{text_decoder_forward.28} parent=0 // loop_footer
    %s13 = sadd.s32 1, %s9
  $region7: #{text_decoder_forward.28} parent=0 // loop_footer_branch
    %8 = sbr.rel target = $region3
  $region8: #{text_decoder_forward.28} parent=0 // loop_exit
    _

// kernel: text_decoder_forward.32
$region0: #{text_decoder_forward.32}
  #allocation0 [shape = 'u32[]', space=smem, size = 0x4, offset = 0x4, fixed_abs, tag = 'smem constant byte address 0x4 - core index']
  #allocation1 [shape = 'u32[144,128]{1,0:T(1,128)}', space=vmem, size = 0x12000, scoped, tag = 'internal scratch']
  #allocation2 [shape = 'f32[32,128]{1,0:T(8,128)}', space=vmem, size = 0x4000, scoped, tag = 'scratch operand']
  %s0 = inlined_call_operand.vmem [shape: bf16[32,128], index: 0, kind: input, shape index: {}]
  %s1 = inlined_call_operand.vmem [shape: bf16[128,128], index: 1, kind: input, shape index: {}]
  %s2 = inlined_call_operand.vmem [shape: f32[1,128], index: 2, kind: input, shape index: {}]
  %s3 = inlined_call_operand.vmem [shape: bf16[32,128], index: 3, kind: output, shape index: {}]
  %s4 = sld [smem:[#allocation0]]
  $region30: #{text_decoder_forward.32} parent=0
    _
  %s6 = ssub.s32 1, %s4
  %s7 = scalar_select 0, %s6, %s4
  // Predicated region
  $region2: #{text_decoder_forward.32} parent=0 // pred_check
    _
  $region3: #{text_decoder_forward.32} parent=0 // pred_check_branch
    %9 = sbr.rel (0) target = $region5
  $region4: #{text_decoder_forward.32} parent=0 // pred_region
    _
  $region5: #{text_decoder_forward.32} parent=0 // pred_fallthru
    _
  // Predicated region
  $region6: #{text_decoder_forward.32} parent=0 // pred_check
    _
  $region7: #{text_decoder_forward.32} parent=0 // pred_check_branch
    %11 = sbr.rel (0) target = $region9
  $region8: #{text_decoder_forward.32} parent=0 // pred_region
    _
  $region9: #{text_decoder_forward.32} parent=0 // pred_fallthru
    _
  // Predicated region
  $region10: #{text_decoder_forward.32} parent=0 // pred_check
    _
  $region11: #{text_decoder_forward.32} parent=0 // pred_check_branch
    %13 = sbr.rel (0) target = $region13
  $region12: #{text_decoder_forward.32} parent=0 // pred_region
    _
  $region13: #{text_decoder_forward.32} parent=0 // pred_fallthru
    _
  %p15 = scmp.eq.s32.totalorder 0, 0
  // Predicated region
  $region14: #{text_decoder_forward.32} parent=0 // pred_check
    %p16 = pneg %p15
  $region15: #{text_decoder_forward.32} parent=0 // pred_check_branch
    %18 = sbr.rel (%p16) target = $region17
  $region16: #{text_decoder_forward.32} parent=0 // pred_region
    %19 = vst [vmem:[#allocation2] sm:$0xff] 0.0
    %20 = vst [vmem:[#allocation2 + $0x8] sm:$0xff] 0.0
    %21 = vst [vmem:[#allocation2 + $0x10] sm:$0xff] 0.0
    %22 = vst [vmem:[#allocation2 + $0x18] sm:$0xff] 0.0
  $region17: #{text_decoder_forward.32} parent=0 // pred_fallthru
    _
  %v23 = vld [vmem:[%s0] sm:$0xf]
  %v24 = vld [vmem:[%s0 + $0x4] sm:$0xf]
  %v25 = vld [vmem:[%s0 + $0x8] sm:$0xf]
  %v26 = vld [vmem:[%s0 + $0xc] sm:$0xf]
  %v27 = vld [vmem:[%s1] sm:$0xf]
  %v28 = vld [vmem:[%s1 + $0x4] sm:$0xf]
  %v29 = vld [vmem:[%s1 + $0x8] sm:$0xf]
  %v30 = vld [vmem:[%s1 + $0xc] sm:$0xf]
  %v31 = vld [vmem:[%s1 + $0x10] sm:$0xf]
  %v32 = vld [vmem:[%s1 + $0x14] sm:$0xf]
  %v33 = vld [vmem:[%s1 + $0x18] sm:$0xf]
  %v34 = vld [vmem:[%s1 + $0x1c] sm:$0xf]
  %v35 = vld [vmem:[%s1 + $0x20] sm:$0xf]
  %v36 = vld [vmem:[%s1 + $0x24] sm:$0xf]
  %v37 = vld [vmem:[%s1 + $0x28] sm:$0xf]
  %v38 = vld [vmem:[%s1 + $0x2c] sm:$0xf]
  %v39 = vld [vmem:[%s1 + $0x30] sm:$0xf]
  %v40 = vld [vmem:[%s1 + $0x34] sm:$0xf]
  %v41 = vld [vmem:[%s1 + $0x38] sm:$0xf]
  %v42 = vld [vmem:[%s1 + $0x3c] sm:$0xf]
  %v43 = vld [vmem:[#allocation2] sm:$0xff]
  %v44 = vld [vmem:[#allocation2 + $0x8] sm:$0xff]
  %v45 = vld [vmem:[#allocation2 + $0x10] sm:$0xff]
  %v46 = vld [vmem:[#allocation2 + $0x18] sm:$0xff]
  %v51 = vunpack.c.l.b16 %v23
  %v52 = vunpack.c.l.b16 %v24
  %v53 = vunpack.c.l.b16 %v25
  %v54 = vunpack.c.l.b16 %v26
  %v55 = vpack.c.b16 %v52, %v51
  %v56 = vpack.c.b16 %v54, %v53
  %v75 = vunpack.c.l.b16 %v27
  %v76 = vunpack.c.l.b16 %v28
  %v77 = vunpack.c.l.b16 %v29
  %v78 = vunpack.c.l.b16 %v30
  %v79 = vunpack.c.l.b16 %v31
  %v80 = vunpack.c.l.b16 %v32
  %v81 = vunpack.c.l.b16 %v33
  %v82 = vunpack.c.l.b16 %v34
  %v83 = vunpack.c.l.b16 %v35
  %v84 = vunpack.c.l.b16 %v36
  %v85 = vunpack.c.l.b16 %v37
  %v86 = vunpack.c.l.b16 %v38
  %v87 = vunpack.c.l.b16 %v39
  %v88 = vunpack.c.l.b16 %v40
  %v89 = vunpack.c.l.b16 %v41
  %v90 = vunpack.c.l.b16 %v42
  %v91 = vpack.c.b16 %v76, %v75
  %v92 = vpack.c.b16 %v78, %v77
  %v93 = vpack.c.b16 %v80, %v79
  %v94 = vpack.c.b16 %v82, %v81
  %v95 = vpack.c.b16 %v84, %v83
  %v96 = vpack.c.b16 %v86, %v85
  %v97 = vpack.c.b16 %v88, %v87
  %v98 = vpack.c.b16 %v90, %v89
  %107 = vmatprep.subr.bf16.mxu0 0
  %108 = vmatpush1.bf16.msra.mxu0 %v98
  %109 = vmatprep.subr.bf16.mxu0 0
  %110 = vmatpush1.bf16.msra.mxu0 %v97
  %111 = vmatprep.subr.bf16.mxu0 0
  %112 = vmatpush1.bf16.msra.mxu0 %v96
  %113 = vmatprep.subr.bf16.mxu0 0
  %114 = vmatpush1.bf16.msra.mxu0 %v95
  %115 = vmatprep.subr.bf16.mxu0 0
  %116 = vmatpush1.bf16.msra.mxu0 %v94
  %117 = vmatprep.subr.bf16.mxu0 0
  %118 = vmatpush1.bf16.msra.mxu0 %v93
  %119 = vmatprep.subr.bf16.mxu0 0
  %120 = vmatpush1.bf16.msra.mxu0 %v92
  %121 = vmatprep.subr.bf16.mxu0 0
  %122 = vmatpush1.bf16.msra.mxu0 %v91
  %123 = vmatprep.subr.bf16.mxu0 0
  %124 = vmatpush2.bf16.msra.mxu0 0
  %125 = vmatprep.subr.bf16.mxu0 0
  %126 = vmatpush2.bf16.msra.mxu0 0
  %127 = vmatprep.subr.bf16.mxu0 0
  %128 = vmatpush2.bf16.msra.mxu0 0
  %129 = vmatprep.subr.bf16.mxu0 0
  %130 = vmatpush2.bf16.msra.mxu0 0
  %131 = vmatprep.subr.bf16.mxu0 0
  %132 = vmatpush2.bf16.msra.mxu0 0
  %133 = vmatprep.subr.bf16.mxu0 0
  %134 = vmatpush2.bf16.msra.mxu0 0
  %135 = vmatprep.subr.bf16.mxu0 0
  %136 = vmatpush2.bf16.msra.mxu0 0
  %137 = vmatprep.subr.bf16.mxu0 0
  %138 = vmatpush2.bf16.msra.mxu0 0
  %139 = vmatprep.mubr.bf16.mxu0 0
  %140 = vmatmul.mubr.bf16.gmra.mxu0 %v55
  %v141 = vpop.f32.mrf.mxu0
  %v142 = vadd.f32 0.0, %v141
  %v143 = vpop.f32.mrf.mxu0
  %v144 = vpop.f32.mrf.mxu0
  %v145 = vadd.f32 0.0, %v144
  %v146 = vpop.f32.mrf.mxu0
  %147 = vmatprep.mubr.bf16.mxu0 0
  %148 = vmatmul.mubr.bf16.gmra.mxu0 %v56
  %v149 = vpop.f32.mrf.mxu0
  %v150 = vadd.f32 0.0, %v149
  %v151 = vpop.f32.mrf.mxu0
  %v152 = vpop.f32.mrf.mxu0
  %v153 = vadd.f32 0.0, %v152
  %v154 = vpop.f32.mrf.mxu0
  %155 = vdwg.mxu0
  %v156 = vadd.f32 %v43, %v142
  %v157 = vadd.f32 %v44, %v145
  %v158 = vadd.f32 %v45, %v150
  %v159 = vadd.f32 %v46, %v153
  %160 = vst [vmem:[#allocation2] sm:$0xff] %v156
  %161 = vst [vmem:[#allocation2 + $0x8] sm:$0xff] %v157
  %162 = vst [vmem:[#allocation2 + $0x10] sm:$0xff] %v158
  %163 = vst [vmem:[#allocation2 + $0x18] sm:$0xff] %v159
  // Predicated region
  $region18: #{text_decoder_forward.32} parent=0 // pred_check
    %p164 = pneg %p15
  $region19: #{text_decoder_forward.32} parent=0 // pred_check_branch
    %166 = sbr.rel (%p164) target = $region21
  $region20: #{text_decoder_forward.32} parent=0 // pred_region
    %v167 = vld [vmem:[#allocation2] sm:$0xff]
    %v168 = vld [vmem:[#allocation2 + $0x8] sm:$0xff]
    %v169 = vld [vmem:[#allocation2 + $0x10] sm:$0xff]
    %v170 = vld [vmem:[#allocation2 + $0x18] sm:$0xff]
    %v171 = vld [vmem:[%s2] sm:$0x1]
    %v173 = vlaneseq
    %v174 = vshrl.u32 %v173, 7
    %v175 = vsub.s32 0, %v174
    %v176 = vrot.slane %v171, %v175
    %v178 = vadd.f32 %v167, %v176
    %v179 = vadd.f32 %v168, %v176
    %v180 = vadd.f32 %v169, %v176
    %v181 = vadd.f32 %v170, %v176
    %v182 = vpack.c.bf16 %v179, %v178
    %v183 = vpack.c.bf16 %v181, %v180
    %v186 = vunpack.c.l.b16 %v182
    %v187 = vunpack.c.h.b16 %v182
    %v188 = vunpack.c.l.b16 %v183
    %v189 = vunpack.c.h.b16 %v183
    %v190 = vpack.c.b16 %v186, %v186
    %v191 = vpack.c.b16 %v187, %v187
    %v192 = vpack.c.b16 %v188, %v188
    %v193 = vpack.c.b16 %v189, %v189
    %198 = vst [vmem:[%s3] sm:$0xf] %v190
    %199 = vst [vmem:[%s3 + $0x4] sm:$0xf] %v191
    %200 = vst [vmem:[%s3 + $0x8] sm:$0xf] %v192
    %201 = vst [vmem:[%s3 + $0xc] sm:$0xf] %v193
  $region21: #{text_decoder_forward.32} parent=0 // pred_fallthru
    _
  // Predicated region
  $region22: #{text_decoder_forward.32} parent=0 // pred_check
    _
  $region23: #{text_decoder_forward.32} parent=0 // pred_check_branch
    %203 = sbr.rel (0) target = $region25
  $region24: #{text_decoder_forward.32} parent=0 // pred_region
    _
  $region25: #{text_decoder_forward.32} parent=0 // pred_fallthru
    _
  // Predicated region
  $region26: #{text_decoder_forward.32} parent=0 // pred_check
    _
  $region27: #{text_decoder_forward.32} parent=0 // pred_check_branch
    %205 = sbr.rel (0) target = $region29
  $region28: #{text_decoder_forward.32} parent=0 // pred_region
    _
  $region29: #{text_decoder_forward.32} parent=0 // pred_fallthru
    _

// kernel: text_decoder_forward.36
$region0: #{text_decoder_forward.36}
  #allocation0 [shape = 'u32[]', space=smem, size = 0x4, offset = 0x4, fixed_abs, tag = 'smem constant byte address 0x4 - core index']
  #allocation1 [shape = 'u32[144,128]{1,0:T(1,128)}', space=vmem, size = 0x12000, scoped, tag = 'internal scratch']
  #allocation2 [shape = 'f32[16,128]{1,0:T(8,128)}', space=vmem, size = 0x2000, scoped, tag = 'scratch operand']
  %s0 = inlined_call_operand.vmem [shape: bf16[16,128], index: 0, kind: input, shape index: {}]
  %s1 = inlined_call_operand.vmem [shape: bf16[128,128], index: 1, kind: input, shape index: {}]
  %s2 = inlined_call_operand.vmem [shape: f32[1,128], index: 2, kind: input, shape index: {}]
  %s3 = inlined_call_operand.vmem [shape: bf16[16,128], index: 3, kind: output, shape index: {}]
  %s4 = sld [smem:[#allocation0]]
  $region30: #{text_decoder_forward.36} parent=0
    _
  %s6 = ssub.s32 1, %s4
  %s7 = scalar_select 0, %s6, %s4
  // Predicated region
  $region2: #{text_decoder_forward.36} parent=0 // pred_check
    _
  $region3: #{text_decoder_forward.36} parent=0 // pred_check_branch
    %9 = sbr.rel (0) target = $region5
  $region4: #{text_decoder_forward.36} parent=0 // pred_region
    _
  $region5: #{text_decoder_forward.36} parent=0 // pred_fallthru
    _
  // Predicated region
  $region6: #{text_decoder_forward.36} parent=0 // pred_check
    _
  $region7: #{text_decoder_forward.36} parent=0 // pred_check_branch
    %11 = sbr.rel (0) target = $region9
  $region8: #{text_decoder_forward.36} parent=0 // pred_region
    _
  $region9: #{text_decoder_forward.36} parent=0 // pred_fallthru
    _
  // Predicated region
  $region10: #{text_decoder_forward.36} parent=0 // pred_check
    _
  $region11: #{text_decoder_forward.36} parent=0 // pred_check_branch
    %13 = sbr.rel (0) target = $region13
  $region12: #{text_decoder_forward.36} parent=0 // pred_region
    _
  $region13: #{text_decoder_forward.36} parent=0 // pred_fallthru
    _
  %p15 = scmp.eq.s32.totalorder 0, 0
  // Predicated region
  $region14: #{text_decoder_forward.36} parent=0 // pred_check
    %p16 = pneg %p15
  $region15: #{text_decoder_forward.36} parent=0 // pred_check_branch
    %18 = sbr.rel (%p16) target = $region17
  $region16: #{text_decoder_forward.36} parent=0 // pred_region
    %19 = vst [vmem:[#allocation2] sm:$0xff] 0.0
    %20 = vst [vmem:[#allocation2 + $0x8] sm:$0xff] 0.0
  $region17: #{text_decoder_forward.36} parent=0 // pred_fallthru
    _
  %v21 = vld [vmem:[%s0] sm:$0xf]
  %v22 = vld [vmem:[%s0 + $0x4] sm:$0xf]
  %v23 = vld [vmem:[%s1] sm:$0xf]
  %v24 = vld [vmem:[%s1 + $0x4] sm:$0xf]
  %v25 = vld [vmem:[%s1 + $0x8] sm:$0xf]
  %v26 = vld [vmem:[%s1 + $0xc] sm:$0xf]
  %v27 = vld [vmem:[%s1 + $0x10] sm:$0xf]
  %v28 = vld [vmem:[%s1 + $0x14] sm:$0xf]
  %v29 = vld [vmem:[%s1 + $0x18] sm:$0xf]
  %v30 = vld [vmem:[%s1 + $0x1c] sm:$0xf]
  %v31 = vld [vmem:[%s1 + $0x20] sm:$0xf]
  %v32 = vld [vmem:[%s1 + $0x24] sm:$0xf]
  %v33 = vld [vmem:[%s1 + $0x28] sm:$0xf]
  %v34 = vld [vmem:[%s1 + $0x2c] sm:$0xf]
  %v35 = vld [vmem:[%s1 + $0x30] sm:$0xf]
  %v36 = vld [vmem:[%s1 + $0x34] sm:$0xf]
  %v37 = vld [vmem:[%s1 + $0x38] sm:$0xf]
  %v38 = vld [vmem:[%s1 + $0x3c] sm:$0xf]
  %v39 = vld [vmem:[#allocation2] sm:$0xff]
  %v40 = vld [vmem:[#allocation2 + $0x8] sm:$0xff]
  %v43 = vunpack.c.l.b16 %v21
  %v44 = vunpack.c.l.b16 %v22
  %v45 = vpack.c.b16 %v44, %v43
  %v63 = vunpack.c.l.b16 %v23
  %v64 = vunpack.c.l.b16 %v24
  %v65 = vunpack.c.l.b16 %v25
  %v66 = vunpack.c.l.b16 %v26
  %v67 = vunpack.c.l.b16 %v27
  %v68 = vunpack.c.l.b16 %v28
  %v69 = vunpack.c.l.b16 %v29
  %v70 = vunpack.c.l.b16 %v30
  %v71 = vunpack.c.l.b16 %v31
  %v72 = vunpack.c.l.b16 %v32
  %v73 = vunpack.c.l.b16 %v33
  %v74 = vunpack.c.l.b16 %v34
  %v75 = vunpack.c.l.b16 %v35
  %v76 = vunpack.c.l.b16 %v36
  %v77 = vunpack.c.l.b16 %v37
  %v78 = vunpack.c.l.b16 %v38
  %v79 = vpack.c.b16 %v64, %v63
  %v80 = vpack.c.b16 %v66, %v65
  %v81 = vpack.c.b16 %v68, %v67
  %v82 = vpack.c.b16 %v70, %v69
  %v83 = vpack.c.b16 %v72, %v71
  %v84 = vpack.c.b16 %v74, %v73
  %v85 = vpack.c.b16 %v76, %v75
  %v86 = vpack.c.b16 %v78, %v77
  %95 = vmatprep.subr.bf16.mxu0 0
  %96 = vmatpush1.bf16.msra.mxu0 %v86
  %97 = vmatprep.subr.bf16.mxu0 0
  %98 = vmatpush1.bf16.msra.mxu0 %v85
  %99 = vmatprep.subr.bf16.mxu0 0
  %100 = vmatpush1.bf16.msra.mxu0 %v84
  %101 = vmatprep.subr.bf16.mxu0 0
  %102 = vmatpush1.bf16.msra.mxu0 %v83
  %103 = vmatprep.subr.bf16.mxu0 0
  %104 = vmatpush1.bf16.msra.mxu0 %v82
  %105 = vmatprep.subr.bf16.mxu0 0
  %106 = vmatpush1.bf16.msra.mxu0 %v81
  %107 = vmatprep.subr.bf16.mxu0 0
  %108 = vmatpush1.bf16.msra.mxu0 %v80
  %109 = vmatprep.subr.bf16.mxu0 0
  %110 = vmatpush1.bf16.msra.mxu0 %v79
  %111 = vmatprep.subr.bf16.mxu0 0
  %112 = vmatpush2.bf16.msra.mxu0 0
  %113 = vmatprep.subr.bf16.mxu0 0
  %114 = vmatpush2.bf16.msra.mxu0 0
  %115 = vmatprep.subr.bf16.mxu0 0
  %116 = vmatpush2.bf16.msra.mxu0 0
  %117 = vmatprep.subr.bf16.mxu0 0
  %118 = vmatpush2.bf16.msra.mxu0 0
  %119 = vmatprep.subr.bf16.mxu0 0
  %120 = vmatpush2.bf16.msra.mxu0 0
  %121 = vmatprep.subr.bf16.mxu0 0
  %122 = vmatpush2.bf16.msra.mxu0 0
  %123 = vmatprep.subr.bf16.mxu0 0
  %124 = vmatpush2.bf16.msra.mxu0 0
  %125 = vmatprep.subr.bf16.mxu0 0
  %126 = vmatpush2.bf16.msra.mxu0 0
  %127 = vmatprep.mubr.bf16.mxu0 0
  %128 = vmatmul.mubr.bf16.gmra.mxu0 %v45
  %v129 = vpop.f32.mrf.mxu0
  %v130 = vadd.f32 0.0, %v129
  %v131 = vpop.f32.mrf.mxu0
  %v132 = vpop.f32.mrf.mxu0
  %v133 = vadd.f32 0.0, %v132
  %v134 = vpop.f32.mrf.mxu0
  %135 = vdwg.mxu0
  %v136 = vadd.f32 %v39, %v130
  %v137 = vadd.f32 %v40, %v133
  %138 = vst [vmem:[#allocation2] sm:$0xff] %v136
  %139 = vst [vmem:[#allocation2 + $0x8] sm:$0xff] %v137
  // Predicated region
  $region18: #{text_decoder_forward.36} parent=0 // pred_check
    %p140 = pneg %p15
  $region19: #{text_decoder_forward.36} parent=0 // pred_check_branch
    %142 = sbr.rel (%p140) target = $region21
  $region20: #{text_decoder_forward.36} parent=0 // pred_region
    %v143 = vld [vmem:[#allocation2] sm:$0xff]
    %v144 = vld [vmem:[#allocation2 + $0x8] sm:$0xff]
    %v145 = vld [vmem:[%s2] sm:$0x1]
    %v147 = vlaneseq
    %v148 = vshrl.u32 %v147, 7
    %v149 = vsub.s32 0, %v148
    %v150 = vrot.slane %v145, %v149
    %v152 = vadd.f32 %v143, %v150
    %v153 = vadd.f32 %v144, %v150
    %v154 = vmul.f32 %v152, 0.5
    %v155 = vmul.f32 %v153, 0.5
    %v156 = vmul.f32 %v152, 0.044715
    %v157 = vmul.f32 %v153, 0.044715
    %v158 = vmul.f32 %v156, %v152
    %v159 = vmul.f32 %v157, %v153
    %v160 = vmul.f32 %v158, %v152
    %v161 = vmul.f32 %v159, %v153
    %v162 = vadd.f32 %v152, %v160
    %v163 = vadd.f32 %v153, %v161
    %v164 = vmul.f32 %v162, 0.7978846
    %v165 = vmul.f32 %v163, 0.7978846
    %v166 = vtanh.pop %v164
    %v167 = vtanh.pop %v165
    %v168 = vadd.f32 %v166, 1.0
    %v169 = vadd.f32 %v167, 1.0
    %v170 = vmul.f32 %v154, %v168
    %v171 = vmul.f32 %v155, %v169
    %v172 = vpack.c.bf16 %v171, %v170
    %v174 = vunpack.c.l.b16 %v172
    %v175 = vunpack.c.h.b16 %v172
    %v176 = vpack.c.b16 %v174, %v174
    %v177 = vpack.c.b16 %v175, %v175
    %180 = vst [vmem:[%s3] sm:$0xf] %v176
    %181 = vst [vmem:[%s3 + $0x4] sm:$0xf] %v177
  $region21: #{text_decoder_forward.36} parent=0 // pred_fallthru
    _
  // Predicated region
  $region22: #{text_decoder_forward.36} parent=0 // pred_check
    _
  $region23: #{text_decoder_forward.36} parent=0 // pred_check_branch
    %183 = sbr.rel (0) target = $region25
  $region24: #{text_decoder_forward.36} parent=0 // pred_region
    _
  $region25: #{text_decoder_forward.36} parent=0 // pred_fallthru
    _
  // Predicated region
  $region26: #{text_decoder_forward.36} parent=0 // pred_check
    _
  $region27: #{text_decoder_forward.36} parent=0 // pred_check_branch
    %185 = sbr.rel (0) target = $region29
  $region28: #{text_decoder_forward.36} parent=0 // pred_region
    _
  $region29: #{text_decoder_forward.36} parent=0 // pred_fallthru
    _

// kernel: text_decoder_forward.33
$region0: #{text_decoder_forward.33}
  #allocation0 [shape = 'u32[]', space=smem, size = 0x4, offset = 0x4, fixed_abs, tag = 'smem constant byte address 0x4 - core index']
  #allocation1 [shape = 'u32[144,128]{1,0:T(1,128)}', space=vmem, size = 0x12000, scoped, tag = 'internal scratch']
  #allocation2 [shape = 'f32[4,8,1]{2,1,0:T(8,128)}', space=vmem, size = 0x4000, scoped, tag = 'scratch operand']
  #allocation3 [shape = 'f32[4,8,1]{2,1,0:T(8,128)}', space=vmem, size = 0x4000, scoped, tag = 'scratch operand']
  #allocation4 [shape = 'f32[4,8,8]{2,1,0:T(8,128)}', space=vmem, size = 0x4000, scoped, tag = 'scratch operand']
  %s0 = inlined_call_operand.vmem [shape: bf16[2,8,32], index: 0, kind: input, shape index: {}]
  %s1 = inlined_call_operand.vmem [shape: bf16[2,16,32], index: 1, kind: input, shape index: {}]
  %s2 = inlined_call_operand.vmem [shape: bf16[2,16,32], index: 2, kind: input, shape index: {}]
  %s3 = inlined_call_operand.vmem [shape: bf16[2,8,32], index: 3, kind: output, shape index: {}]
  %s4 = sld [smem:[#allocation0]]
  $region53: #{text_decoder_forward.33} parent=0
    _
  %s6 = ssub.s32 1, %s4
  %s7 = scalar_select 0, %s6, %s4
  loop: start=0, step=1, limit=4
  $region2: #{text_decoder_forward.33} parent=0 // loop_pre_header
    _
  $region3: #{text_decoder_forward.33} parent=0 // loop_header
    %s9 = sphi 0, %s13
    %p10 = scmp.ge.s32.totalorder %s9, 4
    %s16 = sphi 0, %s35
    %s17 = sphi 0, %s31
    %s18 = sphi 0, %s27
    %s19 = sphi 0, %s16
    %s20 = sphi 0, %s17
    %s21 = sphi 0, %s18
    %s22 = sphi 0, %s19
    %s23 = sphi 0, %s20
    %s24 = sphi 0, %s21
    %s40 = sphi 0, %s42
    %s43 = sphi 0, %s40
    %s44 = sphi 0, %s43
    %s60 = sphi 0, %s44
    %s70 = sphi 0, %s72
    %s73 = sphi 0, %s70
    %s74 = sphi 0, %s73
    %s90 = sphi 0, %s74
    %s100 = sphi 0, %s102
    %s103 = sphi 0, %s100
    %s104 = sphi 0, %s103
    %s120 = sphi 0, %s104
    %s128 = sphi 0, %s130
    %s131 = sphi 0, %s128
    %s132 = sphi 0, %s131
    %s148 = sphi 0, %s132
  $region4: #{text_decoder_forward.33} parent=0 // loop_header_branch
    %12 = sbr.rel (%p10) target = $region8
  $region5: #{text_decoder_forward.33} parent=0 // loop_body
    %s14 = ssub.s32 %s9, 1
    %s15 = ssub.s32 %s9, 2
    %s25 = sadd.s32 1, %s18
    %p26 = scmp.ge.s32.totalorder %s25, 1
    %s27 = scalar_select %p26, 0, %s25
    %s28 = sadd.s32 1, %s17
    %s29 = scalar_select %p26, %s28, %s17
    %p30 = scmp.ge.s32.totalorder %s29, 1
    %s31 = scalar_select %p30, 0, %s29
    %s32 = sadd.s32 1, %s16
    %s33 = scalar_select %p30, %s32, %s16
    %p34 = scmp.ge.s32.totalorder %s33, 2
    %s35 = scalar_select %p34, 0, %s33
    %s36 = ssub.s32 %s16, %s35
    %s37 = ssub.s32 %s17, %s31
    %s38 = sor.u32 %s36, %s37
    %p39 = scmp.eq.s32.totalorder %s38, 0
    %s41 = sadd.s32 %s40, 1
    %s42 = scalar_select %p39, %s40, %s41
    %p45 = pneg %p39
    %p46 = scmp.eq.s32.totalorder %s9, 1
    %p47 = por %p45, %p46
    %p48 = scmp.ne.s32.totalorder %s40, %s43
    %p49 = scmp.eq.s32.totalorder %s9, 0
    %p50 = por %p48, %p49
    %p51 = scmp.ne.s32.totalorder %s40, %s43
    %p52 = scmp.eq.s32.totalorder %s14, 1
    %p53 = por %p51, %p52
    %p54 = scmp.ne.s32.totalorder %s43, %s44
    %p55 = scmp.eq.s32.totalorder %s14, 0
    %p56 = por %p54, %p55
    %p57 = scmp.ne.s32.totalorder %s43, %s44
    %p58 = scmp.eq.s32.totalorder %s15, 1
    %p59 = por %p57, %p58
    %p61 = scmp.ne.s32.totalorder %s44, %s60
    %p62 = scmp.eq.s32.totalorder %s15, 0
    %p63 = por %p61, %p62
    %s64 = ssub.s32 %s16, %s35
    %s65 = ssub.s32 %s18, %s27
    %s66 = sor.u32 %s64, %s65
    %s67 = ssub.s32 %s17, %s31
    %s68 = sor.u32 %s66, %s67
    %p69 = scmp.eq.s32.totalorder %s68, 0
    %s71 = sadd.s32 %s70, 1
    %s72 = scalar_select %p69, %s70, %s71
    %p75 = pneg %p69
    %p76 = scmp.eq.s32.totalorder %s9, 1
    %p77 = por %p75, %p76
    %p78 = scmp.ne.s32.totalorder %s70, %s73
    %p79 = scmp.eq.s32.totalorder %s9, 0
    %p80 = por %p78, %p79
    %p81 = scmp.ne.s32.totalorder %s70, %s73
    %p82 = scmp.eq.s32.totalorder %s14, 1
    %p83 = por %p81, %p82
    %p84 = scmp.ne.s32.totalorder %s73, %s74
    %p85 = scmp.eq.s32.totalorder %s14, 0
    %p86 = por %p84, %p85
    %p87 = scmp.ne.s32.totalorder %s73, %s74
    %p88 = scmp.eq.s32.totalorder %s15, 1
    %p89 = por %p87, %p88
    %p91 = scmp.ne.s32.totalorder %s74, %s90
    %p92 = scmp.eq.s32.totalorder %s15, 0
    %p93 = por %p91, %p92
    %s94 = ssub.s32 %s16, %s35
    %s95 = ssub.s32 %s18, %s27
    %s96 = sor.u32 %s94, %s95
    %s97 = ssub.s32 %s17, %s31
    %s98 = sor.u32 %s96, %s97
    %p99 = scmp.eq.s32.totalorder %s98, 0
    %s101 = sadd.s32 %s100, 1
    %s102 = scalar_select %p99, %s100, %s101
    %p105 = pneg %p99
    %p106 = scmp.eq.s32.totalorder %s9, 1
    %p107 = por %p105, %p106
    %p108 = scmp.ne.s32.totalorder %s100, %s103
    %p109 = scmp.eq.s32.totalorder %s9, 0
    %p110 = por %p108, %p109
    %p111 = scmp.ne.s32.totalorder %s100, %s103
    %p112 = scmp.eq.s32.totalorder %s14, 1
    %p113 = por %p111, %p112
    %p114 = scmp.ne.s32.totalorder %s103, %s104
    %p115 = scmp.eq.s32.totalorder %s14, 0
    %p116 = por %p114, %p115
    %p117 = scmp.ne.s32.totalorder %s103, %s104
    %p118 = scmp.eq.s32.totalorder %s15, 1
    %p119 = por %p117, %p118
    %p121 = scmp.ne.s32.totalorder %s104, %s120
    %p122 = scmp.eq.s32.totalorder %s15, 0
    %p123 = por %p121, %p122
    %s124 = ssub.s32 %s16, %s35
    %s125 = ssub.s32 %s17, %s31
    %s126 = sor.u32 %s124, %s125
    %p127 = scmp.eq.s32.totalorder %s126, 0
    %s129 = sadd.s32 %s128, 1
    %s130 = scalar_select %p127, %s128, %s129
    %p133 = pneg %p127
    %p134 = scmp.eq.s32.totalorder %s9, 1
    %p135 = por %p133, %p134
    %p136 = scmp.ne.s32.totalorder %s128, %s131
    %p137 = scmp.eq.s32.totalorder %s9, 0
    %p138 = por %p136, %p137
    %p139 = scmp.ne.s32.totalorder %s128, %s131
    %p140 = scmp.eq.s32.totalorder %s14, 1
    %p141 = por %p139, %p140
    %p142 = scmp.ne.s32.totalorder %s131, %s132
    %p143 = scmp.eq.s32.totalorder %s14, 0
    %p144 = por %p142, %p143
    %p145 = scmp.ne.s32.totalorder %s131, %s132
    %p146 = scmp.eq.s32.totalorder %s15, 1
    %p147 = por %p145, %p146
    %p149 = scmp.ne.s32.totalorder %s132, %s148
    %p150 = scmp.eq.s32.totalorder %s15, 0
    %p151 = por %p149, %p150
    %p152 = scmp.le.s32.totalorder 1, %s9
    %p153 = scmp.lt.s32.totalorder %s9, 3
    %p154 = pnand %p152, %p153
    %p155 = pneg %p154
    // Predicated region
    $region9: #{text_decoder_forward.33} parent=5 // pred_check
      _
    $region10: #{text_decoder_forward.33} parent=5 // pred_check_branch
      %157 = sbr.rel (%p154) target = $region12
    $region11: #{text_decoder_forward.33} parent=5 // pred_region
      %s158 = ssub.s32 %s9, 1
    $region12: #{text_decoder_forward.33} parent=5 // pred_fallthru
      _
    %p159 = scmp.lt.s32.totalorder %s9, 2
    // Predicated region
    $region13: #{text_decoder_forward.33} parent=5 // pred_check
      %p160 = pneg %p159
    $region14: #{text_decoder_forward.33} parent=5 // pred_check_branch
      %162 = sbr.rel (%p160) target = $region16
    $region15: #{text_decoder_forward.33} parent=5 // pred_region
      // Predicated region
      $region17: #{text_decoder_forward.33} parent=15 // pred_check
        %p163 = pneg %p50
      $region18: #{text_decoder_forward.33} parent=15 // pred_check_branch
        %165 = sbr.rel (%p163) target = $region20
      $region19: #{text_decoder_forward.33} parent=15 // pred_region
        %p166 = scmp.lt.s32.totalorder %s16, 1
        %s167 = scalar_select %p166, %s16, 1
        %p168 = scmp.lt.s32.totalorder %s17, 0
        %s169 = scalar_select %p168, %s17, 0
        %s170 = sadd.s32 %s169, %s167
        %s171 = smul.addr %s170, 4
        %s172 = scalar_lea.vmem %s0, %s171
      $region20: #{text_decoder_forward.33} parent=15 // pred_fallthru
        _
      // Predicated region
      $region21: #{text_decoder_forward.33} parent=15 // pred_check
        %p173 = pneg %p80
      $region22: #{text_decoder_forward.33} parent=15 // pred_check_branch
        %175 = sbr.rel (%p173) target = $region24
      $region23: #{text_decoder_forward.33} parent=15 // pred_region
        %s176 = smul.u32 2, %s18
        %p177 = scmp.lt.s32.totalorder %s16, 1
        %s178 = scalar_select %p177, %s16, 1
        %p179 = scmp.lt.s32.totalorder %s176, 1
        %s180 = scalar_select %p179, %s176, 1
        %p181 = scmp.lt.s32.totalorder %s17, 0
        %s182 = scalar_select %p181, %s17, 0
        %s183 = sadd.s32 %s182, %s180
        %s184 = smul.addr %s178, 2
        %s185 = sadd.s32 %s183, %s184
        %s186 = smul.addr %s185, 4
        %s187 = scalar_lea.vmem %s1, %s186
        %s188 = smul.u32 2, %s18
      $region24: #{text_decoder_forward.33} parent=15 // pred_fallthru
        _
      // Predicated region
      $region25: #{text_decoder_forward.33} parent=15 // pred_check
        %p189 = pneg %p110
      $region26: #{text_decoder_forward.33} parent=15 // pred_check_branch
        %191 = sbr.rel (%p189) target = $region28
      $region27: #{text_decoder_forward.33} parent=15 // pred_region
        %s192 = smul.u32 2, %s18
        %p193 = scmp.lt.s32.totalorder %s16, 1
        %s194 = scalar_select %p193, %s16, 1
        %p195 = scmp.lt.s32.totalorder %s192, 1
        %s196 = scalar_select %p195, %s192, 1
        %p197 = scmp.lt.s32.totalorder %s17, 0
        %s198 = scalar_select %p197, %s17, 0
        %s199 = sadd.s32 %s198, %s196
        %s200 = smul.addr %s194, 2
        %s201 = sadd.s32 %s199, %s200
        %s202 = smul.addr %s201, 4
        %s203 = scalar_lea.vmem %s2, %s202
        %s204 = smul.u32 2, %s18
      $region28: #{text_decoder_forward.33} parent=15 // pred_fallthru
        _
    $region16: #{text_decoder_forward.33} parent=5 // pred_fallthru
      _
    %p205 = scmp.le.s32.totalorder 1, %s9
    %p206 = scmp.lt.s32.totalorder %s9, 3
    %p207 = pnand %p205, %p206
    %p208 = pneg %p207
    // Predicated region
    $region29: #{text_decoder_forward.33} parent=5 // pred_check
      _
    $region30: #{text_decoder_forward.33} parent=5 // pred_check_branch
      %210 = sbr.rel (%p207) target = $region32
    $region31: #{text_decoder_forward.33} parent=5 // pred_region
      %s211 = ssub.s32 %s9, 1
      %p212 = scmp.lt.s32.totalorder %s19, 1
      %s213 = scalar_select %p212, %s19, 1
      %p214 = scmp.lt.s32.totalorder %s20, 0
      %s215 = scalar_select %p214, %s20, 0
      %s216 = sadd.s32 %s215, %s213
      %s217 = smul.addr %s216, 4
      %s218 = scalar_lea.vmem %s0, %s217
      %p219 = pneg %p56
      %p220 = pneg %p53
      %s221 = smul.u32 2, %s21
      %p222 = scmp.lt.s32.totalorder %s19, 1
      %s223 = scalar_select %p222, %s19, 1
      %p224 = scmp.lt.s32.totalorder %s221, 1
      %s225 = scalar_select %p224, %s221, 1
      %p226 = scmp.lt.s32.totalorder %s20, 0
      %s227 = scalar_select %p226, %s20, 0
      %s228 = sadd.s32 %s227, %s225
      %s229 = smul.addr %s223, 2
      %s230 = sadd.s32 %s228, %s229
      %s231 = smul.addr %s230, 4
      %s232 = scalar_lea.vmem %s1, %s231
      %p233 = pneg %p86
      %p234 = pneg %p83
      %s235 = smul.u32 2, %s21
      %p236 = scmp.lt.s32.totalorder %s19, 1
      %s237 = scalar_select %p236, %s19, 1
      %p238 = scmp.lt.s32.totalorder %s235, 1
      %s239 = scalar_select %p238, %s235, 1
      %p240 = scmp.lt.s32.totalorder %s20, 0
      %s241 = scalar_select %p240, %s20, 0
      %s242 = sadd.s32 %s241, %s239
      %s243 = smul.addr %s237, 2
      %s244 = sadd.s32 %s242, %s243
      %s245 = smul.addr %s244, 4
      %s246 = scalar_lea.vmem %s2, %s245
      %p247 = pneg %p116
      %p248 = pneg %p113
      %p249 = pneg %p144
      %p250 = pneg %p141
      %p251 = scmp.lt.s32.totalorder %s19, 1
      %s252 = scalar_select %p251, %s19, 1
      %p253 = scmp.lt.s32.totalorder %s20, 0
      %s254 = scalar_select %p253, %s20, 0
      %s255 = sadd.s32 %s254, %s252
      %s256 = smul.addr %s255, 4
      %s257 = scalar_lea.vmem %s3, %s256
      %p258 = scmp.lt.s32.totalorder %s19, 1
      %s259 = scalar_select %p258, %s19, 1
      %p260 = scmp.lt.s32.totalorder %s20, 0
      %s261 = scalar_select %p260, %s20, 0
      %s262 = sadd.s32 %s261, %s259
      %s263 = smul.addr %s262, 4
      %s264 = scalar_lea.vmem %s0, %s263
      %s265 = smul.u32 2, %s21
      %p266 = scmp.lt.s32.totalorder %s19, 1
      %s267 = scalar_select %p266, %s19, 1
      %p268 = scmp.lt.s32.totalorder %s265, 1
      %s269 = scalar_select %p268, %s265, 1
      %p270 = scmp.lt.s32.totalorder %s20, 0
      %s271 = scalar_select %p270, %s20, 0
      %s272 = sadd.s32 %s271, %s269
      %s273 = smul.addr %s267, 2
      %s274 = sadd.s32 %s272, %s273
      %s275 = smul.addr %s274, 4
      %s276 = scalar_lea.vmem %s1, %s275
      %s277 = smul.u32 2, %s21
      %s278 = smul.u32 2, %s21
      %p279 = scmp.lt.s32.totalorder %s19, 1
      %s280 = scalar_select %p279, %s19, 1
      %p281 = scmp.lt.s32.totalorder %s278, 1
      %s282 = scalar_select %p281, %s278, 1
      %p283 = scmp.lt.s32.totalorder %s20, 0
      %s284 = scalar_select %p283, %s20, 0
      %s285 = sadd.s32 %s284, %s282
      %s286 = smul.addr %s280, 2
      %s287 = sadd.s32 %s285, %s286
      %s288 = smul.addr %s287, 4
      %s289 = scalar_lea.vmem %s2, %s288
      %s290 = smul.u32 2, %s21
      %p291 = scmp.lt.s32.totalorder %s19, 1
      %s292 = scalar_select %p291, %s19, 1
      %p293 = scmp.lt.s32.totalorder %s20, 0
      %s294 = scalar_select %p293, %s20, 0
      %s295 = sadd.s32 %s294, %s292
      %s296 = smul.addr %s295, 4
      %s297 = scalar_lea.vmem %s3, %s296
      %p299 = scmp.eq.s32.totalorder %s21, 0
      // Predicated region
      $region33: #{text_decoder_forward.33} parent=31 // pred_check
        %p300 = pneg %p299
      $region34: #{text_decoder_forward.33} parent=31 // pred_check_branch
        %302 = sbr.rel (%p300) target = $region36
      $region35: #{text_decoder_forward.33} parent=31 // pred_region
        %vm303 = vcmask 7168
        %304 = vst.msk [vmem:[#allocation2] sm:$0xff] %vm303, -inf
        %305 = vst.msk [vmem:[#allocation2 + $0x8] sm:$0xff] %vm303, -inf
        %306 = vst.msk [vmem:[#allocation2 + $0x10] sm:$0xff] %vm303, -inf
        %307 = vst.msk [vmem:[#allocation2 + $0x18] sm:$0xff] %vm303, -inf
        %308 = vst.msk [vmem:[#allocation3] sm:$0xff] %vm303, 0.0
        %309 = vst.msk [vmem:[#allocation3 + $0x8] sm:$0xff] %vm303, 0.0
        %310 = vst.msk [vmem:[#allocation3 + $0x10] sm:$0xff] %vm303, 0.0
        %311 = vst.msk [vmem:[#allocation3 + $0x18] sm:$0xff] %vm303, 0.0
        %vm312 = vcmask 64512
        %313 = vst.msk [vmem:[#allocation4] sm:$0xff] %vm312, 0.0
        %314 = vst.msk [vmem:[#allocation4 + $0x8] sm:$0xff] %vm312, 0.0
        %315 = vst.msk [vmem:[#allocation4 + $0x10] sm:$0xff] %vm312, 0.0
        %316 = vst.msk [vmem:[#allocation4 + $0x18] sm:$0xff] %vm312, 0.0
      $region36: #{text_decoder_forward.33} parent=31 // pred_fallthru
        _
      %v317 = vld [vmem:[%s264] sm:$0xf]
      %v318 = vld [vmem:[%s276] sm:$0xf]
      %v319 = vld [vmem:[%s276 + $0x4] sm:$0xf]
      %v320 = vld [vmem:[%s289] sm:$0xf]
      %v321 = vld [vmem:[%s289 + $0x4] sm:$0xf]
      %v324 = vunpack.c.l.b16 %v318
      %v325 = vunpack.c.l.b16 %v319
      %v326 = vpack.c.b16 %v325, %v324
      %vm327 = vcmask 64512
      %v329 = vsel %vm327, %v317, 0
      %v332 = vsel %vm327, %v326, 0
      %334 = vmatprep.subr.bf16.mxu0 0
      %335 = vmatpush1.bf16.xpose.msra.mxu0 0
      %336 = vmatprep.subr.bf16.mxu0 0
      %337 = vmatpush1.bf16.xpose.msra.mxu0 0
      %338 = vmatprep.subr.bf16.mxu0 0
      %339 = vmatpush1.bf16.xpose.msra.mxu0 0
      %340 = vmatprep.subr.bf16.mxu0 0
      %341 = vmatpush1.bf16.xpose.msra.mxu0 0
      %342 = vmatprep.subr.bf16.mxu0 0
      %343 = vmatpush1.bf16.xpose.msra.mxu0 0
      %344 = vmatprep.subr.bf16.mxu0 0
      %345 = vmatpush1.bf16.xpose.msra.mxu0 0
      %346 = vmatprep.subr.bf16.mxu0 0
      %347 = vmatpush1.bf16.xpose.msra.mxu0 0
      %348 = vmatprep.subr.bf16.mxu0 0
      %349 = vmatpush1.bf16.xpose.msra.mxu0 %v332
      %350 = vmatprep.subr.bf16.mxu0 0
      %351 = vmatpush2.bf16.xpose.msra.mxu0 0
      %352 = vmatprep.subr.bf16.mxu0 0
      %353 = vmatpush2.bf16.xpose.msra.mxu0 0
      %354 = vmatprep.subr.bf16.mxu0 0
      %355 = vmatpush2.bf16.xpose.msra.mxu0 0
      %356 = vmatprep.subr.bf16.mxu0 0
      %357 = vmatpush2.bf16.xpose.msra.mxu0 0
      %358 = vmatprep.subr.bf16.mxu0 0
      %359 = vmatpush2.bf16.xpose.msra.mxu0 0
      %360 = vmatprep.subr.bf16.mxu0 0
      %361 = vmatpush2.bf16.xpose.msra.mxu0 0
      %362 = vmatprep.subr.bf16.mxu0 0
      %363 = vmatpush2.bf16.xpose.msra.mxu0 0
      %364 = vmatprep.subr.bf16.mxu0 0
      %365 = vmatpush2.bf16.xpose.msra.mxu0 0
      %366 = vmatprep.mubr.bf16.mxu0 0
      %367 = vmatmul.mubr.bf16.gmra.mxu0 %v329
      %v368 = vpop.f32.mrf.mxu0
      %v369 = vadd.f32 0.0, %v368
      %v370 = vpop.f32.mrf.mxu0
      %v371 = vpop.f32.mrf.mxu0
      %v372 = vpop.f32.mrf.mxu0
      %373 = vdwg.mxu0
      %v374 = vmul.f32 %v369, 0.35355338
      %v375 = vld [vmem:[#allocation2] sm:$0xff]
      %vm376 = vcmask 130048
      %v377 = vsel %vm376, %v374, -inf
      %378 = vmax.xlane.f32.xlu0 %v377
      %v379 = vpop.xlane.xlu0 %378
      %v380 = vmax.f32 %v375, %v379
      %v381 = vsub.f32 %v375, %v380
      %v382 = vmul.f32 %v381, 1.442695
      %v383 = vpow.pop %v382
      %385 = vset.pattern.permute.xlu0 0
      %386 = vperm.xlu0 %385, %v380
      %v387 = vpop.permute.xlu0 %386
      %v389 = vsub.f32 %v374, %v387
      %v390 = vmul.f32 %v389, 1.442695
      %v391 = vpow.pop %v390
      %v392 = vld [vmem:[#allocation3] sm:$0xff]
      %v393 = vmul.f32 %v383, %v392
      %v394 = vsel %vm376, %v391, 0.0
      %395 = vadd.xlane.f32.xlu0 %v394
      %v396 = vpop.xlane.xlu0 %395
      %v397 = vadd.f32 %v393, %v396
      %vm398 = vcmask 7168
      %399 = vst.msk [vmem:[#allocation3] sm:$0xff] %vm398, %v397
      %v400 = vld [vmem:[#allocation4] sm:$0xff]
      %402 = vset.pattern.permute.xlu0 0
      %403 = vperm.xlu0 %402, %v383
      %v404 = vpop.permute.xlu0 %403
      %v406 = vmul.f32 %v404, %v400
      %v407 = vpack.c.bf16 %v391, %v391
      %v410 = vunpack.c.l.b16 %v320
      %v411 = vunpack.c.l.b16 %v321
      %v412 = vpack.c.b16 %v411, %v410
      %v415 = vsel %vm376, %v407, 0
      %417 = vmatprep.subr.bf16.mxu0 0
      %418 = vmatpush1.bf16.msra.mxu0 0
      %419 = vmatprep.subr.bf16.mxu0 0
      %420 = vmatpush1.bf16.msra.mxu0 0
      %421 = vmatprep.subr.bf16.mxu0 0
      %422 = vmatpush1.bf16.msra.mxu0 0
      %423 = vmatprep.subr.bf16.mxu0 0
      %424 = vmatpush1.bf16.msra.mxu0 0
      %425 = vmatprep.subr.bf16.mxu0 0
      %426 = vmatpush1.bf16.msra.mxu0 0
      %427 = vmatprep.subr.bf16.mxu0 0
      %428 = vmatpush1.bf16.msra.mxu0 0
      %429 = vmatprep.subr.bf16.mxu0 0
      %430 = vmatpush1.bf16.msra.mxu0 0
      %431 = vmatprep.subr.bf16.mxu0 0
      %432 = vmatpush1.bf16.msra.mxu0 %v412
      %433 = vmatprep.subr.bf16.mxu0 0
      %434 = vmatpush2.bf16.msra.mxu0 0
      %435 = vmatprep.subr.bf16.mxu0 0
      %436 = vmatpush2.bf16.msra.mxu0 0
      %437 = vmatprep.subr.bf16.mxu0 0
      %438 = vmatpush2.bf16.msra.mxu0 0
      %439 = vmatprep.subr.bf16.mxu0 0
      %440 = vmatpush2.bf16.msra.mxu0 0
      %441 = vmatprep.subr.bf16.mxu0 0
      %442 = vmatpush2.bf16.msra.mxu0 0
      %443 = vmatprep.subr.bf16.mxu0 0
      %444 = vmatpush2.bf16.msra.mxu0 0
      %445 = vmatprep.subr.bf16.mxu0 0
      %446 = vmatpush2.bf16.msra.mxu0 0
      %447 = vmatprep.subr.bf16.mxu0 0
      %448 = vmatpush2.bf16.msra.mxu0 0
      %449 = vmatprep.mubr.bf16.mxu0 0
      %450 = vmatmul.mubr.bf16.gmra.mxu0 %v415
      %v451 = vpop.f32.mrf.mxu0
      %v452 = vadd.f32 0.0, %v451
      %v453 = vpop.f32.mrf.mxu0
      %v454 = vpop.f32.mrf.mxu0
      %v455 = vpop.f32.mrf.mxu0
      %456 = vdwg.mxu0
      %v457 = vadd.f32 %v406, %v452
      %458 = vst.msk [vmem:[#allocation4] sm:$0xff] %vm327, %v457
      %459 = vst.msk [vmem:[#allocation2] sm:$0xff] %vm398, %v380
      %v461 = vunpack.c.l.b16 %v317
      %v462 = vpack.c.b16 %v461, %v461
      %463 = vrot.lane.b32.xlu0 %v462, 120
      %v464 = vpop.permute.xlu0 %463
      %465 = vrot.lane.b32.xlu0 %v326, 120
      %v466 = vpop.permute.xlu0 %465
      %v468 = vsel %vm327, %v464, 0
      %v471 = vsel %vm327, %v466, 0
      %473 = vmatprep.subr.bf16.mxu0 0
      %474 = vmatpush1.bf16.xpose.msra.mxu0 0
      %475 = vmatprep.subr.bf16.mxu0 0
      %476 = vmatpush1.bf16.xpose.msra.mxu0 0
      %477 = vmatprep.subr.bf16.mxu0 0
      %478 = vmatpush1.bf16.xpose.msra.mxu0 0
      %479 = vmatprep.subr.bf16.mxu0 0
      %480 = vmatpush1.bf16.xpose.msra.mxu0 0
      %481 = vmatprep.subr.bf16.mxu0 0
      %482 = vmatpush1.bf16.xpose.msra.mxu0 0
      %483 = vmatprep.subr.bf16.mxu0 0
      %484 = vmatpush1.bf16.xpose.msra.mxu0 0
      %485 = vmatprep.subr.bf16.mxu0 0
      %486 = vmatpush1.bf16.xpose.msra.mxu0 0
      %487 = vmatprep.subr.bf16.mxu0 0
      %488 = vmatpush1.bf16.xpose.msra.mxu0 %v471
      %489 = vmatprep.subr.bf16.mxu0 0
      %490 = vmatpush2.bf16.xpose.msra.mxu0 0
      %491 = vmatprep.subr.bf16.mxu0 0
      %492 = vmatpush2.bf16.xpose.msra.mxu0 0
      %493 = vmatprep.subr.bf16.mxu0 0
      %494 = vmatpush2.bf16.xpose.msra.mxu0 0
      %495 = vmatprep.subr.bf16.mxu0 0
      %496 = vmatpush2.bf16.xpose.msra.mxu0 0
      %497 = vmatprep.subr.bf16.mxu0 0
      %498 = vmatpush2.bf16.xpose.msra.mxu0 0
      %499 = vmatprep.subr.bf16.mxu0 0
      %500 = vmatpush2.bf16.xpose.msra.mxu0 0
      %501 = vmatprep.subr.bf16.mxu0 0
      %502 = vmatpush2.bf16.xpose.msra.mxu0 0
      %503 = vmatprep.subr.bf16.mxu0 0
      %504 = vmatpush2.bf16.xpose.msra.mxu0 0
      %505 = vmatprep.mubr.bf16.mxu0 0
      %506 = vmatmul.mubr.bf16.gmra.mxu0 %v468
      %v507 = vpop.f32.mrf.mxu0
      %v508 = vadd.f32 0.0, %v507
      %v509 = vpop.f32.mrf.mxu0
      %v510 = vpop.f32.mrf.mxu0
      %v511 = vpop.f32.mrf.mxu0
      %512 = vdwg.mxu0
      %v513 = vmul.f32 %v508, 0.35355338
      %s514 = scalar_lea.vmem [#allocation2], 8
      %v515 = vld [vmem:[%s514] sm:$0xff]
      %v516 = vsel %vm376, %v513, -inf
      %517 = vmax.xlane.f32.xlu0 %v516
      %v518 = vpop.xlane.xlu0 %517
      %v519 = vmax.f32 %v515, %v518
      %v520 = vsub.f32 %v515, %v519
      %v521 = vmul.f32 %v520, 1.442695
      %v522 = vpow.pop %v521
      %524 = vset.pattern.permute.xlu0 0
      %525 = vperm.xlu0 %524, %v519
      %v526 = vpop.permute.xlu0 %525
      %v528 = vsub.f32 %v513, %v526
      %v529 = vmul.f32 %v528, 1.442695
      %v530 = vpow.pop %v529
      %s531 = scalar_lea.vmem [#allocation3], 8
      %v532 = vld [vmem:[%s531] sm:$0xff]
      %v533 = vmul.f32 %v522, %v532
      %v534 = vsel %vm376, %v530, 0.0
      %535 = vadd.xlane.f32.xlu0 %v534
      %v536 = vpop.xlane.xlu0 %535
      %v537 = vadd.f32 %v533, %v536
      %538 = vst.msk [vmem:[%s531] sm:$0xff] %vm398, %v537
      %s539 = scalar_lea.vmem [#allocation4], 8
      %v540 = vld [vmem:[%s539] sm:$0xff]
      %542 = vset.pattern.permute.xlu0 0
      %543 = vperm.xlu0 %542, %v522
      %v544 = vpop.permute.xlu0 %543
      %v546 = vmul.f32 %v544, %v540
      %v547 = vpack.c.bf16 %v530, %v530
      %548 = vrot.lane.b32.xlu0 %v412, 120
      %v549 = vpop.permute.xlu0 %548
      %v552 = vsel %vm376, %v547, 0
      %554 = vmatprep.subr.bf16.mxu0 0
      %555 = vmatpush1.bf16.msra.mxu0 0
      %556 = vmatprep.subr.bf16.mxu0 0
      %557 = vmatpush1.bf16.msra.mxu0 0
      %558 = vmatprep.subr.bf16.mxu0 0
      %559 = vmatpush1.bf16.msra.mxu0 0
      %560 = vmatprep.subr.bf16.mxu0 0
      %561 = vmatpush1.bf16.msra.mxu0 0
      %562 = vmatprep.subr.bf16.mxu0 0
      %563 = vmatpush1.bf16.msra.mxu0 0
      %564 = vmatprep.subr.bf16.mxu0 0
      %565 = vmatpush1.bf16.msra.mxu0 0
      %566 = vmatprep.subr.bf16.mxu0 0
      %567 = vmatpush1.bf16.msra.mxu0 0
      %568 = vmatprep.subr.bf16.mxu0 0
      %569 = vmatpush1.bf16.msra.mxu0 %v549
      %570 = vmatprep.subr.bf16.mxu0 0
      %571 = vmatpush2.bf16.msra.mxu0 0
      %572 = vmatprep.subr.bf16.mxu0 0
      %573 = vmatpush2.bf16.msra.mxu0 0
      %574 = vmatprep.subr.bf16.mxu0 0
      %575 = vmatpush2.bf16.msra.mxu0 0
      %576 = vmatprep.subr.bf16.mxu0 0
      %577 = vmatpush2.bf16.msra.mxu0 0
      %578 = vmatprep.subr.bf16.mxu0 0
      %579 = vmatpush2.bf16.msra.mxu0 0
      %580 = vmatprep.subr.bf16.mxu0 0
      %581 = vmatpush2.bf16.msra.mxu0 0
      %582 = vmatprep.subr.bf16.mxu0 0
      %583 = vmatpush2.bf16.msra.mxu0 0
      %584 = vmatprep.subr.bf16.mxu0 0
      %585 = vmatpush2.bf16.msra.mxu0 0
      %586 = vmatprep.mubr.bf16.mxu0 0
      %587 = vmatmul.mubr.bf16.gmra.mxu0 %v552
      %v588 = vpop.f32.mrf.mxu0
      %v589 = vadd.f32 0.0, %v588
      %v590 = vpop.f32.mrf.mxu0
      %v591 = vpop.f32.mrf.mxu0
      %v592 = vpop.f32.mrf.mxu0
      %593 = vdwg.mxu0
      %v594 = vadd.f32 %v546, %v589
      %595 = vst.msk [vmem:[%s539] sm:$0xff] %vm327, %v594
      %596 = vst.msk [vmem:[%s514] sm:$0xff] %vm398, %v519
      %597 = vrot.lane.b32.xlu0 %v462, 112
      %v598 = vpop.permute.xlu0 %597
      %599 = vrot.lane.b32.xlu0 %v326, 112
      %v600 = vpop.permute.xlu0 %599
      %v602 = vsel %vm327, %v598, 0
      %v605 = vsel %vm327, %v600, 0
      %607 = vmatprep.subr.bf16.mxu0 0
      %608 = vmatpush1.bf16.xpose.msra.mxu0 0
      %609 = vmatprep.subr.bf16.mxu0 0
      %610 = vmatpush1.bf16.xpose.msra.mxu0 0
      %611 = vmatprep.subr.bf16.mxu0 0
      %612 = vmatpush1.bf16.xpose.msra.mxu0 0
      %613 = vmatprep.subr.bf16.mxu0 0
      %614 = vmatpush1.bf16.xpose.msra.mxu0 0
      %615 = vmatprep.subr.bf16.mxu0 0
      %616 = vmatpush1.bf16.xpose.msra.mxu0 0
      %617 = vmatprep.subr.bf16.mxu0 0
      %618 = vmatpush1.bf16.xpose.msra.mxu0 0
      %619 = vmatprep.subr.bf16.mxu0 0
      %620 = vmatpush1.bf16.xpose.msra.mxu0 0
      %621 = vmatprep.subr.bf16.mxu0 0
      %622 = vmatpush1.bf16.xpose.msra.mxu0 %v605
      %623 = vmatprep.subr.bf16.mxu0 0
      %624 = vmatpush2.bf16.xpose.msra.mxu0 0
      %625 = vmatprep.subr.bf16.mxu0 0
      %626 = vmatpush2.bf16.xpose.msra.mxu0 0
      %627 = vmatprep.subr.bf16.mxu0 0
      %628 = vmatpush2.bf16.xpose.msra.mxu0 0
      %629 = vmatprep.subr.bf16.mxu0 0
      %630 = vmatpush2.bf16.xpose.msra.mxu0 0
      %631 = vmatprep.subr.bf16.mxu0 0
      %632 = vmatpush2.bf16.xpose.msra.mxu0 0
      %633 = vmatprep.subr.bf16.mxu0 0
      %634 = vmatpush2.bf16.xpose.msra.mxu0 0
      %635 = vmatprep.subr.bf16.mxu0 0
      %636 = vmatpush2.bf16.xpose.msra.mxu0 0
      %637 = vmatprep.subr.bf16.mxu0 0
      %638 = vmatpush2.bf16.xpose.msra.mxu0 0
      %639 = vmatprep.mubr.bf16.mxu0 0
      %640 = vmatmul.mubr.bf16.gmra.mxu0 %v602
      %v641 = vpop.f32.mrf.mxu0
      %v642 = vadd.f32 0.0, %v641
      %v643 = vpop.f32.mrf.mxu0
      %v644 = vpop.f32.mrf.mxu0
      %v645 = vpop.f32.mrf.mxu0
      %646 = vdwg.mxu0
      %v647 = vmul.f32 %v642, 0.35355338
      %s648 = scalar_lea.vmem [#allocation2], 16
      %v649 = vld [vmem:[%s648] sm:$0xff]
      %v650 = vsel %vm376, %v647, -inf
      %651 = vmax.xlane.f32.xlu0 %v650
      %v652 = vpop.xlane.xlu0 %651
      %v653 = vmax.f32 %v649, %v652
      %v654 = vsub.f32 %v649, %v653
      %v655 = vmul.f32 %v654, 1.442695
      %v656 = vpow.pop %v655
      %658 = vset.pattern.permute.xlu0 0
      %659 = vperm.xlu0 %658, %v653
      %v660 = vpop.permute.xlu0 %659
      %v662 = vsub.f32 %v647, %v660
      %v663 = vmul.f32 %v662, 1.442695
      %v664 = vpow.pop %v663
      %s665 = scalar_lea.vmem [#allocation3], 16
      %v666 = vld [vmem:[%s665] sm:$0xff]
      %v667 = vmul.f32 %v656, %v666
      %v668 = vsel %vm376, %v664, 0.0
      %669 = vadd.xlane.f32.xlu0 %v668
      %v670 = vpop.xlane.xlu0 %669
      %v671 = vadd.f32 %v667, %v670
      %672 = vst.msk [vmem:[%s665] sm:$0xff] %vm398, %v671
      %s673 = scalar_lea.vmem [#allocation4], 16
      %v674 = vld [vmem:[%s673] sm:$0xff]
      %676 = vset.pattern.permute.xlu0 0
      %677 = vperm.xlu0 %676, %v656
      %v678 = vpop.permute.xlu0 %677
      %v680 = vmul.f32 %v678, %v674
      %v681 = vpack.c.bf16 %v664, %v664
      %682 = vrot.lane.b32.xlu0 %v412, 112
      %v683 = vpop.permute.xlu0 %682
      %v686 = vsel %vm376, %v681, 0
      %688 = vmatprep.subr.bf16.mxu0 0
      %689 = vmatpush1.bf16.msra.mxu0 0
      %690 = vmatprep.subr.bf16.mxu0 0
      %691 = vmatpush1.bf16.msra.mxu0 0
      %692 = vmatprep.subr.bf16.mxu0 0
      %693 = vmatpush1.bf16.msra.mxu0 0
      %694 = vmatprep.subr.bf16.mxu0 0
      %695 = vmatpush1.bf16.msra.mxu0 0
      %696 = vmatprep.subr.bf16.mxu0 0
      %697 = vmatpush1.bf16.msra.mxu0 0
      %698 = vmatprep.subr.bf16.mxu0 0
      %699 = vmatpush1.bf16.msra.mxu0 0
      %700 = vmatprep.subr.bf16.mxu0 0
      %701 = vmatpush1.bf16.msra.mxu0 0
      %702 = vmatprep.subr.bf16.mxu0 0
      %703 = vmatpush1.bf16.msra.mxu0 %v683
      %704 = vmatprep.subr.bf16.mxu0 0
      %705 = vmatpush2.bf16.msra.mxu0 0
      %706 = vmatprep.subr.bf16.mxu0 0
      %707 = vmatpush2.bf16.msra.mxu0 0
      %708 = vmatprep.subr.bf16.mxu0 0
      %709 = vmatpush2.bf16.msra.mxu0 0
      %710 = vmatprep.subr.bf16.mxu0 0
      %711 = vmatpush2.bf16.msra.mxu0 0
      %712 = vmatprep.subr.bf16.mxu0 0
      %713 = vmatpush2.bf16.msra.mxu0 0
      %714 = vmatprep.subr.bf16.mxu0 0
      %715 = vmatpush2.bf16.msra.mxu0 0
      %716 = vmatprep.subr.bf16.mxu0 0
      %717 = vmatpush2.bf16.msra.mxu0 0
      %718 = vmatprep.subr.bf16.mxu0 0
      %719 = vmatpush2.bf16.msra.mxu0 0
      %720 = vmatprep.mubr.bf16.mxu0 0
      %721 = vmatmul.mubr.bf16.gmra.mxu0 %v686
      %v722 = vpop.f32.mrf.mxu0
      %v723 = vadd.f32 0.0, %v722
      %v724 = vpop.f32.mrf.mxu0
      %v725 = vpop.f32.mrf.mxu0
      %v726 = vpop.f32.mrf.mxu0
      %727 = vdwg.mxu0
      %v728 = vadd.f32 %v680, %v723
      %729 = vst.msk [vmem:[%s673] sm:$0xff] %vm327, %v728
      %730 = vst.msk [vmem:[%s648] sm:$0xff] %vm398, %v653
      %731 = vrot.lane.b32.xlu0 %v462, 104
      %v732 = vpop.permute.xlu0 %731
      %733 = vrot.lane.b32.xlu0 %v326, 104
      %v734 = vpop.permute.xlu0 %733
      %v736 = vsel %vm327, %v732, 0
      %v739 = vsel %vm327, %v734, 0
      %741 = vmatprep.subr.bf16.mxu0 0
      %742 = vmatpush1.bf16.xpose.msra.mxu0 0
      %743 = vmatprep.subr.bf16.mxu0 0
      %744 = vmatpush1.bf16.xpose.msra.mxu0 0
      %745 = vmatprep.subr.bf16.mxu0 0
      %746 = vmatpush1.bf16.xpose.msra.mxu0 0
      %747 = vmatprep.subr.bf16.mxu0 0
      %748 = vmatpush1.bf16.xpose.msra.mxu0 0
      %749 = vmatprep.subr.bf16.mxu0 0
      %750 = vmatpush1.bf16.xpose.msra.mxu0 0
      %751 = vmatprep.subr.bf16.mxu0 0
      %752 = vmatpush1.bf16.xpose.msra.mxu0 0
      %753 = vmatprep.subr.bf16.mxu0 0
      %754 = vmatpush1.bf16.xpose.msra.mxu0 0
      %755 = vmatprep.subr.bf16.mxu0 0
      %756 = vmatpush1.bf16.xpose.msra.mxu0 %v739
      %757 = vmatprep.subr.bf16.mxu0 0
      %758 = vmatpush2.bf16.xpose.msra.mxu0 0
      %759 = vmatprep.subr.bf16.mxu0 0
      %760 = vmatpush2.bf16.xpose.msra.mxu0 0
      %761 = vmatprep.subr.bf16.mxu0 0
      %762 = vmatpush2.bf16.xpose.msra.mxu0 0
      %763 = vmatprep.subr.bf16.mxu0 0
      %764 = vmatpush2.bf16.xpose.msra.mxu0 0
      %765 = vmatprep.subr.bf16.mxu0 0
      %766 = vmatpush2.bf16.xpose.msra.mxu0 0
      %767 = vmatprep.subr.bf16.mxu0 0
      %768 = vmatpush2.bf16.xpose.msra.mxu0 0
      %769 = vmatprep.subr.bf16.mxu0 0
      %770 = vmatpush2.bf16.xpose.msra.mxu0 0
      %771 = vmatprep.subr.bf16.mxu0 0
      %772 = vmatpush2.bf16.xpose.msra.mxu0 0
      %773 = vmatprep.mubr.bf16.mxu0 0
      %774 = vmatmul.mubr.bf16.gmra.mxu0 %v736
      %v775 = vpop.f32.mrf.mxu0
      %v776 = vadd.f32 0.0, %v775
      %v777 = vpop.f32.mrf.mxu0
      %v778 = vpop.f32.mrf.mxu0
      %v779 = vpop.f32.mrf.mxu0
      %780 = vdwg.mxu0
      %v781 = vmul.f32 %v776, 0.35355338
      %s782 = scalar_lea.vmem [#allocation2], 24
      %v783 = vld [vmem:[%s782] sm:$0xff]
      %v784 = vsel %vm376, %v781, -inf
      %785 = vmax.xlane.f32.xlu0 %v784
      %v786 = vpop.xlane.xlu0 %785
      %v787 = vmax.f32 %v783, %v786
      %v788 = vsub.f32 %v783, %v787
      %v789 = vmul.f32 %v788, 1.442695
      %v790 = vpow.pop %v789
      %792 = vset.pattern.permute.xlu0 0
      %793 = vperm.xlu0 %792, %v787
      %v794 = vpop.permute.xlu0 %793
      %v796 = vsub.f32 %v781, %v794
      %v797 = vmul.f32 %v796, 1.442695
      %v798 = vpow.pop %v797
      %s799 = scalar_lea.vmem [#allocation3], 24
      %v800 = vld [vmem:[%s799] sm:$0xff]
      %v801 = vmul.f32 %v790, %v800
      %v802 = vsel %vm376, %v798, 0.0
      %803 = vadd.xlane.f32.xlu0 %v802
      %v804 = vpop.xlane.xlu0 %803
      %v805 = vadd.f32 %v801, %v804
      %806 = vst.msk [vmem:[%s799] sm:$0xff] %vm398, %v805
      %s807 = scalar_lea.vmem [#allocation4], 24
      %v808 = vld [vmem:[%s807] sm:$0xff]
      %810 = vset.pattern.permute.xlu0 0
      %811 = vperm.xlu0 %810, %v790
      %v812 = vpop.permute.xlu0 %811
      %v814 = vmul.f32 %v812, %v808
      %v815 = vpack.c.bf16 %v798, %v798
      %816 = vrot.lane.b32.xlu0 %v412, 104
      %v817 = vpop.permute.xlu0 %816
      %v820 = vsel %vm376, %v815, 0
      %822 = vmatprep.subr.bf16.mxu0 0
      %823 = vmatpush1.bf16.msra.mxu0 0
      %824 = vmatprep.subr.bf16.mxu0 0
      %825 = vmatpush1.bf16.msra.mxu0 0
      %826 = vmatprep.subr.bf16.mxu0 0
      %827 = vmatpush1.bf16.msra.mxu0 0
      %828 = vmatprep.subr.bf16.mxu0 0
      %829 = vmatpush1.bf16.msra.mxu0 0
      %830 = vmatprep.subr.bf16.mxu0 0
      %831 = vmatpush1.bf16.msra.mxu0 0
      %832 = vmatprep.subr.bf16.mxu0 0
      %833 = vmatpush1.bf16.msra.mxu0 0
      %834 = vmatprep.subr.bf16.mxu0 0
      %835 = vmatpush1.bf16.msra.mxu0 0
      %836 = vmatprep.subr.bf16.mxu0 0
      %837 = vmatpush1.bf16.msra.mxu0 %v817
      %838 = vmatprep.subr.bf16.mxu0 0
      %839 = vmatpush2.bf16.msra.mxu0 0
      %840 = vmatprep.subr.bf16.mxu0 0
      %841 = vmatpush2.bf16.msra.mxu0 0
      %842 = vmatprep.subr.bf16.mxu0 0
      %843 = vmatpush2.bf16.msra.mxu0 0
      %844 = vmatprep.subr.bf16.mxu0 0
      %845 = vmatpush2.bf16.msra.mxu0 0
      %846 = vmatprep.subr.bf16.mxu0 0
      %847 = vmatpush2.bf16.msra.mxu0 0
      %848 = vmatprep.subr.bf16.mxu0 0
      %849 = vmatpush2.bf16.msra.mxu0 0
      %850 = vmatprep.subr.bf16.mxu0 0
      %851 = vmatpush2.bf16.msra.mxu0 0
      %852 = vmatprep.subr.bf16.mxu0 0
      %853 = vmatpush2.bf16.msra.mxu0 0
      %854 = vmatprep.mubr.bf16.mxu0 0
      %855 = vmatmul.mubr.bf16.gmra.mxu0 %v820
      %v856 = vpop.f32.mrf.mxu0
      %v857 = vadd.f32 0.0, %v856
      %v858 = vpop.f32.mrf.mxu0
      %v859 = vpop.f32.mrf.mxu0
      %v860 = vpop.f32.mrf.mxu0
      %861 = vdwg.mxu0
      %v862 = vadd.f32 %v814, %v857
      %863 = vst.msk [vmem:[%s807] sm:$0xff] %vm327, %v862
      %864 = vst.msk [vmem:[%s782] sm:$0xff] %vm398, %v787
      // Predicated region
      $region37: #{text_decoder_forward.33} parent=31 // pred_check
        %p865 = pneg %p299
      $region38: #{text_decoder_forward.33} parent=31 // pred_check_branch
        %867 = sbr.rel (%p865) target = $region40
      $region39: #{text_decoder_forward.33} parent=31 // pred_region
        %v868 = vld [vmem:[#allocation3] sm:$0xff]
        %v869 = vrcp.pop %v868
        %v870 = vld [vmem:[#allocation4] sm:$0xff]
        %872 = vset.pattern.permute.xlu0 0
        %873 = vperm.xlu0 %872, %v869
        %v874 = vpop.permute.xlu0 %873
        %v876 = vmul.f32 %v870, %v874
        %v877 = vpack.c.bf16 %v876, %v876
        %vm878 = vcmask 60416
        %879 = vst.msk [vmem:[%s297] sm:$0xf] %vm878, %v877
        %v880 = vld [vmem:[%s531] sm:$0xff]
        %v881 = vrcp.pop %v880
        %v882 = vld [vmem:[%s539] sm:$0xff]
        %884 = vset.pattern.permute.xlu0 0
        %885 = vperm.xlu0 %884, %v881
        %v886 = vpop.permute.xlu0 %885
        %v888 = vmul.f32 %v882, %v886
        %v889 = vpack.c.bf16 %v888, %v888
        %v891 = vunpack.c.l.b16 %v889
        %v892 = vpack.c.b16 %v891, %v891
        %893 = vrot.lane.b32.xlu0 %v892, 8
        %v894 = vpop.permute.xlu0 %893
        %vm896 = vcmask 126016
        %897 = vst.msk [vmem:[%s297] sm:$0xf] %vm896, %v894
        %v898 = vld [vmem:[%s665] sm:$0xff]
        %v899 = vrcp.pop %v898
        %v900 = vld [vmem:[%s673] sm:$0xff]
        %902 = vset.pattern.permute.xlu0 0
        %903 = vperm.xlu0 %902, %v899
        %v904 = vpop.permute.xlu0 %903
        %v906 = vmul.f32 %v900, %v904
        %v907 = vpack.c.bf16 %v906, %v906
        %v909 = vunpack.c.l.b16 %v907
        %v910 = vpack.c.b16 %v909, %v909
        %911 = vrot.lane.b32.xlu0 %v910, 16
        %v912 = vpop.permute.xlu0 %911
        %vm914 = vcmask 191616
        %915 = vst.msk [vmem:[%s297] sm:$0xf] %vm914, %v912
        %v916 = vld [vmem:[%s799] sm:$0xff]
        %v917 = vrcp.pop %v916
        %v918 = vld [vmem:[%s807] sm:$0xff]
        %920 = vset.pattern.permute.xlu0 0
        %921 = vperm.xlu0 %920, %v917
        %v922 = vpop.permute.xlu0 %921
        %v924 = vmul.f32 %v918, %v922
        %v925 = vpack.c.bf16 %v924, %v924
        %v927 = vunpack.c.l.b16 %v925
        %v928 = vpack.c.b16 %v927, %v927
        %929 = vrot.lane.b32.xlu0 %v928, 24
        %v930 = vpop.permute.xlu0 %929
        %vm932 = vcmask 257216
        %933 = vst.msk [vmem:[%s297] sm:$0xf] %vm932, %v930
      $region40: #{text_decoder_forward.33} parent=31 // pred_fallthru
        _
      %p934 = scmp.lt.s32.totalorder %s19, 1
      %s935 = scalar_select %p934, %s19, 1
      %p936 = scmp.lt.s32.totalorder %s20, 0
      %s937 = scalar_select %p936, %s20, 0
      %s938 = sadd.s32 %s937, %s935
      %s939 = smul.addr %s938, 4
      %s940 = scalar_lea.vmem %s3, %s939
      // Predicated region
      $region41: #{text_decoder_forward.33} parent=31 // pred_check
        %p941 = pneg %p141
      $region42: #{text_decoder_forward.33} parent=31 // pred_check_branch
        %943 = sbr.rel (%p941) target = $region44
      $region43: #{text_decoder_forward.33} parent=31 // pred_region
        _
      $region44: #{text_decoder_forward.33} parent=31 // pred_fallthru
        _
    $region32: #{text_decoder_forward.33} parent=5 // pred_fallthru
      _
    %p944 = scmp.le.s32.totalorder 2, %s9
    // Predicated region
    $region45: #{text_decoder_forward.33} parent=5 // pred_check
      %p945 = pneg %p944
    $region46: #{text_decoder_forward.33} parent=5 // pred_check_branch
      %947 = sbr.rel (%p945) target = $region48
    $region47: #{text_decoder_forward.33} parent=5 // pred_region
      %s948 = ssub.s32 %s9, 2
      // Predicated region
      $region49: #{text_decoder_forward.33} parent=47 // pred_check
        %p949 = pneg %p147
      $region50: #{text_decoder_forward.33} parent=47 // pred_check_branch
        %951 = sbr.rel (%p949) target = $region52
      $region51: #{text_decoder_forward.33} parent=47 // pred_region
        %p952 = scmp.lt.s32.totalorder %s22, 1
        %s953 = scalar_select %p952, %s22, 1
        %p954 = scmp.lt.s32.totalorder %s23, 0
        %s955 = scalar_select %p954, %s23, 0
        %s956 = sadd.s32 %s955, %s953
        %s957 = smul.addr %s956, 4
        %s958 = scalar_lea.vmem %s3, %s957
      $region52: #{text_decoder_forward.33} parent=47 // pred_fallthru
        _
    $region48: #{text_decoder_forward.33} parent=5 // pred_fallthru
      _
  $region6: #{text_decoder_forward.33} parent=0 // loop_footer
    %s13 = sadd.s32 1, %s9
  $region7: #{text_decoder_forward.33} parent=0 // loop_footer_branch
    %8 = sbr.rel target = $region3
  $region8: #{text_decoder_forward.33} parent=0 // loop_exit
    _

// kernel: text_decoder_forward.51
$region0: #{text_decoder_forward.51}
  #allocation0 [shape = 'u32[]', space=smem, size = 0x4, offset = 0x4, fixed_abs, tag = 'smem constant byte address 0x4 - core index']
  #allocation1 [shape = 'u32[144,128]{1,0:T(1,128)}', space=vmem, size = 0x12000, scoped, tag = 'internal scratch']
  #allocation2 [shape = 'f32[16,512]{1,0:T(8,128)}', space=vmem, size = 0x8000, scoped, tag = 'scratch operand']
  %s0 = inlined_call_operand.vmem [shape: bf16[16,128], index: 0, kind: input, shape index: {}]
  %s1 = inlined_call_operand.vmem [shape: bf16[512,128], index: 1, kind: input, shape index: {}]
  %s2 = inlined_call_operand.vmem [shape: f32[16,512], index: 2, kind: output, shape index: {}]
  %s3 = sld [smem:[#allocation0]]
  $region26: #{text_decoder_forward.51} parent=0
    _
  %s5 = ssub.s32 1, %s3
  %s6 = scalar_select 0, %s5, %s3
  // Predicated region
  $region2: #{text_decoder_forward.51} parent=0 // pred_check
    _
  $region3: #{text_decoder_forward.51} parent=0 // pred_check_branch
    %8 = sbr.rel (0) target = $region5
  $region4: #{text_decoder_forward.51} parent=0 // pred_region
    _
  $region5: #{text_decoder_forward.51} parent=0 // pred_fallthru
    _
  // Predicated region
  $region6: #{text_decoder_forward.51} parent=0 // pred_check
    _
  $region7: #{text_decoder_forward.51} parent=0 // pred_check_branch
    %10 = sbr.rel (0) target = $region9
  $region8: #{text_decoder_forward.51} parent=0 // pred_region
    _
  $region9: #{text_decoder_forward.51} parent=0 // pred_fallthru
    _
  %p12 = scmp.eq.s32.totalorder 0, 0
  // Predicated region
  $region10: #{text_decoder_forward.51} parent=0 // pred_check
    %p13 = pneg %p12
  $region11: #{text_decoder_forward.51} parent=0 // pred_check_branch
    %15 = sbr.rel (%p13) target = $region13
  $region12: #{text_decoder_forward.51} parent=0 // pred_region
    %16 = vst [vmem:[#allocation2] sm:$0xff] 0.0
    %17 = vst [vmem:[#allocation2 + $0x8] sm:$0xff] 0.0
    %18 = vst [vmem:[#allocation2 + $0x10] sm:$0xff] 0.0
    %19 = vst [vmem:[#allocation2 + $0x18] sm:$0xff] 0.0
    %20 = vst [vmem:[#allocation2 + $0x20] sm:$0xff] 0.0
    %21 = vst [vmem:[#allocation2 + $0x28] sm:$0xff] 0.0
    %22 = vst [vmem:[#allocation2 + $0x30] sm:$0xff] 0.0
    %23 = vst [vmem:[#allocation2 + $0x38] sm:$0xff] 0.0
  $region13: #{text_decoder_forward.51} parent=0 // pred_fallthru
    _
  %v24 = vld [vmem:[%s0] sm:$0xf]
  %v25 = vld [vmem:[%s0 + $0x4] sm:$0xf]
  %v26 = vld [vmem:[%s1] sm:$0xf]
  %v27 = vld [vmem:[%s1 + $0x4] sm:$0xf]
  %v28 = vld [vmem:[%s1 + $0x8] sm:$0xf]
  %v29 = vld [vmem:[%s1 + $0xc] sm:$0xf]
  %v30 = vld [vmem:[%s1 + $0x10] sm:$0xf]
  %v31 = vld [vmem:[%s1 + $0x14] sm:$0xf]
  %v32 = vld [vmem:[%s1 + $0x18] sm:$0xf]
  %v33 = vld [vmem:[%s1 + $0x1c] sm:$0xf]
  %v34 = vld [vmem:[%s1 + $0x20] sm:$0xf]
  %v35 = vld [vmem:[%s1 + $0x24] sm:$0xf]
  %v36 = vld [vmem:[%s1 + $0x28] sm:$0xf]
  %v37 = vld [vmem:[%s1 + $0x2c] sm:$0xf]
  %v38 = vld [vmem:[%s1 + $0x30] sm:$0xf]
  %v39 = vld [vmem:[%s1 + $0x34] sm:$0xf]
  %v40 = vld [vmem:[%s1 + $0x38] sm:$0xf]
  %v41 = vld [vmem:[%s1 + $0x3c] sm:$0xf]
  %v42 = vld [vmem:[%s1 + $0x40] sm:$0xf]
  %v43 = vld [vmem:[%s1 + $0x44] sm:$0xf]
  %v44 = vld [vmem:[%s1 + $0x48] sm:$0xf]
  %v45 = vld [vmem:[%s1 + $0x4c] sm:$0xf]
  %v46 = vld [vmem:[%s1 + $0x50] sm:$0xf]
  %v47 = vld [vmem:[%s1 + $0x54] sm:$0xf]
  %v48 = vld [vmem:[%s1 + $0x58] sm:$0xf]
  %v49 = vld [vmem:[%s1 + $0x5c] sm:$0xf]
  %v50 = vld [vmem:[%s1 + $0x60] sm:$0xf]
  %v51 = vld [vmem:[%s1 + $0x64] sm:$0xf]
  %v52 = vld [vmem:[%s1 + $0x68] sm:$0xf]
  %v53 = vld [vmem:[%s1 + $0x6c] sm:$0xf]
  %v54 = vld [vmem:[%s1 + $0x70] sm:$0xf]
  %v55 = vld [vmem:[%s1 + $0x74] sm:$0xf]
  %v56 = vld [vmem:[%s1 + $0x78] sm:$0xf]
  %v57 = vld [vmem:[%s1 + $0x7c] sm:$0xf]
  %v58 = vld [vmem:[%s1 + $0x80] sm:$0xf]
  %v59 = vld [vmem:[%s1 + $0x84] sm:$0xf]
  %v60 = vld [vmem:[%s1 + $0x88] sm:$0xf]
  %v61 = vld [vmem:[%s1 + $0x8c] sm:$0xf]
  %v62 = vld [vmem:[%s1 + $0x90] sm:$0xf]
  %v63 = vld [vmem:[%s1 + $0x94] sm:$0xf]
  %v64 = vld [vmem:[%s1 + $0x98] sm:$0xf]
  %v65 = vld [vmem:[%s1 + $0x9c] sm:$0xf]
  %v66 = vld [vmem:[%s1 + $0xa0] sm:$0xf]
  %v67 = vld [vmem:[%s1 + $0xa4] sm:$0xf]
  %v68 = vld [vmem:[%s1 + $0xa8] sm:$0xf]
  %v69 = vld [vmem:[%s1 + $0xac] sm:$0xf]
  %v70 = vld [vmem:[%s1 + $0xb0] sm:$0xf]
  %v71 = vld [vmem:[%s1 + $0xb4] sm:$0xf]
  %v72 = vld [vmem:[%s1 + $0xb8] sm:$0xf]
  %v73 = vld [vmem:[%s1 + $0xbc] sm:$0xf]
  %v74 = vld [vmem:[%s1 + $0xc0] sm:$0xf]
  %v75 = vld [vmem:[%s1 + $0xc4] sm:$0xf]
  %v76 = vld [vmem:[%s1 + $0xc8] sm:$0xf]
  %v77 = vld [vmem:[%s1 + $0xcc] sm:$0xf]
  %v78 = vld [vmem:[%s1 + $0xd0] sm:$0xf]
  %v79 = vld [vmem:[%s1 + $0xd4] sm:$0xf]
  %v80 = vld [vmem:[%s1 + $0xd8] sm:$0xf]
  %v81 = vld [vmem:[%s1 + $0xdc] sm:$0xf]
  %v82 = vld [vmem:[%s1 + $0xe0] sm:$0xf]
  %v83 = vld [vmem:[%s1 + $0xe4] sm:$0xf]
  %v84 = vld [vmem:[%s1 + $0xe8] sm:$0xf]
  %v85 = vld [vmem:[%s1 + $0xec] sm:$0xf]
  %v86 = vld [vmem:[%s1 + $0xf0] sm:$0xf]
  %v87 = vld [vmem:[%s1 + $0xf4] sm:$0xf]
  %v88 = vld [vmem:[%s1 + $0xf8] sm:$0xf]
  %v89 = vld [vmem:[%s1 + $0xfc] sm:$0xf]
  %v90 = vld [vmem:[#allocation2] sm:$0xff]
  %v91 = vld [vmem:[#allocation2 + $0x8] sm:$0xff]
  %v92 = vld [vmem:[#allocation2 + $0x10] sm:$0xff]
  %v93 = vld [vmem:[#allocation2 + $0x18] sm:$0xff]
  %v94 = vld [vmem:[#allocation2 + $0x20] sm:$0xff]
  %v95 = vld [vmem:[#allocation2 + $0x28] sm:$0xff]
  %v96 = vld [vmem:[#allocation2 + $0x30] sm:$0xff]
  %v97 = vld [vmem:[#allocation2 + $0x38] sm:$0xff]
  %v100 = vunpack.c.l.b16 %v24
  %v101 = vunpack.c.l.b16 %v25
  %v102 = vpack.c.b16 %v101, %v100
  %v168 = vunpack.c.l.b16 %v26
  %v169 = vunpack.c.l.b16 %v27
  %v170 = vunpack.c.l.b16 %v28
  %v171 = vunpack.c.l.b16 %v29
  %v172 = vunpack.c.l.b16 %v30
  %v173 = vunpack.c.l.b16 %v31
  %v174 = vunpack.c.l.b16 %v32
  %v175 = vunpack.c.l.b16 %v33
  %v176 = vunpack.c.l.b16 %v34
  %v177 = vunpack.c.l.b16 %v35
  %v178 = vunpack.c.l.b16 %v36
  %v179 = vunpack.c.l.b16 %v37
  %v180 = vunpack.c.l.b16 %v38
  %v181 = vunpack.c.l.b16 %v39
  %v182 = vunpack.c.l.b16 %v40
  %v183 = vunpack.c.l.b16 %v41
  %v184 = vunpack.c.l.b16 %v42
  %v185 = vunpack.c.l.b16 %v43
  %v186 = vunpack.c.l.b16 %v44
  %v187 = vunpack.c.l.b16 %v45
  %v188 = vunpack.c.l.b16 %v46
  %v189 = vunpack.c.l.b16 %v47
  %v190 = vunpack.c.l.b16 %v48
  %v191 = vunpack.c.l.b16 %v49
  %v192 = vunpack.c.l.b16 %v50
  %v193 = vunpack.c.l.b16 %v51
  %v194 = vunpack.c.l.b16 %v52
  %v195 = vunpack.c.l.b16 %v53
  %v196 = vunpack.c.l.b16 %v54
  %v197 = vunpack.c.l.b16 %v55
  %v198 = vunpack.c.l.b16 %v56
  %v199 = vunpack.c.l.b16 %v57
  %v200 = vunpack.c.l.b16 %v58
  %v201 = vunpack.c.l.b16 %v59
  %v202 = vunpack.c.l.b16 %v60
  %v203 = vunpack.c.l.b16 %v61
  %v204 = vunpack.c.l.b16 %v62
  %v205 = vunpack.c.l.b16 %v63
  %v206 = vunpack.c.l.b16 %v64
  %v207 = vunpack.c.l.b16 %v65
  %v208 = vunpack.c.l.b16 %v66
  %v209 = vunpack.c.l.b16 %v67
  %v210 = vunpack.c.l.b16 %v68
  %v211 = vunpack.c.l.b16 %v69
  %v212 = vunpack.c.l.b16 %v70
  %v213 = vunpack.c.l.b16 %v71
  %v214 = vunpack.c.l.b16 %v72
  %v215 = vunpack.c.l.b16 %v73
  %v216 = vunpack.c.l.b16 %v74
  %v217 = vunpack.c.l.b16 %v75
  %v218 = vunpack.c.l.b16 %v76
  %v219 = vunpack.c.l.b16 %v77
  %v220 = vunpack.c.l.b16 %v78
  %v221 = vunpack.c.l.b16 %v79
  %v222 = vunpack.c.l.b16 %v80
  %v223 = vunpack.c.l.b16 %v81
  %v224 = vunpack.c.l.b16 %v82
  %v225 = vunpack.c.l.b16 %v83
  %v226 = vunpack.c.l.b16 %v84
  %v227 = vunpack.c.l.b16 %v85
  %v228 = vunpack.c.l.b16 %v86
  %v229 = vunpack.c.l.b16 %v87
  %v230 = vunpack.c.l.b16 %v88
  %v231 = vunpack.c.l.b16 %v89
  %v232 = vpack.c.b16 %v169, %v168
  %v233 = vpack.c.b16 %v171, %v170
  %v234 = vpack.c.b16 %v173, %v172
  %v235 = vpack.c.b16 %v175, %v174
  %v236 = vpack.c.b16 %v177, %v176
  %v237 = vpack.c.b16 %v179, %v178
  %v238 = vpack.c.b16 %v181, %v180
  %v239 = vpack.c.b16 %v183, %v182
  %v240 = vpack.c.b16 %v185, %v184
  %v241 = vpack.c.b16 %v187, %v186
  %v242 = vpack.c.b16 %v189, %v188
  %v243 = vpack.c.b16 %v191, %v190
  %v244 = vpack.c.b16 %v193, %v192
  %v245 = vpack.c.b16 %v195, %v194
  %v246 = vpack.c.b16 %v197, %v196
  %v247 = vpack.c.b16 %v199, %v198
  %v248 = vpack.c.b16 %v201, %v200
  %v249 = vpack.c.b16 %v203, %v202
  %v250 = vpack.c.b16 %v205, %v204
  %v251 = vpack.c.b16 %v207, %v206
  %v252 = vpack.c.b16 %v209, %v208
  %v253 = vpack.c.b16 %v211, %v210
  %v254 = vpack.c.b16 %v213, %v212
  %v255 = vpack.c.b16 %v215, %v214
  %v256 = vpack.c.b16 %v217, %v216
  %v257 = vpack.c.b16 %v219, %v218
  %v258 = vpack.c.b16 %v221, %v220
  %v259 = vpack.c.b16 %v223, %v222
  %v260 = vpack.c.b16 %v225, %v224
  %v261 = vpack.c.b16 %v227, %v226
  %v262 = vpack.c.b16 %v229, %v228
  %v263 = vpack.c.b16 %v231, %v230
  %296 = vmatprep.subr.bf16.mxu0 0
  %297 = vmatpush1.bf16.xpose.msra.mxu0 %v239
  %298 = vmatprep.subr.bf16.mxu0 0
  %299 = vmatpush1.bf16.xpose.msra.mxu0 %v238
  %300 = vmatprep.subr.bf16.mxu0 0
  %301 = vmatpush1.bf16.xpose.msra.mxu0 %v237
  %302 = vmatprep.subr.bf16.mxu0 0
  %303 = vmatpush1.bf16.xpose.msra.mxu0 %v236
  %304 = vmatprep.subr.bf16.mxu0 0
  %305 = vmatpush1.bf16.xpose.msra.mxu0 %v235
  %306 = vmatprep.subr.bf16.mxu0 0
  %307 = vmatpush1.bf16.xpose.msra.mxu0 %v234
  %308 = vmatprep.subr.bf16.mxu0 0
  %309 = vmatpush1.bf16.xpose.msra.mxu0 %v233
  %310 = vmatprep.subr.bf16.mxu0 0
  %311 = vmatpush1.bf16.xpose.msra.mxu0 %v232
  %312 = vmatprep.subr.bf16.mxu0 0
  %313 = vmatpush2.bf16.xpose.msra.mxu0 %v247
  %314 = vmatprep.subr.bf16.mxu0 0
  %315 = vmatpush2.bf16.xpose.msra.mxu0 %v246
  %316 = vmatprep.subr.bf16.mxu0 0
  %317 = vmatpush2.bf16.xpose.msra.mxu0 %v245
  %318 = vmatprep.subr.bf16.mxu0 0
  %319 = vmatpush2.bf16.xpose.msra.mxu0 %v244
  %320 = vmatprep.subr.bf16.mxu0 0
  %321 = vmatpush2.bf16.xpose.msra.mxu0 %v243
  %322 = vmatprep.subr.bf16.mxu0 0
  %323 = vmatpush2.bf16.xpose.msra.mxu0 %v242
  %324 = vmatprep.subr.bf16.mxu0 0
  %325 = vmatpush2.bf16.xpose.msra.mxu0 %v241
  %326 = vmatprep.subr.bf16.mxu0 0
  %327 = vmatpush2.bf16.xpose.msra.mxu0 %v240
  %328 = vmatprep.mubr.bf16.mxu0 0
  %329 = vmatmul.mubr.bf16.gmra.mxu0 %v102
  %v330 = vpop.f32.mrf.mxu0
  %v331 = vadd.f32 0.0, %v330
  %v332 = vpop.f32.mrf.mxu0
  %v333 = vadd.f32 0.0, %v332
  %v334 = vpop.f32.mrf.mxu0
  %v335 = vadd.f32 0.0, %v334
  %v336 = vpop.f32.mrf.mxu0
  %v337 = vadd.f32 0.0, %v336
  %338 = vdwg.mxu0
  %339 = vmatprep.subr.bf16.mxu0 0
  %340 = vmatpush1.bf16.xpose.msra.mxu0 %v255
  %341 = vmatprep.subr.bf16.mxu0 0
  %342 = vmatpush1.bf16.xpose.msra.mxu0 %v254
  %343 = vmatprep.subr.bf16.mxu0 0
  %344 = vmatpush1.bf16.xpose.msra.mxu0 %v253
  %345 = vmatprep.subr.bf16.mxu0 0
  %346 = vmatpush1.bf16.xpose.msra.mxu0 %v252
  %347 = vmatprep.subr.bf16.mxu0 0
  %348 = vmatpush1.bf16.xpose.msra.mxu0 %v251
  %349 = vmatprep.subr.bf16.mxu0 0
  %350 = vmatpush1.bf16.xpose.msra.mxu0 %v250
  %351 = vmatprep.subr.bf16.mxu0 0
  %352 = vmatpush1.bf16.xpose.msra.mxu0 %v249
  %353 = vmatprep.subr.bf16.mxu0 0
  %354 = vmatpush1.bf16.xpose.msra.mxu0 %v248
  %355 = vmatprep.subr.bf16.mxu0 0
  %356 = vmatpush2.bf16.xpose.msra.mxu0 %v263
  %357 = vmatprep.subr.bf16.mxu0 0
  %358 = vmatpush2.bf16.xpose.msra.mxu0 %v262
  %359 = vmatprep.subr.bf16.mxu0 0
  %360 = vmatpush2.bf16.xpose.msra.mxu0 %v261
  %361 = vmatprep.subr.bf16.mxu0 0
  %362 = vmatpush2.bf16.xpose.msra.mxu0 %v260
  %363 = vmatprep.subr.bf16.mxu0 0
  %364 = vmatpush2.bf16.xpose.msra.mxu0 %v259
  %365 = vmatprep.subr.bf16.mxu0 0
  %366 = vmatpush2.bf16.xpose.msra.mxu0 %v258
  %367 = vmatprep.subr.bf16.mxu0 0
  %368 = vmatpush2.bf16.xpose.msra.mxu0 %v257
  %369 = vmatprep.subr.bf16.mxu0 0
  %370 = vmatpush2.bf16.xpose.msra.mxu0 %v256
  %371 = vmatprep.mubr.bf16.mxu0 0
  %372 = vmatmul.mubr.bf16.gmra.mxu0 %v102
  %v373 = vpop.f32.mrf.mxu0
  %v374 = vadd.f32 0.0, %v373
  %v375 = vpop.f32.mrf.mxu0
  %v376 = vadd.f32 0.0, %v375
  %v377 = vpop.f32.mrf.mxu0
  %v378 = vadd.f32 0.0, %v377
  %v379 = vpop.f32.mrf.mxu0
  %v380 = vadd.f32 0.0, %v379
  %381 = vdwg.mxu0
  %v382 = vadd.f32 %v90, %v331
  %v383 = vadd.f32 %v91, %v333
  %v384 = vadd.f32 %v92, %v374
  %v385 = vadd.f32 %v93, %v376
  %v386 = vadd.f32 %v94, %v335
  %v387 = vadd.f32 %v95, %v337
  %v388 = vadd.f32 %v96, %v378
  %v389 = vadd.f32 %v97, %v380
  %390 = vst [vmem:[#allocation2] sm:$0xff] %v382
  %391 = vst [vmem:[#allocation2 + $0x8] sm:$0xff] %v383
  %392 = vst [vmem:[#allocation2 + $0x10] sm:$0xff] %v384
  %393 = vst [vmem:[#allocation2 + $0x18] sm:$0xff] %v385
  %394 = vst [vmem:[#allocation2 + $0x20] sm:$0xff] %v386
  %395 = vst [vmem:[#allocation2 + $0x28] sm:$0xff] %v387
  %396 = vst [vmem:[#allocation2 + $0x30] sm:$0xff] %v388
  %397 = vst [vmem:[#allocation2 + $0x38] sm:$0xff] %v389
  // Predicated region
  $region14: #{text_decoder_forward.51} parent=0 // pred_check
    %p398 = pneg %p12
  $region15: #{text_decoder_forward.51} parent=0 // pred_check_branch
    %400 = sbr.rel (%p398) target = $region17
  $region16: #{text_decoder_forward.51} parent=0 // pred_region
    %v401 = vld [vmem:[#allocation2] sm:$0xff]
    %v402 = vld [vmem:[#allocation2 + $0x8] sm:$0xff]
    %v403 = vld [vmem:[#allocation2 + $0x10] sm:$0xff]
    %v404 = vld [vmem:[#allocation2 + $0x18] sm:$0xff]
    %v405 = vld [vmem:[#allocation2 + $0x20] sm:$0xff]
    %v406 = vld [vmem:[#allocation2 + $0x28] sm:$0xff]
    %v407 = vld [vmem:[#allocation2 + $0x30] sm:$0xff]
    %v408 = vld [vmem:[#allocation2 + $0x38] sm:$0xff]
    %409 = vst [vmem:[%s2] sm:$0xff] %v401
    %410 = vst [vmem:[%s2 + $0x8] sm:$0xff] %v402
    %411 = vst [vmem:[%s2 + $0x10] sm:$0xff] %v403
    %412 = vst [vmem:[%s2 + $0x18] sm:$0xff] %v404
    %413 = vst [vmem:[%s2 + $0x20] sm:$0xff] %v405
    %414 = vst [vmem:[%s2 + $0x28] sm:$0xff] %v406
    %415 = vst [vmem:[%s2 + $0x30] sm:$0xff] %v407
    %416 = vst [vmem:[%s2 + $0x38] sm:$0xff] %v408
  $region17: #{text_decoder_forward.51} parent=0 // pred_fallthru
    _
  // Predicated region
  $region18: #{text_decoder_forward.51} parent=0 // pred_check
    _
  $region19: #{text_decoder_forward.51} parent=0 // pred_check_branch
    %418 = sbr.rel (0) target = $region21
  $region20: #{text_decoder_forward.51} parent=0 // pred_region
    _
  $region21: #{text_decoder_forward.51} parent=0 // pred_fallthru
    _
  // Predicated region
  $region22: #{text_decoder_forward.51} parent=0 // pred_check
    _
  $region23: #{text_decoder_forward.51} parent=0 // pred_check_branch
    %420 = sbr.rel (0) target = $region25
  $region24: #{text_decoder_forward.51} parent=0 // pred_region
    _
  $region25: #{text_decoder_forward.51} parent=0 // pred_fallthru
    _

</llo_original>
